<compile_context>
chip_gen: v6e
topology: v6e:2x2x1
jax: 0.10.0
libtpu: 0.0.40
codegen_flags: <defaults>
</compile_context>

<pallas_src>
import jax
import jax.numpy as jnp
from jax.experimental import pallas as pl
from jax.experimental.pallas import tpu as pltpu

# ----- lane-aligned layout constants ------------------------------------------------
# conv1 stage: 6 row-windows ("pih") per image, each K1_CHUNK = 8 rows x 32 padded cols
#              output N1 = 4 pool phases x 256 lanes,
#              within a phase: lane = s1*128 + pj*10 + oc   (s1 = pooled-row parity)
# conv2 stage: per pooled output row "po": K2 = 3*256 = 768 lanes, N2 = 4 phases x 128,
#              within a phase: lane = pj2*20 + oc2
# fc stage:    feat = 4*128 = 512 lanes, lane = po*128 + pj2*20 + oc2
K1_CHUNK = 256
N1 = 1024
K2 = 768
N2 = 512
FEAT = 512
FC1_PAD = 64      # fc1 output padded 50 -> 64 lanes
OUT_PAD = 128     # fc2 output padded 10 -> 128 lanes (lane-dense store)


# ----------------------------- fused Pallas kernel ---------------------------------- #

def _net_kernel(a1_ref, w1_ref, b1_ref, w2_ref, b2_ref,
                wf1_ref, bf1_ref, wf2_ref, bf2_ref, o_ref,
                h1_ref, h2_ref):
    tb = a1_ref.shape[0]
    w1 = w1_ref[...]                                   # (256, 1024) bf16
    w2 = w2_ref[...]                                   # (768, 512)  bf16
    # Hoisted bias broadcasts (done once, not per unrolled loop iteration).
    b1b = jnp.broadcast_to(b1_ref[...], (tb, 256))     # f32
    b2b = jnp.broadcast_to(b2_ref[...], (tb, 128))     # f32

    # conv1 (im2col folded into banded w1) + bias + 2x2 maxpool + relu -> h1 scratch.
    for pih in range(6):                               # covers pooled rows 2*pih, 2*pih+1
        a = a1_ref[:, pih * K1_CHUNK:(pih + 1) * K1_CHUNK]           # (tb, 256) bf16
        y = jnp.dot(a, w1, preferred_element_type=jnp.float32)       # (tb, 1024) f32
        m = jnp.maximum(jnp.maximum(y[:, 0:256], y[:, 256:512]),
                        jnp.maximum(y[:, 512:768], y[:, 768:1024]))
        h1_ref[:, pih * 256:(pih + 1) * 256] = (
            jnp.maximum(m + b1b, 0.0).astype(jnp.bfloat16))

    # TODO(synk): nn.Dropout2d / F.dropout are identity here (inference/eval semantics).
    # conv2 + bias + 2x2 maxpool + relu -> h2 scratch.
    for po in range(4):                                # pooled output row
        a = h1_ref[:, po * 256:po * 256 + 768]                       # (tb, 768) bf16
        y = jnp.dot(a, w2, preferred_element_type=jnp.float32)       # (tb, 512) f32
        m = jnp.maximum(jnp.maximum(y[:, 0:128], y[:, 128:256]),
                        jnp.maximum(y[:, 256:384], y[:, 384:512]))
        h2_ref[:, po * 128:(po + 1) * 128] = (
            jnp.maximum(m + b2b, 0.0).astype(jnp.bfloat16))

    # flatten (already [h, w, c]-ordered in lanes) + fc1 + relu + fc2 + log_softmax.
    feat = h2_ref[...]                                               # (tb, 512) bf16
    h3 = jnp.dot(feat, wf1_ref[...], preferred_element_type=jnp.float32) + bf1_ref[...]
    h3 = jnp.maximum(h3, 0.0).astype(jnp.bfloat16)                   # (tb, 64)
    logits = jnp.dot(h3, wf2_ref[...], preferred_element_type=jnp.float32) + bf2_ref[...]

    # Padded logit lanes carry bias -1e30 -> exp underflows to 0; lane-dense reductions.
    mx = jnp.max(logits, axis=-1, keepdims=True)
    s = logits - mx
    lse = jnp.log(jnp.sum(jnp.exp(s), axis=-1, keepdims=True))
    o_ref[...] = s - lse


# ----------------------------- host-side constant builders -------------------------- #

def _build_conv1_mat(w, dtype=jnp.bfloat16):
    """(10,1,5,5) OIHW conv1 weight -> banded (256, 1024) matrix."""
    k = jnp.arange(K1_CHUNK)
    n = jnp.arange(N1)
    r = k // 32                       # row offset inside the 8-row window
    p = k % 32                        # (padded) input column
    chunk = n // 256
    di, dj = chunk // 2, chunk % 2    # pool phase
    rem = n % 256
    s1 = rem // 128                   # pooled-row parity
    t = rem % 128
    pj, oc = t // 10, t % 10
    kh = r[:, None] - 2 * s1[None, :] - di[None, :]
    kw = p[:, None] - 2 * pj[None, :] - dj[None, :]
    valid = (t[None, :] < 120) & (kh >= 0) & (kh <= 4) & (kw >= 0) & (kw <= 4)
    khc, kwc = jnp.clip(kh, 0, 4), jnp.clip(kw, 0, 4)
    w3 = w[:, 0, :, :]
    vals = w3[jnp.broadcast_to(oc[None, :], (K1_CHUNK, N1)), khc, kwc]
    return jnp.where(valid, vals, 0.0).astype(dtype)


def _build_conv2_mat(w, dtype=jnp.bfloat16):
    """(20,10,5,5) OIHW conv2 weight -> banded (768, 512) matrix."""
    k = jnp.arange(K2)
    n = jnp.arange(N2)
    q2 = k // 256
    remk = k % 256
    s1 = remk // 128
    t = remk % 128
    pj, c = t // 10, t % 10
    chunk = n // 128
    di2, dj2 = chunk // 2, chunk % 2
    u = n % 128
    pj2, oc2 = u // 20, u % 20
    kh = (2 * q2 + s1)[:, None] - di2[None, :]
    kw = pj[:, None] - (2 * pj2 + dj2)[None, :]
    valid = ((t[:, None] < 120) & (u[None, :] < 80) &
             (kh >= 0) & (kh <= 4) & (kw >= 0) & (kw <= 4))
    khc, kwc = jnp.clip(kh, 0, 4), jnp.clip(kw, 0, 4)
    oc2b = jnp.broadcast_to(oc2[None, :], (K2, N2))
    cb = jnp.broadcast_to(c[:, None], (K2, N2))
    vals = w[oc2b, cb, khc, kwc]
    return jnp.where(valid, vals, 0.0).astype(dtype)


def _build_fc1_mat(w, dtype=jnp.bfloat16):
    """torch fc1 weight (50,320) -> (512, 64) in kernel lane order (cols 50..63 zero)."""
    m = jnp.arange(FEAT)
    po = m // 128
    u = m % 128
    pj2, oc2 = u // 20, u % 20
    valid = u < 80
    col = jnp.clip(oc2 * 16 + po * 4 + pj2, 0, 319)   # torch flatten index c*16 + h*4 + w
    vals = w[:, col].T                                 # (512, 50)
    vals = jnp.where(valid[:, None], vals, 0.0)
    out = jnp.zeros((FEAT, FC1_PAD), jnp.float32).at[:, :50].set(vals)
    return out.astype(dtype)


def prepare_params(params):
    """One-time conversion of PyTorch-layout params into kernel-ready constants."""
    lane = jnp.arange(128)
    b1_row = jnp.where(lane < 120, params["conv1_b"][lane % 10], 0.0)
    b1t = jnp.concatenate([b1_row, b1_row]).reshape(1, 256).astype(jnp.float32)
    b2t = jnp.where(lane < 80, params["conv2_b"][lane % 20], 0.0).reshape(1, 128)

    bf1 = jnp.zeros((1, FC1_PAD), jnp.float32).at[0, :50].set(params["fc1_b"])
    # fc2: pad K 50->64 (zero rows) and N 10->128 (zero cols); padded output biases
    # get -1e30 so log_softmax over the dense 128-lane tile stays correct.
    wf2 = jnp.zeros((FC1_PAD, OUT_PAD), jnp.float32).at[:50, :10].set(params["fc2_w"].T)
    bf2 = jnp.full((1, OUT_PAD), -1e30, jnp.float32).at[0, :10].set(params["fc2_b"])

    return (
        _build_conv1_mat(params["conv1_w"]),
        b1t,
        _build_conv2_mat(params["conv2_w"]),
        b2t.astype(jnp.float32),
        _build_fc1_mat(params["fc1_w"]),
        bf1,
        wf2.astype(jnp.bfloat16),
        bf2,
    )


def _prep_input(x):
    """(B,1,28,28) -> (B, 1536) bf16: 6 overlapping 8-row windows, cols padded 28->32."""
    B = x.shape[0]
    assert x.shape[-2:] == (28, 28), x.shape
    x = x.reshape(B, 28, 28).astype(jnp.float32)
    xp = jnp.pad(x, ((0, 0), (0, 0), (0, 4)))                        # (B, 28, 32)
    rows = 4 * jnp.arange(6)[:, None] + jnp.arange(8)[None, :]       # (6, 8)
    a1 = xp[:, rows, :]                                              # (B, 6, 8, 32)
    return a1.reshape(B, 6 * K1_CHUNK).astype(jnp.bfloat16)


def _round_up(a, m):
    return (a + m - 1) // m * m


# ----------------------------- forward ----------------------------------------------- #

def net_forward(x, prep, tile_b=512):
    w1m, b1t, w2m, b2t, wf1, bf1, wf2, bf2 = prep
    B = x.shape[0]
    a1 = _prep_input(x)

    tb = min(tile_b, _round_up(B, 8))
    # Keep >=2 grid steps for large batches so v7x's two TensorCores both get work
    # (no-op on single-TC v5e/v6e); never shrink below 8 sublanes.
    if B >= 256:
        tb = min(tb, _round_up((B + 1) // 2, 8))
    b_pad = _round_up(B, tb)
    if b_pad != B:
        a1 = jnp.pad(a1, ((0, b_pad - B), (0, 0)))

    out = pl.pallas_call(
        _net_kernel,
        out_shape=jax.ShapeDtypeStruct((b_pad, OUT_PAD), jnp.float32),
        grid_spec=pltpu.PrefetchScalarGridSpec(
            num_scalar_prefetch=0,
            grid=(b_pad // tb,),
            in_specs=[
                pl.BlockSpec((tb, 6 * K1_CHUNK), lambda i: (i, 0)),   # input windows
                pl.BlockSpec((K1_CHUNK, N1), lambda i: (0, 0)),       # conv1 matrix
                pl.BlockSpec((1, K1_CHUNK), lambda i: (0, 0)),        # conv1 bias tile
                pl.BlockSpec((K2, N2), lambda i: (0, 0)),             # conv2 matrix
                pl.BlockSpec((1, 128), lambda i: (0, 0)),             # conv2 bias tile
                pl.BlockSpec((FEAT, FC1_PAD), lambda i: (0, 0)),      # fc1 (padded N)
                pl.BlockSpec((1, FC1_PAD), lambda i: (0, 0)),
                pl.BlockSpec((FC1_PAD, OUT_PAD), lambda i: (0, 0)),   # fc2 (padded K,N)
                pl.BlockSpec((1, OUT_PAD), lambda i: (0, 0)),
            ],
            out_specs=pl.BlockSpec((tb, OUT_PAD), lambda i: (i, 0)),
            scratch_shapes=[
                pltpu.VMEM((tb, 6 * 256), jnp.bfloat16),              # h1 (conv1 out)
                pltpu.VMEM((tb, 512), jnp.bfloat16),                  # h2 (conv2 out)
            ],
        ),
        compiler_params=pltpu.CompilerParams(
            dimension_semantics=("parallel",)),
    )(a1, w1m, b1t, w2m, b2t, wf1, bf1, wf2, bf2)
    return out[:B, :10]


# ----------------------------- reference / init -------------------------------------- #

def init_params(key):
    """Deterministic PyTorch-default-style (uniform +-1/sqrt(fan_in)) init."""
    ks = jax.random.split(key, 8)

    def u(k, shape, fan_in):
        bound = 1.0 / jnp.sqrt(jnp.float32(fan_in))
        return jax.random.uniform(k, shape, jnp.float32, -bound, bound)

    return {
        "conv1_w": u(ks[0], (10, 1, 5, 5), 1 * 25),
        "conv1_b": u(ks[1], (10,), 1 * 25),
        "conv2_w": u(ks[2], (20, 10, 5, 5), 10 * 25),
        "conv2_b": u(ks[3], (20,), 10 * 25),
        "fc1_w":   u(ks[4], (50, 320), 320),   # torch Linear: (out, in)
        "fc1_b":   u(ks[5], (50,), 320),
        "fc2_w":   u(ks[6], (10, 50), 50),
        "fc2_b":   u(ks[7], (10,), 50),
    }


def _reference_forward(x, params):
    """Plain-JAX reference (eval-mode semantics)."""
    x = x.reshape(-1, 1, 28, 28).astype(jnp.float32)
    dn = ("NCHW", "OIHW", "NCHW")
    y = jax.lax.conv_general_dilated(x, params["conv1_w"], (1, 1), "VALID",
                                     dimension_numbers=dn)
    y = y + params["conv1_b"][None, :, None, None]
    B, C, H, W = y.shape
    y = jnp.maximum(y.reshape(B, C, H // 2, 2, W // 2, 2).max(axis=(3, 5)), 0.0)
    y = jax.lax.conv_general_dilated(y, params["conv2_w"], (1, 1), "VALID",
                                     dimension_numbers=dn)
    y = y + params["conv2_b"][None, :, None, None]
    B, C, H, W = y.shape
    y = jnp.maximum(y.reshape(B, C, H // 2, 2, W // 2, 2).max(axis=(3, 5)), 0.0)
    y = y.reshape(B, 320)
    y = jnp.maximum(y @ params["fc1_w"].T + params["fc1_b"], 0.0)
    y = y @ params["fc2_w"].T + params["fc2_b"]
    return jax.nn.log_softmax(y, axis=-1)


if __name__ == "__main__":
    key = jax.random.PRNGKey(0)
    pkey, xkey = jax.random.split(key)
    params = init_params(pkey)
    x = jax.random.normal(xkey, (2, 1, 28, 28), jnp.float32)   # NCHW, MNIST-sized

    prep = prepare_params(params)                   # one-time weight re-layout
    fwd = jax.jit(net_forward)
    out = jax.block_until_ready(fwd(x, prep))

    assert out.shape == (2, 10), out.shape
    row_sums = jnp.exp(out).sum(axis=1)             # log_softmax normalization check
    assert bool(jnp.all(jnp.abs(row_sums - 1.0) < 1e-3)), row_sums

    ref = _reference_forward(x, params)             # semantic check (bf16 tolerance)
    max_err = float(jnp.max(jnp.abs(out - ref)))
    assert max_err < 1e-1, f"max |pallas - reference| = {max_err}"

    print("KERNEL_OK")
</pallas_src>

<mosaic_0001>
module attributes {stable_mosaic.version = 11 : i64} {
  func.func @_net_kernel(%arg0: i32, %arg1: memref<8x1536xbf16, #tpu.memory_space<vmem>>, %arg2: memref<256x1024xbf16, #tpu.memory_space<vmem>>, %arg3: memref<1x256xf32, #tpu.memory_space<vmem>>, %arg4: memref<768x512xbf16, #tpu.memory_space<vmem>>, %arg5: memref<1x128xf32, #tpu.memory_space<vmem>>, %arg6: memref<512x64xbf16, #tpu.memory_space<vmem>>, %arg7: memref<1x64xf32, #tpu.memory_space<vmem>>, %arg8: memref<64x128xbf16, #tpu.memory_space<vmem>>, %arg9: memref<1x128xf32, #tpu.memory_space<vmem>>, %arg10: memref<8x128xf32, #tpu.memory_space<vmem>>, %arg11: memref<8x1536xbf16, #tpu.memory_space<vmem>>, %arg12: memref<8x512xbf16, #tpu.memory_space<vmem>>) attributes {dimension_semantics = [#tpu.dimension_semantics<parallel>], iteration_bounds = array<i64: 1>, scalar_prefetch = 0 : i64, scratch_operands = 2 : i64, tpu.core_type = #tpu.core_type<tc>, window_params = [{transform_indices = @transform_0, window_bounds = array<i64: 8, 1536>}, {pipeline_mode = #tpu.pipeline_mode<synchronous>, transform_indices = @transform_1, window_bounds = array<i64: 256, 1024>}, {pipeline_mode = #tpu.pipeline_mode<synchronous>, transform_indices = @transform_2, window_bounds = array<i64: 1, 256>}, {pipeline_mode = #tpu.pipeline_mode<synchronous>, transform_indices = @transform_3, window_bounds = array<i64: 768, 512>}, {pipeline_mode = #tpu.pipeline_mode<synchronous>, transform_indices = @transform_4, window_bounds = array<i64: 1, 128>}, {pipeline_mode = #tpu.pipeline_mode<synchronous>, transform_indices = @transform_5, window_bounds = array<i64: 512, 64>}, {pipeline_mode = #tpu.pipeline_mode<synchronous>, transform_indices = @transform_6, window_bounds = array<i64: 1, 64>}, {pipeline_mode = #tpu.pipeline_mode<synchronous>, transform_indices = @transform_7, window_bounds = array<i64: 64, 128>}, {pipeline_mode = #tpu.pipeline_mode<synchronous>, transform_indices = @transform_8, window_bounds = array<i64: 1, 128>}, {transform_indices = @transform_9, window_bounds = array<i64: 8, 128>}]} {
    %c0 = arith.constant 0 : index
    %c0_0 = arith.constant 0 : index
    %0 = vector.load %arg2[%c0, %c0_0] : memref<256x1024xbf16, #tpu.memory_space<vmem>>, vector<256x1024xbf16>
    %c0_1 = arith.constant 0 : index
    %c0_2 = arith.constant 0 : index
    %1 = vector.load %arg4[%c0_1, %c0_2] : memref<768x512xbf16, #tpu.memory_space<vmem>>, vector<768x512xbf16>
    %c0_3 = arith.constant 0 : index
    %c0_4 = arith.constant 0 : index
    %2 = vector.load %arg3[%c0_3, %c0_4] : memref<1x256xf32, #tpu.memory_space<vmem>>, vector<1x256xf32>
    %3 = vector.shape_cast %2 : vector<1x256xf32> to vector<1x256xf32>
    %4 = vector.broadcast %3 : vector<1x256xf32> to vector<8x256xf32>
    %c0_5 = arith.constant 0 : index
    %c0_6 = arith.constant 0 : index
    %5 = vector.load %arg5[%c0_5, %c0_6] : memref<1x128xf32, #tpu.memory_space<vmem>>, vector<1x128xf32>
    %6 = vector.shape_cast %5 : vector<1x128xf32> to vector<1x128xf32>
    %7 = vector.broadcast %6 : vector<1x128xf32> to vector<8x128xf32>
    %c0_7 = arith.constant 0 : index
    %c0_8 = arith.constant 0 : index
    %8 = vector.load %arg1[%c0_7, %c0_8] : memref<8x1536xbf16, #tpu.memory_space<vmem>>, vector<8x256xbf16>
    %cst = arith.constant dense<0.000000e+00> : vector<8x1024xf32>
    %9 = tpu.matmul %8, %0, %cst {dimension_numbers = #tpu.dot_dimension_numbers<[1], [0], [0], [1], [0, 0, 1, 1], [], []>} : vector<8x256xbf16>, vector<256x1024xbf16>, vector<8x1024xf32> -> vector<8x1024xf32>
    %10 = vector.extract_strided_slice %9 {offsets = [0, 0], sizes = [8, 256], strides = [1, 1]} : vector<8x1024xf32> to vector<8x256xf32>
    %11 = vector.extract_strided_slice %9 {offsets = [0, 256], sizes = [8, 256], strides = [1, 1]} : vector<8x1024xf32> to vector<8x256xf32>
    %12 = arith.maximumf %10, %11 : vector<8x256xf32>
    %13 = vector.extract_strided_slice %9 {offsets = [0, 512], sizes = [8, 256], strides = [1, 1]} : vector<8x1024xf32> to vector<8x256xf32>
    %14 = vector.extract_strided_slice %9 {offsets = [0, 768], sizes = [8, 256], strides = [1, 1]} : vector<8x1024xf32> to vector<8x256xf32>
    %15 = arith.maximumf %13, %14 : vector<8x256xf32>
    %16 = arith.maximumf %12, %15 : vector<8x256xf32>
    %17 = arith.addf %16, %4 : vector<8x256xf32>
    %cst_9 = arith.constant 0.000000e+00 : f32
    %18 = vector.broadcast %cst_9 : f32 to vector<8x256xf32>
    %19 = arith.maximumf %17, %18 : vector<8x256xf32>
    %20 = arith.truncf %19 : vector<8x256xf32> to vector<8x256xbf16>
    %c0_10 = arith.constant 0 : index
    %c0_11 = arith.constant 0 : index
    %21 = vector.load %arg11[%c0_10, %c0_11] : memref<8x1536xbf16, #tpu.memory_space<vmem>>, vector<8x256xbf16>
    tpu.vector_store %arg11[%c0_10, %c0_11], %20 {strides = array<i32>} : memref<8x1536xbf16, #tpu.memory_space<vmem>>, vector<8x256xbf16>,
    %c0_12 = arith.constant 0 : index
    %c256 = arith.constant 256 : index
    %22 = vector.load %arg1[%c0_12, %c256] : memref<8x1536xbf16, #tpu.memory_space<vmem>>, vector<8x256xbf16>
    %cst_13 = arith.constant dense<0.000000e+00> : vector<8x1024xf32>
    %23 = tpu.matmul %22, %0, %cst_13 {dimension_numbers = #tpu.dot_dimension_numbers<[1], [0], [0], [1], [0, 0, 1, 1], [], []>} : vector<8x256xbf16>, vector<256x1024xbf16>, vector<8x1024xf32> -> vector<8x1024xf32>
    %24 = vector.extract_strided_slice %23 {offsets = [0, 0], sizes = [8, 256], strides = [1, 1]} : vector<8x1024xf32> to vector<8x256xf32>
    %25 = vector.extract_strided_slice %23 {offsets = [0, 256], sizes = [8, 256], strides = [1, 1]} : vector<8x1024xf32> to vector<8x256xf32>
    %26 = arith.maximumf %24, %25 : vector<8x256xf32>
    %27 = vector.extract_strided_slice %23 {offsets = [0, 512], sizes = [8, 256], strides = [1, 1]} : vector<8x1024xf32> to vector<8x256xf32>
    %28 = vector.extract_strided_slice %23 {offsets = [0, 768], sizes = [8, 256], strides = [1, 1]} : vector<8x1024xf32> to vector<8x256xf32>
    %29 = arith.maximumf %27, %28 : vector<8x256xf32>
    %30 = arith.maximumf %26, %29 : vector<8x256xf32>
    %31 = arith.addf %30, %4 : vector<8x256xf32>
    %cst_14 = arith.constant 0.000000e+00 : f32
    %32 = vector.broadcast %cst_14 : f32 to vector<8x256xf32>
    %33 = arith.maximumf %31, %32 : vector<8x256xf32>
    %34 = arith.truncf %33 : vector<8x256xf32> to vector<8x256xbf16>
    %c0_15 = arith.constant 0 : index
    %c256_16 = arith.constant 256 : index
    %35 = vector.load %arg11[%c0_15, %c256_16] : memref<8x1536xbf16, #tpu.memory_space<vmem>>, vector<8x256xbf16>
    tpu.vector_store %arg11[%c0_15, %c256_16], %34 {strides = array<i32>} : memref<8x1536xbf16, #tpu.memory_space<vmem>>, vector<8x256xbf16>,
    %c0_17 = arith.constant 0 : index
    %c512 = arith.constant 512 : index
    %36 = vector.load %arg1[%c0_17, %c512] : memref<8x1536xbf16, #tpu.memory_space<vmem>>, vector<8x256xbf16>
    %cst_18 = arith.constant dense<0.000000e+00> : vector<8x1024xf32>
    %37 = tpu.matmul %36, %0, %cst_18 {dimension_numbers = #tpu.dot_dimension_numbers<[1], [0], [0], [1], [0, 0, 1, 1], [], []>} : vector<8x256xbf16>, vector<256x1024xbf16>, vector<8x1024xf32> -> vector<8x1024xf32>
    %38 = vector.extract_strided_slice %37 {offsets = [0, 0], sizes = [8, 256], strides = [1, 1]} : vector<8x1024xf32> to vector<8x256xf32>
    %39 = vector.extract_strided_slice %37 {offsets = [0, 256], sizes = [8, 256], strides = [1, 1]} : vector<8x1024xf32> to vector<8x256xf32>
    %40 = arith.maximumf %38, %39 : vector<8x256xf32>
    %41 = vector.extract_strided_slice %37 {offsets = [0, 512], sizes = [8, 256], strides = [1, 1]} : vector<8x1024xf32> to vector<8x256xf32>
    %42 = vector.extract_strided_slice %37 {offsets = [0, 768], sizes = [8, 256], strides = [1, 1]} : vector<8x1024xf32> to vector<8x256xf32>
    %43 = arith.maximumf %41, %42 : vector<8x256xf32>
    %44 = arith.maximumf %40, %43 : vector<8x256xf32>
    %45 = arith.addf %44, %4 : vector<8x256xf32>
    %cst_19 = arith.constant 0.000000e+00 : f32
    %46 = vector.broadcast %cst_19 : f32 to vector<8x256xf32>
    %47 = arith.maximumf %45, %46 : vector<8x256xf32>
    %48 = arith.truncf %47 : vector<8x256xf32> to vector<8x256xbf16>
    %c0_20 = arith.constant 0 : index
    %c512_21 = arith.constant 512 : index
    %49 = vector.load %arg11[%c0_20, %c512_21] : memref<8x1536xbf16, #tpu.memory_space<vmem>>, vector<8x256xbf16>
    tpu.vector_store %arg11[%c0_20, %c512_21], %48 {strides = array<i32>} : memref<8x1536xbf16, #tpu.memory_space<vmem>>, vector<8x256xbf16>,
    %c0_22 = arith.constant 0 : index
    %c768 = arith.constant 768 : index
    %50 = vector.load %arg1[%c0_22, %c768] : memref<8x1536xbf16, #tpu.memory_space<vmem>>, vector<8x256xbf16>
    %cst_23 = arith.constant dense<0.000000e+00> : vector<8x1024xf32>
    %51 = tpu.matmul %50, %0, %cst_23 {dimension_numbers = #tpu.dot_dimension_numbers<[1], [0], [0], [1], [0, 0, 1, 1], [], []>} : vector<8x256xbf16>, vector<256x1024xbf16>, vector<8x1024xf32> -> vector<8x1024xf32>
    %52 = vector.extract_strided_slice %51 {offsets = [0, 0], sizes = [8, 256], strides = [1, 1]} : vector<8x1024xf32> to vector<8x256xf32>
    %53 = vector.extract_strided_slice %51 {offsets = [0, 256], sizes = [8, 256], strides = [1, 1]} : vector<8x1024xf32> to vector<8x256xf32>
    %54 = arith.maximumf %52, %53 : vector<8x256xf32>
    %55 = vector.extract_strided_slice %51 {offsets = [0, 512], sizes = [8, 256], strides = [1, 1]} : vector<8x1024xf32> to vector<8x256xf32>
    %56 = vector.extract_strided_slice %51 {offsets = [0, 768], sizes = [8, 256], strides = [1, 1]} : vector<8x1024xf32> to vector<8x256xf32>
    %57 = arith.maximumf %55, %56 : vector<8x256xf32>
    %58 = arith.maximumf %54, %57 : vector<8x256xf32>
    %59 = arith.addf %58, %4 : vector<8x256xf32>
    %cst_24 = arith.constant 0.000000e+00 : f32
    %60 = vector.broadcast %cst_24 : f32 to vector<8x256xf32>
    %61 = arith.maximumf %59, %60 : vector<8x256xf32>
    %62 = arith.truncf %61 : vector<8x256xf32> to vector<8x256xbf16>
    %c0_25 = arith.constant 0 : index
    %c768_26 = arith.constant 768 : index
    %63 = vector.load %arg11[%c0_25, %c768_26] : memref<8x1536xbf16, #tpu.memory_space<vmem>>, vector<8x256xbf16>
    tpu.vector_store %arg11[%c0_25, %c768_26], %62 {strides = array<i32>} : memref<8x1536xbf16, #tpu.memory_space<vmem>>, vector<8x256xbf16>,
    %c0_27 = arith.constant 0 : index
    %c1024 = arith.constant 1024 : index
    %64 = vector.load %arg1[%c0_27, %c1024] : memref<8x1536xbf16, #tpu.memory_space<vmem>>, vector<8x256xbf16>
    %cst_28 = arith.constant dense<0.000000e+00> : vector<8x1024xf32>
    %65 = tpu.matmul %64, %0, %cst_28 {dimension_numbers = #tpu.dot_dimension_numbers<[1], [0], [0], [1], [0, 0, 1, 1], [], []>} : vector<8x256xbf16>, vector<256x1024xbf16>, vector<8x1024xf32> -> vector<8x1024xf32>
    %66 = vector.extract_strided_slice %65 {offsets = [0, 0], sizes = [8, 256], strides = [1, 1]} : vector<8x1024xf32> to vector<8x256xf32>
    %67 = vector.extract_strided_slice %65 {offsets = [0, 256], sizes = [8, 256], strides = [1, 1]} : vector<8x1024xf32> to vector<8x256xf32>
    %68 = arith.maximumf %66, %67 : vector<8x256xf32>
    %69 = vector.extract_strided_slice %65 {offsets = [0, 512], sizes = [8, 256], strides = [1, 1]} : vector<8x1024xf32> to vector<8x256xf32>
    %70 = vector.extract_strided_slice %65 {offsets = [0, 768], sizes = [8, 256], strides = [1, 1]} : vector<8x1024xf32> to vector<8x256xf32>
    %71 = arith.maximumf %69, %70 : vector<8x256xf32>
    %72 = arith.maximumf %68, %71 : vector<8x256xf32>
    %73 = arith.addf %72, %4 : vector<8x256xf32>
    %cst_29 = arith.constant 0.000000e+00 : f32
    %74 = vector.broadcast %cst_29 : f32 to vector<8x256xf32>
    %75 = arith.maximumf %73, %74 : vector<8x256xf32>
    %76 = arith.truncf %75 : vector<8x256xf32> to vector<8x256xbf16>
    %c0_30 = arith.constant 0 : index
    %c1024_31 = arith.constant 1024 : index
    %77 = vector.load %arg11[%c0_30, %c1024_31] : memref<8x1536xbf16, #tpu.memory_space<vmem>>, vector<8x256xbf16>
    tpu.vector_store %arg11[%c0_30, %c1024_31], %76 {strides = array<i32>} : memref<8x1536xbf16, #tpu.memory_space<vmem>>, vector<8x256xbf16>,
    %c0_32 = arith.constant 0 : index
    %c1280 = arith.constant 1280 : index
    %78 = vector.load %arg1[%c0_32, %c1280] : memref<8x1536xbf16, #tpu.memory_space<vmem>>, vector<8x256xbf16>
    %cst_33 = arith.constant dense<0.000000e+00> : vector<8x1024xf32>
    %79 = tpu.matmul %78, %0, %cst_33 {dimension_numbers = #tpu.dot_dimension_numbers<[1], [0], [0], [1], [0, 0, 1, 1], [], []>} : vector<8x256xbf16>, vector<256x1024xbf16>, vector<8x1024xf32> -> vector<8x1024xf32>
    %80 = vector.extract_strided_slice %79 {offsets = [0, 0], sizes = [8, 256], strides = [1, 1]} : vector<8x1024xf32> to vector<8x256xf32>
    %81 = vector.extract_strided_slice %79 {offsets = [0, 256], sizes = [8, 256], strides = [1, 1]} : vector<8x1024xf32> to vector<8x256xf32>
    %82 = arith.maximumf %80, %81 : vector<8x256xf32>
    %83 = vector.extract_strided_slice %79 {offsets = [0, 512], sizes = [8, 256], strides = [1, 1]} : vector<8x1024xf32> to vector<8x256xf32>
    %84 = vector.extract_strided_slice %79 {offsets = [0, 768], sizes = [8, 256], strides = [1, 1]} : vector<8x1024xf32> to vector<8x256xf32>
    %85 = arith.maximumf %83, %84 : vector<8x256xf32>
    %86 = arith.maximumf %82, %85 : vector<8x256xf32>
    %87 = arith.addf %86, %4 : vector<8x256xf32>
    %cst_34 = arith.constant 0.000000e+00 : f32
    %88 = vector.broadcast %cst_34 : f32 to vector<8x256xf32>
    %89 = arith.maximumf %87, %88 : vector<8x256xf32>
    %90 = arith.truncf %89 : vector<8x256xf32> to vector<8x256xbf16>
    %c0_35 = arith.constant 0 : index
    %c1280_36 = arith.constant 1280 : index
    %91 = vector.load %arg11[%c0_35, %c1280_36] : memref<8x1536xbf16, #tpu.memory_space<vmem>>, vector<8x256xbf16>
    tpu.vector_store %arg11[%c0_35, %c1280_36], %90 {strides = array<i32>} : memref<8x1536xbf16, #tpu.memory_space<vmem>>, vector<8x256xbf16>,
    %c0_37 = arith.constant 0 : index
    %c0_38 = arith.constant 0 : index
    %92 = vector.load %arg11[%c0_37, %c0_38] : memref<8x1536xbf16, #tpu.memory_space<vmem>>, vector<8x768xbf16>
    %cst_39 = arith.constant dense<0.000000e+00> : vector<8x512xf32>
    %93 = tpu.matmul %92, %1, %cst_39 {dimension_numbers = #tpu.dot_dimension_numbers<[1], [0], [0], [1], [0, 0, 1, 1], [], []>} : vector<8x768xbf16>, vector<768x512xbf16>, vector<8x512xf32> -> vector<8x512xf32>
    %94 = vector.extract_strided_slice %93 {offsets = [0, 0], sizes = [8, 128], strides = [1, 1]} : vector<8x512xf32> to vector<8x128xf32>
    %95 = vector.extract_strided_slice %93 {offsets = [0, 128], sizes = [8, 128], strides = [1, 1]} : vector<8x512xf32> to vector<8x128xf32>
    %96 = arith.maximumf %94, %95 : vector<8x128xf32>
    %97 = vector.extract_strided_slice %93 {offsets = [0, 256], sizes = [8, 128], strides = [1, 1]} : vector<8x512xf32> to vector<8x128xf32>
    %98 = vector.extract_strided_slice %93 {offsets = [0, 384], sizes = [8, 128], strides = [1, 1]} : vector<8x512xf32> to vector<8x128xf32>
    %99 = arith.maximumf %97, %98 : vector<8x128xf32>
    %100 = arith.maximumf %96, %99 : vector<8x128xf32>
    %101 = arith.addf %100, %7 : vector<8x128xf32>
    %cst_40 = arith.constant 0.000000e+00 : f32
    %102 = vector.broadcast %cst_40 : f32 to vector<8x128xf32>
    %103 = arith.maximumf %101, %102 : vector<8x128xf32>
    %104 = arith.truncf %103 : vector<8x128xf32> to vector<8x128xbf16>
    %c0_41 = arith.constant 0 : index
    %c0_42 = arith.constant 0 : index
    %105 = vector.load %arg12[%c0_41, %c0_42] : memref<8x512xbf16, #tpu.memory_space<vmem>>, vector<8x128xbf16>
    tpu.vector_store %arg12[%c0_41, %c0_42], %104 {strides = array<i32>} : memref<8x512xbf16, #tpu.memory_space<vmem>>, vector<8x128xbf16>,
    %c0_43 = arith.constant 0 : index
    %c256_44 = arith.constant 256 : index
    %106 = vector.load %arg11[%c0_43, %c256_44] : memref<8x1536xbf16, #tpu.memory_space<vmem>>, vector<8x768xbf16>
    %cst_45 = arith.constant dense<0.000000e+00> : vector<8x512xf32>
    %107 = tpu.matmul %106, %1, %cst_45 {dimension_numbers = #tpu.dot_dimension_numbers<[1], [0], [0], [1], [0, 0, 1, 1], [], []>} : vector<8x768xbf16>, vector<768x512xbf16>, vector<8x512xf32> -> vector<8x512xf32>
    %108 = vector.extract_strided_slice %107 {offsets = [0, 0], sizes = [8, 128], strides = [1, 1]} : vector<8x512xf32> to vector<8x128xf32>
    %109 = vector.extract_strided_slice %107 {offsets = [0, 128], sizes = [8, 128], strides = [1, 1]} : vector<8x512xf32> to vector<8x128xf32>
    %110 = arith.maximumf %108, %109 : vector<8x128xf32>
    %111 = vector.extract_strided_slice %107 {offsets = [0, 256], sizes = [8, 128], strides = [1, 1]} : vector<8x512xf32> to vector<8x128xf32>
    %112 = vector.extract_strided_slice %107 {offsets = [0, 384], sizes = [8, 128], strides = [1, 1]} : vector<8x512xf32> to vector<8x128xf32>
    %113 = arith.maximumf %111, %112 : vector<8x128xf32>
    %114 = arith.maximumf %110, %113 : vector<8x128xf32>
    %115 = arith.addf %114, %7 : vector<8x128xf32>
    %cst_46 = arith.constant 0.000000e+00 : f32
    %116 = vector.broadcast %cst_46 : f32 to vector<8x128xf32>
    %117 = arith.maximumf %115, %116 : vector<8x128xf32>
    %118 = arith.truncf %117 : vector<8x128xf32> to vector<8x128xbf16>
    %c0_47 = arith.constant 0 : index
    %c128 = arith.constant 128 : index
    %119 = vector.load %arg12[%c0_47, %c128] : memref<8x512xbf16, #tpu.memory_space<vmem>>, vector<8x128xbf16>
    tpu.vector_store %arg12[%c0_47, %c128], %118 {strides = array<i32>} : memref<8x512xbf16, #tpu.memory_space<vmem>>, vector<8x128xbf16>,
    %c0_48 = arith.constant 0 : index
    %c512_49 = arith.constant 512 : index
    %120 = vector.load %arg11[%c0_48, %c512_49] : memref<8x1536xbf16, #tpu.memory_space<vmem>>, vector<8x768xbf16>
    %cst_50 = arith.constant dense<0.000000e+00> : vector<8x512xf32>
    %121 = tpu.matmul %120, %1, %cst_50 {dimension_numbers = #tpu.dot_dimension_numbers<[1], [0], [0], [1], [0, 0, 1, 1], [], []>} : vector<8x768xbf16>, vector<768x512xbf16>, vector<8x512xf32> -> vector<8x512xf32>
    %122 = vector.extract_strided_slice %121 {offsets = [0, 0], sizes = [8, 128], strides = [1, 1]} : vector<8x512xf32> to vector<8x128xf32>
    %123 = vector.extract_strided_slice %121 {offsets = [0, 128], sizes = [8, 128], strides = [1, 1]} : vector<8x512xf32> to vector<8x128xf32>
    %124 = arith.maximumf %122, %123 : vector<8x128xf32>
    %125 = vector.extract_strided_slice %121 {offsets = [0, 256], sizes = [8, 128], strides = [1, 1]} : vector<8x512xf32> to vector<8x128xf32>
    %126 = vector.extract_strided_slice %121 {offsets = [0, 384], sizes = [8, 128], strides = [1, 1]} : vector<8x512xf32> to vector<8x128xf32>
    %127 = arith.maximumf %125, %126 : vector<8x128xf32>
    %128 = arith.maximumf %124, %127 : vector<8x128xf32>
    %129 = arith.addf %128, %7 : vector<8x128xf32>
    %cst_51 = arith.constant 0.000000e+00 : f32
    %130 = vector.broadcast %cst_51 : f32 to vector<8x128xf32>
    %131 = arith.maximumf %129, %130 : vector<8x128xf32>
    %132 = arith.truncf %131 : vector<8x128xf32> to vector<8x128xbf16>
    %c0_52 = arith.constant 0 : index
    %c256_53 = arith.constant 256 : index
    %133 = vector.load %arg12[%c0_52, %c256_53] : memref<8x512xbf16, #tpu.memory_space<vmem>>, vector<8x128xbf16>
    tpu.vector_store %arg12[%c0_52, %c256_53], %132 {strides = array<i32>} : memref<8x512xbf16, #tpu.memory_space<vmem>>, vector<8x128xbf16>,
    %c0_54 = arith.constant 0 : index
    %c768_55 = arith.constant 768 : index
    %134 = vector.load %arg11[%c0_54, %c768_55] : memref<8x1536xbf16, #tpu.memory_space<vmem>>, vector<8x768xbf16>
    %cst_56 = arith.constant dense<0.000000e+00> : vector<8x512xf32>
    %135 = tpu.matmul %134, %1, %cst_56 {dimension_numbers = #tpu.dot_dimension_numbers<[1], [0], [0], [1], [0, 0, 1, 1], [], []>} : vector<8x768xbf16>, vector<768x512xbf16>, vector<8x512xf32> -> vector<8x512xf32>
    %136 = vector.extract_strided_slice %135 {offsets = [0, 0], sizes = [8, 128], strides = [1, 1]} : vector<8x512xf32> to vector<8x128xf32>
    %137 = vector.extract_strided_slice %135 {offsets = [0, 128], sizes = [8, 128], strides = [1, 1]} : vector<8x512xf32> to vector<8x128xf32>
    %138 = arith.maximumf %136, %137 : vector<8x128xf32>
    %139 = vector.extract_strided_slice %135 {offsets = [0, 256], sizes = [8, 128], strides = [1, 1]} : vector<8x512xf32> to vector<8x128xf32>
    %140 = vector.extract_strided_slice %135 {offsets = [0, 384], sizes = [8, 128], strides = [1, 1]} : vector<8x512xf32> to vector<8x128xf32>
    %141 = arith.maximumf %139, %140 : vector<8x128xf32>
    %142 = arith.maximumf %138, %141 : vector<8x128xf32>
    %143 = arith.addf %142, %7 : vector<8x128xf32>
    %cst_57 = arith.constant 0.000000e+00 : f32
    %144 = vector.broadcast %cst_57 : f32 to vector<8x128xf32>
    %145 = arith.maximumf %143, %144 : vector<8x128xf32>
    %146 = arith.truncf %145 : vector<8x128xf32> to vector<8x128xbf16>
    %c0_58 = arith.constant 0 : index
    %c384 = arith.constant 384 : index
    %147 = vector.load %arg12[%c0_58, %c384] : memref<8x512xbf16, #tpu.memory_space<vmem>>, vector<8x128xbf16>
    tpu.vector_store %arg12[%c0_58, %c384], %146 {strides = array<i32>} : memref<8x512xbf16, #tpu.memory_space<vmem>>, vector<8x128xbf16>,
    %c0_59 = arith.constant 0 : index
    %c0_60 = arith.constant 0 : index
    %148 = vector.load %arg12[%c0_59, %c0_60] : memref<8x512xbf16, #tpu.memory_space<vmem>>, vector<8x512xbf16>
    %c0_61 = arith.constant 0 : index
    %c0_62 = arith.constant 0 : index
    %149 = vector.load %arg6[%c0_61, %c0_62] : memref<512x64xbf16, #tpu.memory_space<vmem>>, vector<512x64xbf16>
    %cst_63 = arith.constant dense<0.000000e+00> : vector<8x64xf32>
    %150 = tpu.matmul %148, %149, %cst_63 {dimension_numbers = #tpu.dot_dimension_numbers<[1], [0], [0], [1], [0, 0, 1, 1], [], []>} : vector<8x512xbf16>, vector<512x64xbf16>, vector<8x64xf32> -> vector<8x64xf32>
    %c0_64 = arith.constant 0 : index
    %c0_65 = arith.constant 0 : index
    %151 = vector.load %arg7[%c0_64, %c0_65] : memref<1x64xf32, #tpu.memory_space<vmem>>, vector<1x64xf32>
    %152 = vector.broadcast %151 : vector<1x64xf32> to vector<8x64xf32>
    %153 = arith.addf %150, %152 : vector<8x64xf32>
    %cst_66 = arith.constant 0.000000e+00 : f32
    %154 = vector.broadcast %cst_66 : f32 to vector<8x64xf32>
    %155 = arith.maximumf %153, %154 : vector<8x64xf32>
    %156 = arith.truncf %155 : vector<8x64xf32> to vector<8x64xbf16>
    %c0_67 = arith.constant 0 : index
    %c0_68 = arith.constant 0 : index
    %157 = vector.load %arg8[%c0_67, %c0_68] : memref<64x128xbf16, #tpu.memory_space<vmem>>, vector<64x128xbf16>
    %cst_69 = arith.constant dense<0.000000e+00> : vector<8x128xf32>
    %158 = tpu.matmul %156, %157, %cst_69 {dimension_numbers = #tpu.dot_dimension_numbers<[1], [0], [0], [1], [0, 0, 1, 1], [], []>} : vector<8x64xbf16>, vector<64x128xbf16>, vector<8x128xf32> -> vector<8x128xf32>
    %c0_70 = arith.constant 0 : index
    %c0_71 = arith.constant 0 : index
    %159 = vector.load %arg9[%c0_70, %c0_71] : memref<1x128xf32, #tpu.memory_space<vmem>>, vector<1x128xf32>
    %160 = vector.broadcast %159 : vector<1x128xf32> to vector<8x128xf32>
    %161 = arith.addf %158, %160 : vector<8x128xf32>
    %cst_72 = arith.constant dense<0xFF800000> : vector<8xf32>
    %162 = vector.multi_reduction <maximumf>, %161, %cst_72 [1] : vector<8x128xf32> to vector<8xf32>
    %163 = vector.shape_cast %162 : vector<8xf32> to vector<8x1xf32>
    %164 = vector.broadcast %163 : vector<8x1xf32> to vector<8x128xf32>
    %165 = arith.subf %161, %164 : vector<8x128xf32>
    %166 = math.exp %165 : vector<8x128xf32>
    %cst_73 = arith.constant dense<0.000000e+00> : vector<8xf32>
    %167 = vector.multi_reduction <add>, %166, %cst_73 [1] : vector<8x128xf32> to vector<8xf32>
    %168 = vector.shape_cast %167 : vector<8xf32> to vector<8x1xf32>
    %169 = math.log %168 : vector<8x1xf32>
    %170 = vector.broadcast %169 : vector<8x1xf32> to vector<8x128xf32>
    %171 = arith.subf %165, %170 : vector<8x128xf32>
    %c0_74 = arith.constant 0 : index
    %c0_75 = arith.constant 0 : index
    %172 = vector.load %arg10[%c0_74, %c0_75] : memref<8x128xf32, #tpu.memory_space<vmem>>, vector<8x128xf32>
    tpu.vector_store %arg10[%c0_74, %c0_75], %171 {strides = array<i32>} : memref<8x128xf32, #tpu.memory_space<vmem>>, vector<8x128xf32>,
    return
  }
  func.func @transform_0(%arg0: i32) -> (i32, i32) {
    %c0_i32 = arith.constant 0 : i32
    %c0_i32_0 = arith.constant 0 : i32
    return %arg0, %c0_i32 : i32, i32
  }
  func.func @transform_1(%arg0: i32) -> (i32, i32) {
    %c0_i32 = arith.constant 0 : i32
    %c0_i32_0 = arith.constant 0 : i32
    %c0_i32_1 = arith.constant 0 : i32
    return %c0_i32, %c0_i32_0 : i32, i32
  }
  func.func @transform_2(%arg0: i32) -> (i32, i32) {
    %c0_i32 = arith.constant 0 : i32
    %c0_i32_0 = arith.constant 0 : i32
    %c0_i32_1 = arith.constant 0 : i32
    return %c0_i32, %c0_i32_0 : i32, i32
  }
  func.func @transform_3(%arg0: i32) -> (i32, i32) {
    %c0_i32 = arith.constant 0 : i32
    %c0_i32_0 = arith.constant 0 : i32
    %c0_i32_1 = arith.constant 0 : i32
    return %c0_i32, %c0_i32_0 : i32, i32
  }
  func.func @transform_4(%arg0: i32) -> (i32, i32) {
    %c0_i32 = arith.constant 0 : i32
    %c0_i32_0 = arith.constant 0 : i32
    %c0_i32_1 = arith.constant 0 : i32
    return %c0_i32, %c0_i32_0 : i32, i32
  }
  func.func @transform_5(%arg0: i32) -> (i32, i32) {
    %c0_i32 = arith.constant 0 : i32
    %c0_i32_0 = arith.constant 0 : i32
    %c0_i32_1 = arith.constant 0 : i32
    return %c0_i32, %c0_i32_0 : i32, i32
  }
  func.func @transform_6(%arg0: i32) -> (i32, i32) {
    %c0_i32 = arith.constant 0 : i32
    %c0_i32_0 = arith.constant 0 : i32
    %c0_i32_1 = arith.constant 0 : i32
    return %c0_i32, %c0_i32_0 : i32, i32
  }
  func.func @transform_7(%arg0: i32) -> (i32, i32) {
    %c0_i32 = arith.constant 0 : i32
    %c0_i32_0 = arith.constant 0 : i32
    %c0_i32_1 = arith.constant 0 : i32
    return %c0_i32, %c0_i32_0 : i32, i32
  }
  func.func @transform_8(%arg0: i32) -> (i32, i32) {
    %c0_i32 = arith.constant 0 : i32
    %c0_i32_0 = arith.constant 0 : i32
    %c0_i32_1 = arith.constant 0 : i32
    return %c0_i32, %c0_i32_0 : i32, i32
  }
  func.func @transform_9(%arg0: i32) -> (i32, i32) {
    %c0_i32 = arith.constant 0 : i32
    %c0_i32_0 = arith.constant 0 : i32
    return %arg0, %c0_i32 : i32, i32
  }
}

</mosaic_0001>

<llo_original>
// kernel: net_forward.1
$region0: #{net_forward.1}
  #allocation0 [shape = 'u32[]', space=smem, size = 0x4, offset = 0x4, fixed_abs, tag = 'smem constant byte address 0x4 - core index']
  #allocation1 [shape = 'u32[144,128]{1,0:T(1,128)}', space=vmem, size = 0x12000, scoped, tag = 'internal scratch']
  #allocation2 [shape = 'bf16[8,1536]{1,0:T(8,128)(2,1)}', space=vmem, size = 0x6000, scoped, tag = 'scratch operand']
  #allocation3 [shape = 'bf16[8,512]{1,0:T(8,128)(2,1)}', space=vmem, size = 0x2000, scoped, tag = 'scratch operand']
  %s0 = inlined_call_operand.vmem [shape: bf16[8,1536], index: 0, kind: input, shape index: {}]
  %s1 = inlined_call_operand.hbm [shape: bf16[256,1024], index: 1, kind: input, shape index: {}]
  %s2 = inlined_call_operand.vmem [shape: f32[1,256], index: 2, kind: input, shape index: {}]
  %s3 = inlined_call_operand.hbm [shape: bf16[768,512], index: 3, kind: input, shape index: {}]
  %s4 = inlined_call_operand.vmem [shape: f32[1,128], index: 4, kind: input, shape index: {}]
  %s5 = inlined_call_operand.vmem [shape: bf16[512,64], index: 5, kind: input, shape index: {}]
  %s6 = inlined_call_operand.vmem [shape: f32[1,64], index: 6, kind: input, shape index: {}]
  %s7 = inlined_call_operand.vmem [shape: bf16[64,128], index: 7, kind: input, shape index: {}]
  %s8 = inlined_call_operand.vmem [shape: f32[1,128], index: 8, kind: input, shape index: {}]
  %s9 = inlined_call_operand.vmem [shape: f32[8,128], index: 9, kind: output, shape index: {}]
  %s10 = sld [smem:[#allocation0]]
  $region54: #{net_forward.1} parent=0
    _
  %s12 = ssub.s32 1, %s10
  %s13 = scalar_select 0, %s12, %s10
  $region1: #{net_forward.1} parent=0
    #allocation4 [shape = 'u8[524288]{0}', space=vmem, size = 0x80000, scoped, tag = 'input window, operand 1, single buffered']
    #allocation5 [shape = 's32[1]{0}', space=sflag, size = 0x4, scoped, tag = 'scoped memory for net_forward.1']
    #allocation6 [shape = 'u8[786432]{0}', space=vmem, size = 0xc0000, scoped, tag = 'input window, operand 3, single buffered']
    #allocation7 [shape = 's32[1]{0}', space=sflag, size = 0x4, scoped, tag = 'scoped memory for net_forward.1']
    %14 = vsyncpa [#allocation5], 0
    %15 = vsyncpa [#allocation7], 0
    // Predicated region
    $region2: #{net_forward.1} parent=1 // pred_check
      _
    $region3: #{net_forward.1} parent=1 // pred_check_branch
      %17 = sbr.rel (0) target = $region5
    $region4: #{net_forward.1} parent=1 // pred_region
      _
    $region5: #{net_forward.1} parent=1 // pred_fallthru
      _
    // Predicated region
    $region6: #{net_forward.1} parent=1 // pred_check
      _
    $region7: #{net_forward.1} parent=1 // pred_check_branch
      %19 = sbr.rel (0) target = $region9
    $region8: #{net_forward.1} parent=1 // pred_region
      %s21 = ssub.s32 16384, 16384
      %22 = vsyncadd [#allocation5], %s21
      %s23 = sshll.u32 [#allocation4], 4
      %s24 = int_to_ptr.vmem [resolvable:$true] %s23
      %29 = dma.hbm_to_vmem [thread:$0]  %s1, 16384, %s24, [#allocation5], 512, 512, 32
    $region9: #{net_forward.1} parent=1 // pred_fallthru
      _
    // Predicated region
    $region10: #{net_forward.1} parent=1 // pred_check
      _
    $region11: #{net_forward.1} parent=1 // pred_check_branch
      %31 = sbr.rel (0) target = $region13
    $region12: #{net_forward.1} parent=1 // pred_region
      _
    $region13: #{net_forward.1} parent=1 // pred_fallthru
      _
    // Predicated region
    $region14: #{net_forward.1} parent=1 // pred_check
      _
    $region15: #{net_forward.1} parent=1 // pred_check_branch
      %33 = sbr.rel (0) target = $region17
    $region16: #{net_forward.1} parent=1 // pred_region
      %s35 = ssub.s32 24576, 24576
      %36 = vsyncadd [#allocation7], %s35
      %s37 = sshll.u32 [#allocation6], 4
      %s38 = int_to_ptr.vmem [resolvable:$true] %s37
      %43 = dma.hbm_to_vmem [thread:$0]  %s3, 24576, %s38, [#allocation7], 256, 256, 16
    $region17: #{net_forward.1} parent=1 // pred_fallthru
      _
    // Predicated region
    $region18: #{net_forward.1} parent=1 // pred_check
      _
    $region19: #{net_forward.1} parent=1 // pred_check_branch
      %45 = sbr.rel (0) target = $region21
    $region20: #{net_forward.1} parent=1 // pred_region
      _
    $region21: #{net_forward.1} parent=1 // pred_fallthru
      _
    // Predicated region
    $region22: #{net_forward.1} parent=1 // pred_check
      _
    $region23: #{net_forward.1} parent=1 // pred_check_branch
      %47 = sbr.rel (0) target = $region25
    $region24: #{net_forward.1} parent=1 // pred_region
      _
    $region25: #{net_forward.1} parent=1 // pred_fallthru
      _
    // Predicated region
    $region26: #{net_forward.1} parent=1 // pred_check
      _
    $region27: #{net_forward.1} parent=1 // pred_check_branch
      %49 = sbr.rel (0) target = $region29
    $region28: #{net_forward.1} parent=1 // pred_region
      _
    $region29: #{net_forward.1} parent=1 // pred_fallthru
      _
    // Predicated region
    $region30: #{net_forward.1} parent=1 // pred_check
      _
    $region31: #{net_forward.1} parent=1 // pred_check_branch
      %51 = sbr.rel (0) target = $region33
    $region32: #{net_forward.1} parent=1 // pred_region
      _
    $region33: #{net_forward.1} parent=1 // pred_fallthru
      _
    // Predicated region
    $region34: #{net_forward.1} parent=1 // pred_check
      _
    $region35: #{net_forward.1} parent=1 // pred_check_branch
      %53 = sbr.rel (0) target = $region37
    $region36: #{net_forward.1} parent=1 // pred_region
      _
    $region37: #{net_forward.1} parent=1 // pred_fallthru
      _
    // Predicated region
    $region38: #{net_forward.1} parent=1 // pred_check
      _
    $region39: #{net_forward.1} parent=1 // pred_check_branch
      %55 = sbr.rel (0) target = $region41
    $region40: #{net_forward.1} parent=1 // pred_region
      %56 = dma.done [#allocation5], 16384
    $region41: #{net_forward.1} parent=1 // pred_fallthru
      _
    // Predicated region
    $region42: #{net_forward.1} parent=1 // pred_check
      _
    $region43: #{net_forward.1} parent=1 // pred_check_branch
      %58 = sbr.rel (0) target = $region45
    $region44: #{net_forward.1} parent=1 // pred_region
      %59 = dma.done [#allocation7], 24576
    $region45: #{net_forward.1} parent=1 // pred_fallthru
      _
    %v61 = vld [vmem:[#allocation4] sm:$0xff]
    %v62 = vld [vmem:[#allocation4 + $0x8] sm:$0xff]
    %v63 = vld [vmem:[#allocation4 + $0x10] sm:$0xff]
    %v64 = vld [vmem:[#allocation4 + $0x18] sm:$0xff]
    %v65 = vld [vmem:[#allocation4 + $0x20] sm:$0xff]
    %v66 = vld [vmem:[#allocation4 + $0x28] sm:$0xff]
    %v67 = vld [vmem:[#allocation4 + $0x30] sm:$0xff]
    %v68 = vld [vmem:[#allocation4 + $0x38] sm:$0xff]
    %v69 = vld [vmem:[#allocation4 + $0x40] sm:$0xff]
    %v70 = vld [vmem:[#allocation4 + $0x48] sm:$0xff]
    %v71 = vld [vmem:[#allocation4 + $0x50] sm:$0xff]
    %v72 = vld [vmem:[#allocation4 + $0x58] sm:$0xff]
    %v73 = vld [vmem:[#allocation4 + $0x60] sm:$0xff]
    %v74 = vld [vmem:[#allocation4 + $0x68] sm:$0xff]
    %v75 = vld [vmem:[#allocation4 + $0x70] sm:$0xff]
    %v76 = vld [vmem:[#allocation4 + $0x78] sm:$0xff]
    %v77 = vld [vmem:[#allocation4 + $0x80] sm:$0xff]
    %v78 = vld [vmem:[#allocation4 + $0x88] sm:$0xff]
    %v79 = vld [vmem:[#allocation4 + $0x90] sm:$0xff]
    %v80 = vld [vmem:[#allocation4 + $0x98] sm:$0xff]
    %v81 = vld [vmem:[#allocation4 + $0xa0] sm:$0xff]
    %v82 = vld [vmem:[#allocation4 + $0xa8] sm:$0xff]
    %v83 = vld [vmem:[#allocation4 + $0xb0] sm:$0xff]
    %v84 = vld [vmem:[#allocation4 + $0xb8] sm:$0xff]
    %v85 = vld [vmem:[#allocation4 + $0xc0] sm:$0xff]
    %v86 = vld [vmem:[#allocation4 + $0xc8] sm:$0xff]
    %v87 = vld [vmem:[#allocation4 + $0xd0] sm:$0xff]
    %v88 = vld [vmem:[#allocation4 + $0xd8] sm:$0xff]
    %v89 = vld [vmem:[#allocation4 + $0xe0] sm:$0xff]
    %v90 = vld [vmem:[#allocation4 + $0xe8] sm:$0xff]
    %v91 = vld [vmem:[#allocation4 + $0xf0] sm:$0xff]
    %v92 = vld [vmem:[#allocation4 + $0xf8] sm:$0xff]
    %v93 = vld [vmem:[#allocation4 + $0x100] sm:$0xff]
    %v94 = vld [vmem:[#allocation4 + $0x108] sm:$0xff]
    %v95 = vld [vmem:[#allocation4 + $0x110] sm:$0xff]
    %v96 = vld [vmem:[#allocation4 + $0x118] sm:$0xff]
    %v97 = vld [vmem:[#allocation4 + $0x120] sm:$0xff]
    %v98 = vld [vmem:[#allocation4 + $0x128] sm:$0xff]
    %v99 = vld [vmem:[#allocation4 + $0x130] sm:$0xff]
    %v100 = vld [vmem:[#allocation4 + $0x138] sm:$0xff]
    %v101 = vld [vmem:[#allocation4 + $0x140] sm:$0xff]
    %v102 = vld [vmem:[#allocation4 + $0x148] sm:$0xff]
    %v103 = vld [vmem:[#allocation4 + $0x150] sm:$0xff]
    %v104 = vld [vmem:[#allocation4 + $0x158] sm:$0xff]
    %v105 = vld [vmem:[#allocation4 + $0x160] sm:$0xff]
    %v106 = vld [vmem:[#allocation4 + $0x168] sm:$0xff]
    %v107 = vld [vmem:[#allocation4 + $0x170] sm:$0xff]
    %v108 = vld [vmem:[#allocation4 + $0x178] sm:$0xff]
    %v109 = vld [vmem:[#allocation4 + $0x180] sm:$0xff]
    %v110 = vld [vmem:[#allocation4 + $0x188] sm:$0xff]
    %v111 = vld [vmem:[#allocation4 + $0x190] sm:$0xff]
    %v112 = vld [vmem:[#allocation4 + $0x198] sm:$0xff]
    %v113 = vld [vmem:[#allocation4 + $0x1a0] sm:$0xff]
    %v114 = vld [vmem:[#allocation4 + $0x1a8] sm:$0xff]
    %v115 = vld [vmem:[#allocation4 + $0x1b0] sm:$0xff]
    %v116 = vld [vmem:[#allocation4 + $0x1b8] sm:$0xff]
    %v117 = vld [vmem:[#allocation4 + $0x1c0] sm:$0xff]
    %v118 = vld [vmem:[#allocation4 + $0x1c8] sm:$0xff]
    %v119 = vld [vmem:[#allocation4 + $0x1d0] sm:$0xff]
    %v120 = vld [vmem:[#allocation4 + $0x1d8] sm:$0xff]
    %v121 = vld [vmem:[#allocation4 + $0x1e0] sm:$0xff]
    %v122 = vld [vmem:[#allocation4 + $0x1e8] sm:$0xff]
    %v123 = vld [vmem:[#allocation4 + $0x1f0] sm:$0xff]
    %v124 = vld [vmem:[#allocation4 + $0x1f8] sm:$0xff]
    %v125 = vld [vmem:[#allocation4 + $0x200] sm:$0xff]
    %v126 = vld [vmem:[#allocation4 + $0x208] sm:$0xff]
    %v127 = vld [vmem:[#allocation4 + $0x210] sm:$0xff]
    %v128 = vld [vmem:[#allocation4 + $0x218] sm:$0xff]
    %v129 = vld [vmem:[#allocation4 + $0x220] sm:$0xff]
    %v130 = vld [vmem:[#allocation4 + $0x228] sm:$0xff]
    %v131 = vld [vmem:[#allocation4 + $0x230] sm:$0xff]
    %v132 = vld [vmem:[#allocation4 + $0x238] sm:$0xff]
    %v133 = vld [vmem:[#allocation4 + $0x240] sm:$0xff]
    %v134 = vld [vmem:[#allocation4 + $0x248] sm:$0xff]
    %v135 = vld [vmem:[#allocation4 + $0x250] sm:$0xff]
    %v136 = vld [vmem:[#allocation4 + $0x258] sm:$0xff]
    %v137 = vld [vmem:[#allocation4 + $0x260] sm:$0xff]
    %v138 = vld [vmem:[#allocation4 + $0x268] sm:$0xff]
    %v139 = vld [vmem:[#allocation4 + $0x270] sm:$0xff]
    %v140 = vld [vmem:[#allocation4 + $0x278] sm:$0xff]
    %v141 = vld [vmem:[#allocation4 + $0x280] sm:$0xff]
    %v142 = vld [vmem:[#allocation4 + $0x288] sm:$0xff]
    %v143 = vld [vmem:[#allocation4 + $0x290] sm:$0xff]
    %v144 = vld [vmem:[#allocation4 + $0x298] sm:$0xff]
    %v145 = vld [vmem:[#allocation4 + $0x2a0] sm:$0xff]
    %v146 = vld [vmem:[#allocation4 + $0x2a8] sm:$0xff]
    %v147 = vld [vmem:[#allocation4 + $0x2b0] sm:$0xff]
    %v148 = vld [vmem:[#allocation4 + $0x2b8] sm:$0xff]
    %v149 = vld [vmem:[#allocation4 + $0x2c0] sm:$0xff]
    %v150 = vld [vmem:[#allocation4 + $0x2c8] sm:$0xff]
    %v151 = vld [vmem:[#allocation4 + $0x2d0] sm:$0xff]
    %v152 = vld [vmem:[#allocation4 + $0x2d8] sm:$0xff]
    %v153 = vld [vmem:[#allocation4 + $0x2e0] sm:$0xff]
    %v154 = vld [vmem:[#allocation4 + $0x2e8] sm:$0xff]
    %v155 = vld [vmem:[#allocation4 + $0x2f0] sm:$0xff]
    %v156 = vld [vmem:[#allocation4 + $0x2f8] sm:$0xff]
    %v157 = vld [vmem:[#allocation4 + $0x300] sm:$0xff]
    %v158 = vld [vmem:[#allocation4 + $0x308] sm:$0xff]
    %v159 = vld [vmem:[#allocation4 + $0x310] sm:$0xff]
    %v160 = vld [vmem:[#allocation4 + $0x318] sm:$0xff]
    %v161 = vld [vmem:[#allocation4 + $0x320] sm:$0xff]
    %v162 = vld [vmem:[#allocation4 + $0x328] sm:$0xff]
    %v163 = vld [vmem:[#allocation4 + $0x330] sm:$0xff]
    %v164 = vld [vmem:[#allocation4 + $0x338] sm:$0xff]
    %v165 = vld [vmem:[#allocation4 + $0x340] sm:$0xff]
    %v166 = vld [vmem:[#allocation4 + $0x348] sm:$0xff]
    %v167 = vld [vmem:[#allocation4 + $0x350] sm:$0xff]
    %v168 = vld [vmem:[#allocation4 + $0x358] sm:$0xff]
    %v169 = vld [vmem:[#allocation4 + $0x360] sm:$0xff]
    %v170 = vld [vmem:[#allocation4 + $0x368] sm:$0xff]
    %v171 = vld [vmem:[#allocation4 + $0x370] sm:$0xff]
    %v172 = vld [vmem:[#allocation4 + $0x378] sm:$0xff]
    %v173 = vld [vmem:[#allocation4 + $0x380] sm:$0xff]
    %v174 = vld [vmem:[#allocation4 + $0x388] sm:$0xff]
    %v175 = vld [vmem:[#allocation4 + $0x390] sm:$0xff]
    %v176 = vld [vmem:[#allocation4 + $0x398] sm:$0xff]
    %v177 = vld [vmem:[#allocation4 + $0x3a0] sm:$0xff]
    %v178 = vld [vmem:[#allocation4 + $0x3a8] sm:$0xff]
    %v179 = vld [vmem:[#allocation4 + $0x3b0] sm:$0xff]
    %v180 = vld [vmem:[#allocation4 + $0x3b8] sm:$0xff]
    %v181 = vld [vmem:[#allocation4 + $0x3c0] sm:$0xff]
    %v182 = vld [vmem:[#allocation4 + $0x3c8] sm:$0xff]
    %v183 = vld [vmem:[#allocation4 + $0x3d0] sm:$0xff]
    %v184 = vld [vmem:[#allocation4 + $0x3d8] sm:$0xff]
    %v185 = vld [vmem:[#allocation4 + $0x3e0] sm:$0xff]
    %v186 = vld [vmem:[#allocation4 + $0x3e8] sm:$0xff]
    %v187 = vld [vmem:[#allocation4 + $0x3f0] sm:$0xff]
    %v188 = vld [vmem:[#allocation4 + $0x3f8] sm:$0xff]
    %v189 = vld [vmem:[#allocation6] sm:$0xff]
    %v190 = vld [vmem:[#allocation6 + $0x8] sm:$0xff]
    %v191 = vld [vmem:[#allocation6 + $0x10] sm:$0xff]
    %v192 = vld [vmem:[#allocation6 + $0x18] sm:$0xff]
    %v193 = vld [vmem:[#allocation6 + $0x20] sm:$0xff]
    %v194 = vld [vmem:[#allocation6 + $0x28] sm:$0xff]
    %v195 = vld [vmem:[#allocation6 + $0x30] sm:$0xff]
    %v196 = vld [vmem:[#allocation6 + $0x38] sm:$0xff]
    %v197 = vld [vmem:[#allocation6 + $0x40] sm:$0xff]
    %v198 = vld [vmem:[#allocation6 + $0x48] sm:$0xff]
    %v199 = vld [vmem:[#allocation6 + $0x50] sm:$0xff]
    %v200 = vld [vmem:[#allocation6 + $0x58] sm:$0xff]
    %v201 = vld [vmem:[#allocation6 + $0x60] sm:$0xff]
    %v202 = vld [vmem:[#allocation6 + $0x68] sm:$0xff]
    %v203 = vld [vmem:[#allocation6 + $0x70] sm:$0xff]
    %v204 = vld [vmem:[#allocation6 + $0x78] sm:$0xff]
    %v205 = vld [vmem:[#allocation6 + $0x80] sm:$0xff]
    %v206 = vld [vmem:[#allocation6 + $0x88] sm:$0xff]
    %v207 = vld [vmem:[#allocation6 + $0x90] sm:$0xff]
    %v208 = vld [vmem:[#allocation6 + $0x98] sm:$0xff]
    %v209 = vld [vmem:[#allocation6 + $0xa0] sm:$0xff]
    %v210 = vld [vmem:[#allocation6 + $0xa8] sm:$0xff]
    %v211 = vld [vmem:[#allocation6 + $0xb0] sm:$0xff]
    %v212 = vld [vmem:[#allocation6 + $0xb8] sm:$0xff]
    %v213 = vld [vmem:[#allocation6 + $0xc0] sm:$0xff]
    %v214 = vld [vmem:[#allocation6 + $0xc8] sm:$0xff]
    %v215 = vld [vmem:[#allocation6 + $0xd0] sm:$0xff]
    %v216 = vld [vmem:[#allocation6 + $0xd8] sm:$0xff]
    %v217 = vld [vmem:[#allocation6 + $0xe0] sm:$0xff]
    %v218 = vld [vmem:[#allocation6 + $0xe8] sm:$0xff]
    %v219 = vld [vmem:[#allocation6 + $0xf0] sm:$0xff]
    %v220 = vld [vmem:[#allocation6 + $0xf8] sm:$0xff]
    %v221 = vld [vmem:[#allocation6 + $0x100] sm:$0xff]
    %v222 = vld [vmem:[#allocation6 + $0x108] sm:$0xff]
    %v223 = vld [vmem:[#allocation6 + $0x110] sm:$0xff]
    %v224 = vld [vmem:[#allocation6 + $0x118] sm:$0xff]
    %v225 = vld [vmem:[#allocation6 + $0x120] sm:$0xff]
    %v226 = vld [vmem:[#allocation6 + $0x128] sm:$0xff]
    %v227 = vld [vmem:[#allocation6 + $0x130] sm:$0xff]
    %v228 = vld [vmem:[#allocation6 + $0x138] sm:$0xff]
    %v229 = vld [vmem:[#allocation6 + $0x140] sm:$0xff]
    %v230 = vld [vmem:[#allocation6 + $0x148] sm:$0xff]
    %v231 = vld [vmem:[#allocation6 + $0x150] sm:$0xff]
    %v232 = vld [vmem:[#allocation6 + $0x158] sm:$0xff]
    %v233 = vld [vmem:[#allocation6 + $0x160] sm:$0xff]
    %v234 = vld [vmem:[#allocation6 + $0x168] sm:$0xff]
    %v235 = vld [vmem:[#allocation6 + $0x170] sm:$0xff]
    %v236 = vld [vmem:[#allocation6 + $0x178] sm:$0xff]
    %v237 = vld [vmem:[#allocation6 + $0x180] sm:$0xff]
    %v238 = vld [vmem:[#allocation6 + $0x188] sm:$0xff]
    %v239 = vld [vmem:[#allocation6 + $0x190] sm:$0xff]
    %v240 = vld [vmem:[#allocation6 + $0x198] sm:$0xff]
    %v241 = vld [vmem:[#allocation6 + $0x1a0] sm:$0xff]
    %v242 = vld [vmem:[#allocation6 + $0x1a8] sm:$0xff]
    %v243 = vld [vmem:[#allocation6 + $0x1b0] sm:$0xff]
    %v244 = vld [vmem:[#allocation6 + $0x1b8] sm:$0xff]
    %v245 = vld [vmem:[#allocation6 + $0x1c0] sm:$0xff]
    %v246 = vld [vmem:[#allocation6 + $0x1c8] sm:$0xff]
    %v247 = vld [vmem:[#allocation6 + $0x1d0] sm:$0xff]
    %v248 = vld [vmem:[#allocation6 + $0x1d8] sm:$0xff]
    %v249 = vld [vmem:[#allocation6 + $0x1e0] sm:$0xff]
    %v250 = vld [vmem:[#allocation6 + $0x1e8] sm:$0xff]
    %v251 = vld [vmem:[#allocation6 + $0x1f0] sm:$0xff]
    %v252 = vld [vmem:[#allocation6 + $0x1f8] sm:$0xff]
    %v253 = vld [vmem:[#allocation6 + $0x200] sm:$0xff]
    %v254 = vld [vmem:[#allocation6 + $0x208] sm:$0xff]
    %v255 = vld [vmem:[#allocation6 + $0x210] sm:$0xff]
    %v256 = vld [vmem:[#allocation6 + $0x218] sm:$0xff]
    %v257 = vld [vmem:[#allocation6 + $0x220] sm:$0xff]
    %v258 = vld [vmem:[#allocation6 + $0x228] sm:$0xff]
    %v259 = vld [vmem:[#allocation6 + $0x230] sm:$0xff]
    %v260 = vld [vmem:[#allocation6 + $0x238] sm:$0xff]
    %v261 = vld [vmem:[#allocation6 + $0x240] sm:$0xff]
    %v262 = vld [vmem:[#allocation6 + $0x248] sm:$0xff]
    %v263 = vld [vmem:[#allocation6 + $0x250] sm:$0xff]
    %v264 = vld [vmem:[#allocation6 + $0x258] sm:$0xff]
    %v265 = vld [vmem:[#allocation6 + $0x260] sm:$0xff]
    %v266 = vld [vmem:[#allocation6 + $0x268] sm:$0xff]
    %v267 = vld [vmem:[#allocation6 + $0x270] sm:$0xff]
    %v268 = vld [vmem:[#allocation6 + $0x278] sm:$0xff]
    %v269 = vld [vmem:[#allocation6 + $0x280] sm:$0xff]
    %v270 = vld [vmem:[#allocation6 + $0x288] sm:$0xff]
    %v271 = vld [vmem:[#allocation6 + $0x290] sm:$0xff]
    %v272 = vld [vmem:[#allocation6 + $0x298] sm:$0xff]
    %v273 = vld [vmem:[#allocation6 + $0x2a0] sm:$0xff]
    %v274 = vld [vmem:[#allocation6 + $0x2a8] sm:$0xff]
    %v275 = vld [vmem:[#allocation6 + $0x2b0] sm:$0xff]
    %v276 = vld [vmem:[#allocation6 + $0x2b8] sm:$0xff]
    %v277 = vld [vmem:[#allocation6 + $0x2c0] sm:$0xff]
    %v278 = vld [vmem:[#allocation6 + $0x2c8] sm:$0xff]
    %v279 = vld [vmem:[#allocation6 + $0x2d0] sm:$0xff]
    %v280 = vld [vmem:[#allocation6 + $0x2d8] sm:$0xff]
    %v281 = vld [vmem:[#allocation6 + $0x2e0] sm:$0xff]
    %v282 = vld [vmem:[#allocation6 + $0x2e8] sm:$0xff]
    %v283 = vld [vmem:[#allocation6 + $0x2f0] sm:$0xff]
    %v284 = vld [vmem:[#allocation6 + $0x2f8] sm:$0xff]
    %v285 = vld [vmem:[#allocation6 + $0x300] sm:$0xff]
    %v286 = vld [vmem:[#allocation6 + $0x308] sm:$0xff]
    %v287 = vld [vmem:[#allocation6 + $0x310] sm:$0xff]
    %v288 = vld [vmem:[#allocation6 + $0x318] sm:$0xff]
    %v289 = vld [vmem:[#allocation6 + $0x320] sm:$0xff]
    %v290 = vld [vmem:[#allocation6 + $0x328] sm:$0xff]
    %v291 = vld [vmem:[#allocation6 + $0x330] sm:$0xff]
    %v292 = vld [vmem:[#allocation6 + $0x338] sm:$0xff]
    %v293 = vld [vmem:[#allocation6 + $0x340] sm:$0xff]
    %v294 = vld [vmem:[#allocation6 + $0x348] sm:$0xff]
    %v295 = vld [vmem:[#allocation6 + $0x350] sm:$0xff]
    %v296 = vld [vmem:[#allocation6 + $0x358] sm:$0xff]
    %v297 = vld [vmem:[#allocation6 + $0x360] sm:$0xff]
    %v298 = vld [vmem:[#allocation6 + $0x368] sm:$0xff]
    %v299 = vld [vmem:[#allocation6 + $0x370] sm:$0xff]
    %v300 = vld [vmem:[#allocation6 + $0x378] sm:$0xff]
    %v301 = vld [vmem:[#allocation6 + $0x380] sm:$0xff]
    %v302 = vld [vmem:[#allocation6 + $0x388] sm:$0xff]
    %v303 = vld [vmem:[#allocation6 + $0x390] sm:$0xff]
    %v304 = vld [vmem:[#allocation6 + $0x398] sm:$0xff]
    %v305 = vld [vmem:[#allocation6 + $0x3a0] sm:$0xff]
    %v306 = vld [vmem:[#allocation6 + $0x3a8] sm:$0xff]
    %v307 = vld [vmem:[#allocation6 + $0x3b0] sm:$0xff]
    %v308 = vld [vmem:[#allocation6 + $0x3b8] sm:$0xff]
    %v309 = vld [vmem:[#allocation6 + $0x3c0] sm:$0xff]
    %v310 = vld [vmem:[#allocation6 + $0x3c8] sm:$0xff]
    %v311 = vld [vmem:[#allocation6 + $0x3d0] sm:$0xff]
    %v312 = vld [vmem:[#allocation6 + $0x3d8] sm:$0xff]
    %v313 = vld [vmem:[#allocation6 + $0x3e0] sm:$0xff]
    %v314 = vld [vmem:[#allocation6 + $0x3e8] sm:$0xff]
    %v315 = vld [vmem:[#allocation6 + $0x3f0] sm:$0xff]
    %v316 = vld [vmem:[#allocation6 + $0x3f8] sm:$0xff]
    %v317 = vld [vmem:[#allocation6 + $0x400] sm:$0xff]
    %v318 = vld [vmem:[#allocation6 + $0x408] sm:$0xff]
    %v319 = vld [vmem:[#allocation6 + $0x410] sm:$0xff]
    %v320 = vld [vmem:[#allocation6 + $0x418] sm:$0xff]
    %v321 = vld [vmem:[#allocation6 + $0x420] sm:$0xff]
    %v322 = vld [vmem:[#allocation6 + $0x428] sm:$0xff]
    %v323 = vld [vmem:[#allocation6 + $0x430] sm:$0xff]
    %v324 = vld [vmem:[#allocation6 + $0x438] sm:$0xff]
    %v325 = vld [vmem:[#allocation6 + $0x440] sm:$0xff]
    %v326 = vld [vmem:[#allocation6 + $0x448] sm:$0xff]
    %v327 = vld [vmem:[#allocation6 + $0x450] sm:$0xff]
    %v328 = vld [vmem:[#allocation6 + $0x458] sm:$0xff]
    %v329 = vld [vmem:[#allocation6 + $0x460] sm:$0xff]
    %v330 = vld [vmem:[#allocation6 + $0x468] sm:$0xff]
    %v331 = vld [vmem:[#allocation6 + $0x470] sm:$0xff]
    %v332 = vld [vmem:[#allocation6 + $0x478] sm:$0xff]
    %v333 = vld [vmem:[#allocation6 + $0x480] sm:$0xff]
    %v334 = vld [vmem:[#allocation6 + $0x488] sm:$0xff]
    %v335 = vld [vmem:[#allocation6 + $0x490] sm:$0xff]
    %v336 = vld [vmem:[#allocation6 + $0x498] sm:$0xff]
    %v337 = vld [vmem:[#allocation6 + $0x4a0] sm:$0xff]
    %v338 = vld [vmem:[#allocation6 + $0x4a8] sm:$0xff]
    %v339 = vld [vmem:[#allocation6 + $0x4b0] sm:$0xff]
    %v340 = vld [vmem:[#allocation6 + $0x4b8] sm:$0xff]
    %v341 = vld [vmem:[#allocation6 + $0x4c0] sm:$0xff]
    %v342 = vld [vmem:[#allocation6 + $0x4c8] sm:$0xff]
    %v343 = vld [vmem:[#allocation6 + $0x4d0] sm:$0xff]
    %v344 = vld [vmem:[#allocation6 + $0x4d8] sm:$0xff]
    %v345 = vld [vmem:[#allocation6 + $0x4e0] sm:$0xff]
    %v346 = vld [vmem:[#allocation6 + $0x4e8] sm:$0xff]
    %v347 = vld [vmem:[#allocation6 + $0x4f0] sm:$0xff]
    %v348 = vld [vmem:[#allocation6 + $0x4f8] sm:$0xff]
    %v349 = vld [vmem:[#allocation6 + $0x500] sm:$0xff]
    %v350 = vld [vmem:[#allocation6 + $0x508] sm:$0xff]
    %v351 = vld [vmem:[#allocation6 + $0x510] sm:$0xff]
    %v352 = vld [vmem:[#allocation6 + $0x518] sm:$0xff]
    %v353 = vld [vmem:[#allocation6 + $0x520] sm:$0xff]
    %v354 = vld [vmem:[#allocation6 + $0x528] sm:$0xff]
    %v355 = vld [vmem:[#allocation6 + $0x530] sm:$0xff]
    %v356 = vld [vmem:[#allocation6 + $0x538] sm:$0xff]
    %v357 = vld [vmem:[#allocation6 + $0x540] sm:$0xff]
    %v358 = vld [vmem:[#allocation6 + $0x548] sm:$0xff]
    %v359 = vld [vmem:[#allocation6 + $0x550] sm:$0xff]
    %v360 = vld [vmem:[#allocation6 + $0x558] sm:$0xff]
    %v361 = vld [vmem:[#allocation6 + $0x560] sm:$0xff]
    %v362 = vld [vmem:[#allocation6 + $0x568] sm:$0xff]
    %v363 = vld [vmem:[#allocation6 + $0x570] sm:$0xff]
    %v364 = vld [vmem:[#allocation6 + $0x578] sm:$0xff]
    %v365 = vld [vmem:[#allocation6 + $0x580] sm:$0xff]
    %v366 = vld [vmem:[#allocation6 + $0x588] sm:$0xff]
    %v367 = vld [vmem:[#allocation6 + $0x590] sm:$0xff]
    %v368 = vld [vmem:[#allocation6 + $0x598] sm:$0xff]
    %v369 = vld [vmem:[#allocation6 + $0x5a0] sm:$0xff]
    %v370 = vld [vmem:[#allocation6 + $0x5a8] sm:$0xff]
    %v371 = vld [vmem:[#allocation6 + $0x5b0] sm:$0xff]
    %v372 = vld [vmem:[#allocation6 + $0x5b8] sm:$0xff]
    %v373 = vld [vmem:[#allocation6 + $0x5c0] sm:$0xff]
    %v374 = vld [vmem:[#allocation6 + $0x5c8] sm:$0xff]
    %v375 = vld [vmem:[#allocation6 + $0x5d0] sm:$0xff]
    %v376 = vld [vmem:[#allocation6 + $0x5d8] sm:$0xff]
    %v377 = vld [vmem:[#allocation6 + $0x5e0] sm:$0xff]
    %v378 = vld [vmem:[#allocation6 + $0x5e8] sm:$0xff]
    %v379 = vld [vmem:[#allocation6 + $0x5f0] sm:$0xff]
    %v380 = vld [vmem:[#allocation6 + $0x5f8] sm:$0xff]
    %v381 = vld [vmem:[%s2] sm:$0x3]
    %v383 = vlaneseq
    %v384 = vshrl.u32 %v383, 7
    %v385 = vsub.s32 0, %v384
    %v386 = vrot.slane %v381, %v385
    %v387 = vlaneseq
    %v388 = vshrl.u32 %v387, 7
    %v389 = vsub.s32 1, %v388
    %v390 = vrot.slane %v381, %v389
    %v393 = vld [vmem:[%s4] sm:$0x1]
    %v395 = vlaneseq
    %v396 = vshrl.u32 %v395, 7
    %v397 = vsub.s32 0, %v396
    %v398 = vrot.slane %v393, %v397
    %v400 = vld [vmem:[%s0] sm:$0xff]
    %v402 = vunpack.c.l.b16 %v400
    %v403 = vunpack.c.h.b16 %v400
    %v404 = vpack.c.b16 %v402, %v402
    %v405 = vpack.c.b16 %v403, %v403
    %v536 = vunpack.c.l.b16 %v61
    %v537 = vunpack.c.h.b16 %v61
    %v538 = vunpack.c.l.b16 %v62
    %v539 = vunpack.c.h.b16 %v62
    %v540 = vunpack.c.l.b16 %v63
    %v541 = vunpack.c.h.b16 %v63
    %v542 = vunpack.c.l.b16 %v64
    %v543 = vunpack.c.h.b16 %v64
    %v544 = vunpack.c.l.b16 %v65
    %v545 = vunpack.c.h.b16 %v65
    %v546 = vunpack.c.l.b16 %v66
    %v547 = vunpack.c.h.b16 %v66
    %v548 = vunpack.c.l.b16 %v67
    %v549 = vunpack.c.h.b16 %v67
    %v550 = vunpack.c.l.b16 %v68
    %v551 = vunpack.c.h.b16 %v68
    %v552 = vunpack.c.l.b16 %v69
    %v553 = vunpack.c.h.b16 %v69
    %v554 = vunpack.c.l.b16 %v70
    %v555 = vunpack.c.h.b16 %v70
    %v556 = vunpack.c.l.b16 %v71
    %v557 = vunpack.c.h.b16 %v71
    %v558 = vunpack.c.l.b16 %v72
    %v559 = vunpack.c.h.b16 %v72
    %v560 = vunpack.c.l.b16 %v73
    %v561 = vunpack.c.h.b16 %v73
    %v562 = vunpack.c.l.b16 %v74
    %v563 = vunpack.c.h.b16 %v74
    %v564 = vunpack.c.l.b16 %v75
    %v565 = vunpack.c.h.b16 %v75
    %v566 = vunpack.c.l.b16 %v76
    %v567 = vunpack.c.h.b16 %v76
    %v568 = vunpack.c.l.b16 %v77
    %v569 = vunpack.c.h.b16 %v77
    %v570 = vunpack.c.l.b16 %v78
    %v571 = vunpack.c.h.b16 %v78
    %v572 = vunpack.c.l.b16 %v79
    %v573 = vunpack.c.h.b16 %v79
    %v574 = vunpack.c.l.b16 %v80
    %v575 = vunpack.c.h.b16 %v80
    %v576 = vunpack.c.l.b16 %v81
    %v577 = vunpack.c.h.b16 %v81
    %v578 = vunpack.c.l.b16 %v82
    %v579 = vunpack.c.h.b16 %v82
    %v580 = vunpack.c.l.b16 %v83
    %v581 = vunpack.c.h.b16 %v83
    %v582 = vunpack.c.l.b16 %v84
    %v583 = vunpack.c.h.b16 %v84
    %v584 = vunpack.c.l.b16 %v85
    %v585 = vunpack.c.h.b16 %v85
    %v586 = vunpack.c.l.b16 %v86
    %v587 = vunpack.c.h.b16 %v86
    %v588 = vunpack.c.l.b16 %v87
    %v589 = vunpack.c.h.b16 %v87
    %v590 = vunpack.c.l.b16 %v88
    %v591 = vunpack.c.h.b16 %v88
    %v592 = vunpack.c.l.b16 %v89
    %v593 = vunpack.c.h.b16 %v89
    %v594 = vunpack.c.l.b16 %v90
    %v595 = vunpack.c.h.b16 %v90
    %v596 = vunpack.c.l.b16 %v91
    %v597 = vunpack.c.h.b16 %v91
    %v598 = vunpack.c.l.b16 %v92
    %v599 = vunpack.c.h.b16 %v92
    %v600 = vunpack.c.l.b16 %v93
    %v601 = vunpack.c.h.b16 %v93
    %v602 = vunpack.c.l.b16 %v94
    %v603 = vunpack.c.h.b16 %v94
    %v604 = vunpack.c.l.b16 %v95
    %v605 = vunpack.c.h.b16 %v95
    %v606 = vunpack.c.l.b16 %v96
    %v607 = vunpack.c.h.b16 %v96
    %v608 = vunpack.c.l.b16 %v97
    %v609 = vunpack.c.h.b16 %v97
    %v610 = vunpack.c.l.b16 %v98
    %v611 = vunpack.c.h.b16 %v98
    %v612 = vunpack.c.l.b16 %v99
    %v613 = vunpack.c.h.b16 %v99
    %v614 = vunpack.c.l.b16 %v100
    %v615 = vunpack.c.h.b16 %v100
    %v616 = vunpack.c.l.b16 %v101
    %v617 = vunpack.c.h.b16 %v101
    %v618 = vunpack.c.l.b16 %v102
    %v619 = vunpack.c.h.b16 %v102
    %v620 = vunpack.c.l.b16 %v103
    %v621 = vunpack.c.h.b16 %v103
    %v622 = vunpack.c.l.b16 %v104
    %v623 = vunpack.c.h.b16 %v104
    %v624 = vunpack.c.l.b16 %v105
    %v625 = vunpack.c.h.b16 %v105
    %v626 = vunpack.c.l.b16 %v106
    %v627 = vunpack.c.h.b16 %v106
    %v628 = vunpack.c.l.b16 %v107
    %v629 = vunpack.c.h.b16 %v107
    %v630 = vunpack.c.l.b16 %v108
    %v631 = vunpack.c.h.b16 %v108
    %v632 = vunpack.c.l.b16 %v109
    %v633 = vunpack.c.h.b16 %v109
    %v634 = vunpack.c.l.b16 %v110
    %v635 = vunpack.c.h.b16 %v110
    %v636 = vunpack.c.l.b16 %v111
    %v637 = vunpack.c.h.b16 %v111
    %v638 = vunpack.c.l.b16 %v112
    %v639 = vunpack.c.h.b16 %v112
    %v640 = vunpack.c.l.b16 %v113
    %v641 = vunpack.c.h.b16 %v113
    %v642 = vunpack.c.l.b16 %v114
    %v643 = vunpack.c.h.b16 %v114
    %v644 = vunpack.c.l.b16 %v115
    %v645 = vunpack.c.h.b16 %v115
    %v646 = vunpack.c.l.b16 %v116
    %v647 = vunpack.c.h.b16 %v116
    %v648 = vunpack.c.l.b16 %v117
    %v649 = vunpack.c.h.b16 %v117
    %v650 = vunpack.c.l.b16 %v118
    %v651 = vunpack.c.h.b16 %v118
    %v652 = vunpack.c.l.b16 %v119
    %v653 = vunpack.c.h.b16 %v119
    %v654 = vunpack.c.l.b16 %v120
    %v655 = vunpack.c.h.b16 %v120
    %v656 = vunpack.c.l.b16 %v121
    %v657 = vunpack.c.h.b16 %v121
    %v658 = vunpack.c.l.b16 %v122
    %v659 = vunpack.c.h.b16 %v122
    %v660 = vunpack.c.l.b16 %v123
    %v661 = vunpack.c.h.b16 %v123
    %v662 = vunpack.c.l.b16 %v124
    %v663 = vunpack.c.h.b16 %v124
    %v664 = vunpack.c.l.b16 %v125
    %v665 = vunpack.c.h.b16 %v125
    %v666 = vunpack.c.l.b16 %v126
    %v667 = vunpack.c.h.b16 %v126
    %v668 = vunpack.c.l.b16 %v127
    %v669 = vunpack.c.h.b16 %v127
    %v670 = vunpack.c.l.b16 %v128
    %v671 = vunpack.c.h.b16 %v128
    %v672 = vunpack.c.l.b16 %v129
    %v673 = vunpack.c.h.b16 %v129
    %v674 = vunpack.c.l.b16 %v130
    %v675 = vunpack.c.h.b16 %v130
    %v676 = vunpack.c.l.b16 %v131
    %v677 = vunpack.c.h.b16 %v131
    %v678 = vunpack.c.l.b16 %v132
    %v679 = vunpack.c.h.b16 %v132
    %v680 = vunpack.c.l.b16 %v133
    %v681 = vunpack.c.h.b16 %v133
    %v682 = vunpack.c.l.b16 %v134
    %v683 = vunpack.c.h.b16 %v134
    %v684 = vunpack.c.l.b16 %v135
    %v685 = vunpack.c.h.b16 %v135
    %v686 = vunpack.c.l.b16 %v136
    %v687 = vunpack.c.h.b16 %v136
    %v688 = vunpack.c.l.b16 %v137
    %v689 = vunpack.c.h.b16 %v137
    %v690 = vunpack.c.l.b16 %v138
    %v691 = vunpack.c.h.b16 %v138
    %v692 = vunpack.c.l.b16 %v139
    %v693 = vunpack.c.h.b16 %v139
    %v694 = vunpack.c.l.b16 %v140
    %v695 = vunpack.c.h.b16 %v140
    %v696 = vunpack.c.l.b16 %v141
    %v697 = vunpack.c.h.b16 %v141
    %v698 = vunpack.c.l.b16 %v142
    %v699 = vunpack.c.h.b16 %v142
    %v700 = vunpack.c.l.b16 %v143
    %v701 = vunpack.c.h.b16 %v143
    %v702 = vunpack.c.l.b16 %v144
    %v703 = vunpack.c.h.b16 %v144
    %v704 = vunpack.c.l.b16 %v145
    %v705 = vunpack.c.h.b16 %v145
    %v706 = vunpack.c.l.b16 %v146
    %v707 = vunpack.c.h.b16 %v146
    %v708 = vunpack.c.l.b16 %v147
    %v709 = vunpack.c.h.b16 %v147
    %v710 = vunpack.c.l.b16 %v148
    %v711 = vunpack.c.h.b16 %v148
    %v712 = vunpack.c.l.b16 %v149
    %v713 = vunpack.c.h.b16 %v149
    %v714 = vunpack.c.l.b16 %v150
    %v715 = vunpack.c.h.b16 %v150
    %v716 = vunpack.c.l.b16 %v151
    %v717 = vunpack.c.h.b16 %v151
    %v718 = vunpack.c.l.b16 %v152
    %v719 = vunpack.c.h.b16 %v152
    %v720 = vunpack.c.l.b16 %v153
    %v721 = vunpack.c.h.b16 %v153
    %v722 = vunpack.c.l.b16 %v154
    %v723 = vunpack.c.h.b16 %v154
    %v724 = vunpack.c.l.b16 %v155
    %v725 = vunpack.c.h.b16 %v155
    %v726 = vunpack.c.l.b16 %v156
    %v727 = vunpack.c.h.b16 %v156
    %v728 = vunpack.c.l.b16 %v157
    %v729 = vunpack.c.h.b16 %v157
    %v730 = vunpack.c.l.b16 %v158
    %v731 = vunpack.c.h.b16 %v158
    %v732 = vunpack.c.l.b16 %v159
    %v733 = vunpack.c.h.b16 %v159
    %v734 = vunpack.c.l.b16 %v160
    %v735 = vunpack.c.h.b16 %v160
    %v736 = vunpack.c.l.b16 %v161
    %v737 = vunpack.c.h.b16 %v161
    %v738 = vunpack.c.l.b16 %v162
    %v739 = vunpack.c.h.b16 %v162
    %v740 = vunpack.c.l.b16 %v163
    %v741 = vunpack.c.h.b16 %v163
    %v742 = vunpack.c.l.b16 %v164
    %v743 = vunpack.c.h.b16 %v164
    %v744 = vunpack.c.l.b16 %v165
    %v745 = vunpack.c.h.b16 %v165
    %v746 = vunpack.c.l.b16 %v166
    %v747 = vunpack.c.h.b16 %v166
    %v748 = vunpack.c.l.b16 %v167
    %v749 = vunpack.c.h.b16 %v167
    %v750 = vunpack.c.l.b16 %v168
    %v751 = vunpack.c.h.b16 %v168
    %v752 = vunpack.c.l.b16 %v169
    %v753 = vunpack.c.h.b16 %v169
    %v754 = vunpack.c.l.b16 %v170
    %v755 = vunpack.c.h.b16 %v170
    %v756 = vunpack.c.l.b16 %v171
    %v757 = vunpack.c.h.b16 %v171
    %v758 = vunpack.c.l.b16 %v172
    %v759 = vunpack.c.h.b16 %v172
    %v760 = vunpack.c.l.b16 %v173
    %v761 = vunpack.c.h.b16 %v173
    %v762 = vunpack.c.l.b16 %v174
    %v763 = vunpack.c.h.b16 %v174
    %v764 = vunpack.c.l.b16 %v175
    %v765 = vunpack.c.h.b16 %v175
    %v766 = vunpack.c.l.b16 %v176
    %v767 = vunpack.c.h.b16 %v176
    %v768 = vunpack.c.l.b16 %v177
    %v769 = vunpack.c.h.b16 %v177
    %v770 = vunpack.c.l.b16 %v178
    %v771 = vunpack.c.h.b16 %v178
    %v772 = vunpack.c.l.b16 %v179
    %v773 = vunpack.c.h.b16 %v179
    %v774 = vunpack.c.l.b16 %v180
    %v775 = vunpack.c.h.b16 %v180
    %v776 = vunpack.c.l.b16 %v181
    %v777 = vunpack.c.h.b16 %v181
    %v778 = vunpack.c.l.b16 %v182
    %v779 = vunpack.c.h.b16 %v182
    %v780 = vunpack.c.l.b16 %v183
    %v781 = vunpack.c.h.b16 %v183
    %v782 = vunpack.c.l.b16 %v184
    %v783 = vunpack.c.h.b16 %v184
    %v784 = vunpack.c.l.b16 %v185
    %v785 = vunpack.c.h.b16 %v185
    %v786 = vunpack.c.l.b16 %v186
    %v787 = vunpack.c.h.b16 %v186
    %v788 = vunpack.c.l.b16 %v187
    %v789 = vunpack.c.h.b16 %v187
    %v790 = vunpack.c.l.b16 %v188
    %v791 = vunpack.c.h.b16 %v188
    %v792 = vpack.c.b16 %v544, %v536
    %v793 = vpack.c.b16 %v545, %v537
    %v794 = vpack.c.b16 %v546, %v538
    %v795 = vpack.c.b16 %v547, %v539
    %v796 = vpack.c.b16 %v548, %v540
    %v797 = vpack.c.b16 %v549, %v541
    %v798 = vpack.c.b16 %v550, %v542
    %v799 = vpack.c.b16 %v551, %v543
    %v800 = vpack.c.b16 %v560, %v552
    %v801 = vpack.c.b16 %v561, %v553
    %v802 = vpack.c.b16 %v562, %v554
    %v803 = vpack.c.b16 %v563, %v555
    %v804 = vpack.c.b16 %v564, %v556
    %v805 = vpack.c.b16 %v565, %v557
    %v806 = vpack.c.b16 %v566, %v558
    %v807 = vpack.c.b16 %v567, %v559
    %v808 = vpack.c.b16 %v576, %v568
    %v809 = vpack.c.b16 %v577, %v569
    %v810 = vpack.c.b16 %v578, %v570
    %v811 = vpack.c.b16 %v579, %v571
    %v812 = vpack.c.b16 %v580, %v572
    %v813 = vpack.c.b16 %v581, %v573
    %v814 = vpack.c.b16 %v582, %v574
    %v815 = vpack.c.b16 %v583, %v575
    %v816 = vpack.c.b16 %v592, %v584
    %v817 = vpack.c.b16 %v593, %v585
    %v818 = vpack.c.b16 %v594, %v586
    %v819 = vpack.c.b16 %v595, %v587
    %v820 = vpack.c.b16 %v596, %v588
    %v821 = vpack.c.b16 %v597, %v589
    %v822 = vpack.c.b16 %v598, %v590
    %v823 = vpack.c.b16 %v599, %v591
    %v824 = vpack.c.b16 %v608, %v600
    %v825 = vpack.c.b16 %v609, %v601
    %v826 = vpack.c.b16 %v610, %v602
    %v827 = vpack.c.b16 %v611, %v603
    %v828 = vpack.c.b16 %v612, %v604
    %v829 = vpack.c.b16 %v613, %v605
    %v830 = vpack.c.b16 %v614, %v606
    %v831 = vpack.c.b16 %v615, %v607
    %v832 = vpack.c.b16 %v624, %v616
    %v833 = vpack.c.b16 %v625, %v617
    %v834 = vpack.c.b16 %v626, %v618
    %v835 = vpack.c.b16 %v627, %v619
    %v836 = vpack.c.b16 %v628, %v620
    %v837 = vpack.c.b16 %v629, %v621
    %v838 = vpack.c.b16 %v630, %v622
    %v839 = vpack.c.b16 %v631, %v623
    %v840 = vpack.c.b16 %v640, %v632
    %v841 = vpack.c.b16 %v641, %v633
    %v842 = vpack.c.b16 %v642, %v634
    %v843 = vpack.c.b16 %v643, %v635
    %v844 = vpack.c.b16 %v644, %v636
    %v845 = vpack.c.b16 %v645, %v637
    %v846 = vpack.c.b16 %v646, %v638
    %v847 = vpack.c.b16 %v647, %v639
    %v848 = vpack.c.b16 %v656, %v648
    %v849 = vpack.c.b16 %v657, %v649
    %v850 = vpack.c.b16 %v658, %v650
    %v851 = vpack.c.b16 %v659, %v651
    %v852 = vpack.c.b16 %v660, %v652
    %v853 = vpack.c.b16 %v661, %v653
    %v854 = vpack.c.b16 %v662, %v654
    %v855 = vpack.c.b16 %v663, %v655
    %v856 = vpack.c.b16 %v672, %v664
    %v857 = vpack.c.b16 %v673, %v665
    %v858 = vpack.c.b16 %v674, %v666
    %v859 = vpack.c.b16 %v675, %v667
    %v860 = vpack.c.b16 %v676, %v668
    %v861 = vpack.c.b16 %v677, %v669
    %v862 = vpack.c.b16 %v678, %v670
    %v863 = vpack.c.b16 %v679, %v671
    %v864 = vpack.c.b16 %v688, %v680
    %v865 = vpack.c.b16 %v689, %v681
    %v866 = vpack.c.b16 %v690, %v682
    %v867 = vpack.c.b16 %v691, %v683
    %v868 = vpack.c.b16 %v692, %v684
    %v869 = vpack.c.b16 %v693, %v685
    %v870 = vpack.c.b16 %v694, %v686
    %v871 = vpack.c.b16 %v695, %v687
    %v872 = vpack.c.b16 %v704, %v696
    %v873 = vpack.c.b16 %v705, %v697
    %v874 = vpack.c.b16 %v706, %v698
    %v875 = vpack.c.b16 %v707, %v699
    %v876 = vpack.c.b16 %v708, %v700
    %v877 = vpack.c.b16 %v709, %v701
    %v878 = vpack.c.b16 %v710, %v702
    %v879 = vpack.c.b16 %v711, %v703
    %v880 = vpack.c.b16 %v720, %v712
    %v881 = vpack.c.b16 %v721, %v713
    %v882 = vpack.c.b16 %v722, %v714
    %v883 = vpack.c.b16 %v723, %v715
    %v884 = vpack.c.b16 %v724, %v716
    %v885 = vpack.c.b16 %v725, %v717
    %v886 = vpack.c.b16 %v726, %v718
    %v887 = vpack.c.b16 %v727, %v719
    %v888 = vpack.c.b16 %v736, %v728
    %v889 = vpack.c.b16 %v737, %v729
    %v890 = vpack.c.b16 %v738, %v730
    %v891 = vpack.c.b16 %v739, %v731
    %v892 = vpack.c.b16 %v740, %v732
    %v893 = vpack.c.b16 %v741, %v733
    %v894 = vpack.c.b16 %v742, %v734
    %v895 = vpack.c.b16 %v743, %v735
    %v896 = vpack.c.b16 %v752, %v744
    %v897 = vpack.c.b16 %v753, %v745
    %v898 = vpack.c.b16 %v754, %v746
    %v899 = vpack.c.b16 %v755, %v747
    %v900 = vpack.c.b16 %v756, %v748
    %v901 = vpack.c.b16 %v757, %v749
    %v902 = vpack.c.b16 %v758, %v750
    %v903 = vpack.c.b16 %v759, %v751
    %v904 = vpack.c.b16 %v768, %v760
    %v905 = vpack.c.b16 %v769, %v761
    %v906 = vpack.c.b16 %v770, %v762
    %v907 = vpack.c.b16 %v771, %v763
    %v908 = vpack.c.b16 %v772, %v764
    %v909 = vpack.c.b16 %v773, %v765
    %v910 = vpack.c.b16 %v774, %v766
    %v911 = vpack.c.b16 %v775, %v767
    %v912 = vpack.c.b16 %v784, %v776
    %v913 = vpack.c.b16 %v785, %v777
    %v914 = vpack.c.b16 %v786, %v778
    %v915 = vpack.c.b16 %v787, %v779
    %v916 = vpack.c.b16 %v788, %v780
    %v917 = vpack.c.b16 %v789, %v781
    %v918 = vpack.c.b16 %v790, %v782
    %v919 = vpack.c.b16 %v791, %v783
    %1048 = vmatprep.subr.bf16.mxu0 %v849
    %1049 = vmatpush1.bf16.msra.mxu0 %v848
    %1050 = vmatprep.subr.bf16.mxu0 %v841
    %1051 = vmatpush1.bf16.msra.mxu0 %v840
    %1052 = vmatprep.subr.bf16.mxu0 %v833
    %1053 = vmatpush1.bf16.msra.mxu0 %v832
    %1054 = vmatprep.subr.bf16.mxu0 %v825
    %1055 = vmatpush1.bf16.msra.mxu0 %v824
    %1056 = vmatprep.subr.bf16.mxu0 %v817
    %1057 = vmatpush1.bf16.msra.mxu0 %v816
    %1058 = vmatprep.subr.bf16.mxu0 %v809
    %1059 = vmatpush1.bf16.msra.mxu0 %v808
    %1060 = vmatprep.subr.bf16.mxu0 %v801
    %1061 = vmatpush1.bf16.msra.mxu0 %v800
    %1062 = vmatprep.subr.bf16.mxu0 %v793
    %1063 = vmatpush1.bf16.msra.mxu0 %v792
    %1064 = vmatprep.subr.bf16.mxu0 %v913
    %1065 = vmatpush2.bf16.msra.mxu0 %v912
    %1066 = vmatprep.subr.bf16.mxu0 %v905
    %1067 = vmatpush2.bf16.msra.mxu0 %v904
    %1068 = vmatprep.subr.bf16.mxu0 %v897
    %1069 = vmatpush2.bf16.msra.mxu0 %v896
    %1070 = vmatprep.subr.bf16.mxu0 %v889
    %1071 = vmatpush2.bf16.msra.mxu0 %v888
    %1072 = vmatprep.subr.bf16.mxu0 %v881
    %1073 = vmatpush2.bf16.msra.mxu0 %v880
    %1074 = vmatprep.subr.bf16.mxu0 %v873
    %1075 = vmatpush2.bf16.msra.mxu0 %v872
    %1076 = vmatprep.subr.bf16.mxu0 %v865
    %1077 = vmatpush2.bf16.msra.mxu0 %v864
    %1078 = vmatprep.subr.bf16.mxu0 %v857
    %1079 = vmatpush2.bf16.msra.mxu0 %v856
    %1080 = vmatprep.mubr.bf16.mxu0 %v405
    %1081 = vmatmul.mubr.bf16.gmra.mxu0 %v404
    %v1082 = vpop.f32.mrf.mxu0
    %v1083 = vadd.f32 0.0, %v1082
    %v1084 = vpop.f32.mrf.mxu0
    %v1085 = vadd.f32 0.0, %v1084
    %v1086 = vpop.f32.mrf.mxu0
    %v1087 = vpop.f32.mrf.mxu0
    %1088 = vdwg.mxu0
    %1089 = vmatprep.subr.bf16.mxu0 %v851
    %1090 = vmatpush1.bf16.msra.mxu0 %v850
    %1091 = vmatprep.subr.bf16.mxu0 %v843
    %1092 = vmatpush1.bf16.msra.mxu0 %v842
    %1093 = vmatprep.subr.bf16.mxu0 %v835
    %1094 = vmatpush1.bf16.msra.mxu0 %v834
    %1095 = vmatprep.subr.bf16.mxu0 %v827
    %1096 = vmatpush1.bf16.msra.mxu0 %v826
    %1097 = vmatprep.subr.bf16.mxu0 %v819
    %1098 = vmatpush1.bf16.msra.mxu0 %v818
    %1099 = vmatprep.subr.bf16.mxu0 %v811
    %1100 = vmatpush1.bf16.msra.mxu0 %v810
    %1101 = vmatprep.subr.bf16.mxu0 %v803
    %1102 = vmatpush1.bf16.msra.mxu0 %v802
    %1103 = vmatprep.subr.bf16.mxu0 %v795
    %1104 = vmatpush1.bf16.msra.mxu0 %v794
    %1105 = vmatprep.subr.bf16.mxu0 %v915
    %1106 = vmatpush2.bf16.msra.mxu0 %v914
    %1107 = vmatprep.subr.bf16.mxu0 %v907
    %1108 = vmatpush2.bf16.msra.mxu0 %v906
    %1109 = vmatprep.subr.bf16.mxu0 %v899
    %1110 = vmatpush2.bf16.msra.mxu0 %v898
    %1111 = vmatprep.subr.bf16.mxu0 %v891
    %1112 = vmatpush2.bf16.msra.mxu0 %v890
    %1113 = vmatprep.subr.bf16.mxu0 %v883
    %1114 = vmatpush2.bf16.msra.mxu0 %v882
    %1115 = vmatprep.subr.bf16.mxu0 %v875
    %1116 = vmatpush2.bf16.msra.mxu0 %v874
    %1117 = vmatprep.subr.bf16.mxu0 %v867
    %1118 = vmatpush2.bf16.msra.mxu0 %v866
    %1119 = vmatprep.subr.bf16.mxu0 %v859
    %1120 = vmatpush2.bf16.msra.mxu0 %v858
    %1121 = vmatprep.mubr.bf16.mxu0 %v405
    %1122 = vmatmul.mubr.bf16.gmra.mxu0 %v404
    %v1123 = vpop.f32.mrf.mxu0
    %v1124 = vadd.f32 0.0, %v1123
    %v1125 = vpop.f32.mrf.mxu0
    %v1126 = vadd.f32 0.0, %v1125
    %v1127 = vpop.f32.mrf.mxu0
    %v1128 = vpop.f32.mrf.mxu0
    %1129 = vdwg.mxu0
    %1130 = vmatprep.subr.bf16.mxu0 %v853
    %1131 = vmatpush1.bf16.msra.mxu0 %v852
    %1132 = vmatprep.subr.bf16.mxu0 %v845
    %1133 = vmatpush1.bf16.msra.mxu0 %v844
    %1134 = vmatprep.subr.bf16.mxu0 %v837
    %1135 = vmatpush1.bf16.msra.mxu0 %v836
    %1136 = vmatprep.subr.bf16.mxu0 %v829
    %1137 = vmatpush1.bf16.msra.mxu0 %v828
    %1138 = vmatprep.subr.bf16.mxu0 %v821
    %1139 = vmatpush1.bf16.msra.mxu0 %v820
    %1140 = vmatprep.subr.bf16.mxu0 %v813
    %1141 = vmatpush1.bf16.msra.mxu0 %v812
    %1142 = vmatprep.subr.bf16.mxu0 %v805
    %1143 = vmatpush1.bf16.msra.mxu0 %v804
    %1144 = vmatprep.subr.bf16.mxu0 %v797
    %1145 = vmatpush1.bf16.msra.mxu0 %v796
    %1146 = vmatprep.subr.bf16.mxu0 %v917
    %1147 = vmatpush2.bf16.msra.mxu0 %v916
    %1148 = vmatprep.subr.bf16.mxu0 %v909
    %1149 = vmatpush2.bf16.msra.mxu0 %v908
    %1150 = vmatprep.subr.bf16.mxu0 %v901
    %1151 = vmatpush2.bf16.msra.mxu0 %v900
    %1152 = vmatprep.subr.bf16.mxu0 %v893
    %1153 = vmatpush2.bf16.msra.mxu0 %v892
    %1154 = vmatprep.subr.bf16.mxu0 %v885
    %1155 = vmatpush2.bf16.msra.mxu0 %v884
    %1156 = vmatprep.subr.bf16.mxu0 %v877
    %1157 = vmatpush2.bf16.msra.mxu0 %v876
    %1158 = vmatprep.subr.bf16.mxu0 %v869
    %1159 = vmatpush2.bf16.msra.mxu0 %v868
    %1160 = vmatprep.subr.bf16.mxu0 %v861
    %1161 = vmatpush2.bf16.msra.mxu0 %v860
    %1162 = vmatprep.mubr.bf16.mxu0 %v405
    %1163 = vmatmul.mubr.bf16.gmra.mxu0 %v404
    %v1164 = vpop.f32.mrf.mxu0
    %v1165 = vadd.f32 0.0, %v1164
    %v1166 = vpop.f32.mrf.mxu0
    %v1167 = vadd.f32 0.0, %v1166
    %v1168 = vpop.f32.mrf.mxu0
    %v1169 = vpop.f32.mrf.mxu0
    %1170 = vdwg.mxu0
    %1171 = vmatprep.subr.bf16.mxu0 %v855
    %1172 = vmatpush1.bf16.msra.mxu0 %v854
    %1173 = vmatprep.subr.bf16.mxu0 %v847
    %1174 = vmatpush1.bf16.msra.mxu0 %v846
    %1175 = vmatprep.subr.bf16.mxu0 %v839
    %1176 = vmatpush1.bf16.msra.mxu0 %v838
    %1177 = vmatprep.subr.bf16.mxu0 %v831
    %1178 = vmatpush1.bf16.msra.mxu0 %v830
    %1179 = vmatprep.subr.bf16.mxu0 %v823
    %1180 = vmatpush1.bf16.msra.mxu0 %v822
    %1181 = vmatprep.subr.bf16.mxu0 %v815
    %1182 = vmatpush1.bf16.msra.mxu0 %v814
    %1183 = vmatprep.subr.bf16.mxu0 %v807
    %1184 = vmatpush1.bf16.msra.mxu0 %v806
    %1185 = vmatprep.subr.bf16.mxu0 %v799
    %1186 = vmatpush1.bf16.msra.mxu0 %v798
    %1187 = vmatprep.subr.bf16.mxu0 %v919
    %1188 = vmatpush2.bf16.msra.mxu0 %v918
    %1189 = vmatprep.subr.bf16.mxu0 %v911
    %1190 = vmatpush2.bf16.msra.mxu0 %v910
    %1191 = vmatprep.subr.bf16.mxu0 %v903
    %1192 = vmatpush2.bf16.msra.mxu0 %v902
    %1193 = vmatprep.subr.bf16.mxu0 %v895
    %1194 = vmatpush2.bf16.msra.mxu0 %v894
    %1195 = vmatprep.subr.bf16.mxu0 %v887
    %1196 = vmatpush2.bf16.msra.mxu0 %v886
    %1197 = vmatprep.subr.bf16.mxu0 %v879
    %1198 = vmatpush2.bf16.msra.mxu0 %v878
    %1199 = vmatprep.subr.bf16.mxu0 %v871
    %1200 = vmatpush2.bf16.msra.mxu0 %v870
    %1201 = vmatprep.subr.bf16.mxu0 %v863
    %1202 = vmatpush2.bf16.msra.mxu0 %v862
    %1203 = vmatprep.mubr.bf16.mxu0 %v405
    %1204 = vmatmul.mubr.bf16.gmra.mxu0 %v404
    %v1205 = vpop.f32.mrf.mxu0
    %v1206 = vadd.f32 0.0, %v1205
    %v1207 = vpop.f32.mrf.mxu0
    %v1208 = vadd.f32 0.0, %v1207
    %v1209 = vpop.f32.mrf.mxu0
    %v1210 = vpop.f32.mrf.mxu0
    %1211 = vdwg.mxu0
    %v1212 = vmax.f32 %v1083, %v1124
    %v1213 = vmax.f32 %v1085, %v1126
    %v1214 = vmax.f32 %v1165, %v1206
    %v1215 = vmax.f32 %v1167, %v1208
    %v1216 = vmax.f32 %v1212, %v1214
    %v1217 = vmax.f32 %v1213, %v1215
    %v1218 = vadd.f32 %v1216, %v386
    %v1219 = vadd.f32 %v1217, %v390
    %v1220 = vmax.f32 %v1218, 0.0
    %v1221 = vmax.f32 %v1219, 0.0
    %v1222 = vpack.c.bf16 %v1220, %v1220
    %v1223 = vpack.c.bf16 %v1221, %v1221
    %v1226 = vunpack.c.l.b16 %v1222
    %v1227 = vunpack.c.l.b16 %v1223
    %v1228 = vpack.c.b16 %v1227, %v1226
    %1230 = vst [vmem:[#allocation2] sm:$0xff] %v1228
    %v1231 = vld [vmem:[%s0 + $0x8] sm:$0xff]
    %v1233 = vunpack.c.l.b16 %v1231
    %v1234 = vunpack.c.h.b16 %v1231
    %v1235 = vpack.c.b16 %v1233, %v1233
    %v1236 = vpack.c.b16 %v1234, %v1234
    %1239 = vmatprep.subr.bf16.mxu0 %v849
    %1240 = vmatpush1.bf16.msra.mxu0 %v848
    %1241 = vmatprep.subr.bf16.mxu0 %v841
    %1242 = vmatpush1.bf16.msra.mxu0 %v840
    %1243 = vmatprep.subr.bf16.mxu0 %v833
    %1244 = vmatpush1.bf16.msra.mxu0 %v832
    %1245 = vmatprep.subr.bf16.mxu0 %v825
    %1246 = vmatpush1.bf16.msra.mxu0 %v824
    %1247 = vmatprep.subr.bf16.mxu0 %v817
    %1248 = vmatpush1.bf16.msra.mxu0 %v816
    %1249 = vmatprep.subr.bf16.mxu0 %v809
    %1250 = vmatpush1.bf16.msra.mxu0 %v808
    %1251 = vmatprep.subr.bf16.mxu0 %v801
    %1252 = vmatpush1.bf16.msra.mxu0 %v800
    %1253 = vmatprep.subr.bf16.mxu0 %v793
    %1254 = vmatpush1.bf16.msra.mxu0 %v792
    %1255 = vmatprep.subr.bf16.mxu0 %v913
    %1256 = vmatpush2.bf16.msra.mxu0 %v912
    %1257 = vmatprep.subr.bf16.mxu0 %v905
    %1258 = vmatpush2.bf16.msra.mxu0 %v904
    %1259 = vmatprep.subr.bf16.mxu0 %v897
    %1260 = vmatpush2.bf16.msra.mxu0 %v896
    %1261 = vmatprep.subr.bf16.mxu0 %v889
    %1262 = vmatpush2.bf16.msra.mxu0 %v888
    %1263 = vmatprep.subr.bf16.mxu0 %v881
    %1264 = vmatpush2.bf16.msra.mxu0 %v880
    %1265 = vmatprep.subr.bf16.mxu0 %v873
    %1266 = vmatpush2.bf16.msra.mxu0 %v872
    %1267 = vmatprep.subr.bf16.mxu0 %v865
    %1268 = vmatpush2.bf16.msra.mxu0 %v864
    %1269 = vmatprep.subr.bf16.mxu0 %v857
    %1270 = vmatpush2.bf16.msra.mxu0 %v856
    %1271 = vmatprep.mubr.bf16.mxu0 %v1236
    %1272 = vmatmul.mubr.bf16.gmra.mxu0 %v1235
    %v1273 = vpop.f32.mrf.mxu0
    %v1274 = vadd.f32 0.0, %v1273
    %v1275 = vpop.f32.mrf.mxu0
    %v1276 = vadd.f32 0.0, %v1275
    %v1277 = vpop.f32.mrf.mxu0
    %v1278 = vpop.f32.mrf.mxu0
    %1279 = vdwg.mxu0
    %1280 = vmatprep.subr.bf16.mxu0 %v851
    %1281 = vmatpush1.bf16.msra.mxu0 %v850
    %1282 = vmatprep.subr.bf16.mxu0 %v843
    %1283 = vmatpush1.bf16.msra.mxu0 %v842
    %1284 = vmatprep.subr.bf16.mxu0 %v835
    %1285 = vmatpush1.bf16.msra.mxu0 %v834
    %1286 = vmatprep.subr.bf16.mxu0 %v827
    %1287 = vmatpush1.bf16.msra.mxu0 %v826
    %1288 = vmatprep.subr.bf16.mxu0 %v819
    %1289 = vmatpush1.bf16.msra.mxu0 %v818
    %1290 = vmatprep.subr.bf16.mxu0 %v811
    %1291 = vmatpush1.bf16.msra.mxu0 %v810
    %1292 = vmatprep.subr.bf16.mxu0 %v803
    %1293 = vmatpush1.bf16.msra.mxu0 %v802
    %1294 = vmatprep.subr.bf16.mxu0 %v795
    %1295 = vmatpush1.bf16.msra.mxu0 %v794
    %1296 = vmatprep.subr.bf16.mxu0 %v915
    %1297 = vmatpush2.bf16.msra.mxu0 %v914
    %1298 = vmatprep.subr.bf16.mxu0 %v907
    %1299 = vmatpush2.bf16.msra.mxu0 %v906
    %1300 = vmatprep.subr.bf16.mxu0 %v899
    %1301 = vmatpush2.bf16.msra.mxu0 %v898
    %1302 = vmatprep.subr.bf16.mxu0 %v891
    %1303 = vmatpush2.bf16.msra.mxu0 %v890
    %1304 = vmatprep.subr.bf16.mxu0 %v883
    %1305 = vmatpush2.bf16.msra.mxu0 %v882
    %1306 = vmatprep.subr.bf16.mxu0 %v875
    %1307 = vmatpush2.bf16.msra.mxu0 %v874
    %1308 = vmatprep.subr.bf16.mxu0 %v867
    %1309 = vmatpush2.bf16.msra.mxu0 %v866
    %1310 = vmatprep.subr.bf16.mxu0 %v859
    %1311 = vmatpush2.bf16.msra.mxu0 %v858
    %1312 = vmatprep.mubr.bf16.mxu0 %v1236
    %1313 = vmatmul.mubr.bf16.gmra.mxu0 %v1235
    %v1314 = vpop.f32.mrf.mxu0
    %v1315 = vadd.f32 0.0, %v1314
    %v1316 = vpop.f32.mrf.mxu0
    %v1317 = vadd.f32 0.0, %v1316
    %v1318 = vpop.f32.mrf.mxu0
    %v1319 = vpop.f32.mrf.mxu0
    %1320 = vdwg.mxu0
    %1321 = vmatprep.subr.bf16.mxu0 %v853
    %1322 = vmatpush1.bf16.msra.mxu0 %v852
    %1323 = vmatprep.subr.bf16.mxu0 %v845
    %1324 = vmatpush1.bf16.msra.mxu0 %v844
    %1325 = vmatprep.subr.bf16.mxu0 %v837
    %1326 = vmatpush1.bf16.msra.mxu0 %v836
    %1327 = vmatprep.subr.bf16.mxu0 %v829
    %1328 = vmatpush1.bf16.msra.mxu0 %v828
    %1329 = vmatprep.subr.bf16.mxu0 %v821
    %1330 = vmatpush1.bf16.msra.mxu0 %v820
    %1331 = vmatprep.subr.bf16.mxu0 %v813
    %1332 = vmatpush1.bf16.msra.mxu0 %v812
    %1333 = vmatprep.subr.bf16.mxu0 %v805
    %1334 = vmatpush1.bf16.msra.mxu0 %v804
    %1335 = vmatprep.subr.bf16.mxu0 %v797
    %1336 = vmatpush1.bf16.msra.mxu0 %v796
    %1337 = vmatprep.subr.bf16.mxu0 %v917
    %1338 = vmatpush2.bf16.msra.mxu0 %v916
    %1339 = vmatprep.subr.bf16.mxu0 %v909
    %1340 = vmatpush2.bf16.msra.mxu0 %v908
    %1341 = vmatprep.subr.bf16.mxu0 %v901
    %1342 = vmatpush2.bf16.msra.mxu0 %v900
    %1343 = vmatprep.subr.bf16.mxu0 %v893
    %1344 = vmatpush2.bf16.msra.mxu0 %v892
    %1345 = vmatprep.subr.bf16.mxu0 %v885
    %1346 = vmatpush2.bf16.msra.mxu0 %v884
    %1347 = vmatprep.subr.bf16.mxu0 %v877
    %1348 = vmatpush2.bf16.msra.mxu0 %v876
    %1349 = vmatprep.subr.bf16.mxu0 %v869
    %1350 = vmatpush2.bf16.msra.mxu0 %v868
    %1351 = vmatprep.subr.bf16.mxu0 %v861
    %1352 = vmatpush2.bf16.msra.mxu0 %v860
    %1353 = vmatprep.mubr.bf16.mxu0 %v1236
    %1354 = vmatmul.mubr.bf16.gmra.mxu0 %v1235
    %v1355 = vpop.f32.mrf.mxu0
    %v1356 = vadd.f32 0.0, %v1355
    %v1357 = vpop.f32.mrf.mxu0
    %v1358 = vadd.f32 0.0, %v1357
    %v1359 = vpop.f32.mrf.mxu0
    %v1360 = vpop.f32.mrf.mxu0
    %1361 = vdwg.mxu0
    %1362 = vmatprep.subr.bf16.mxu0 %v855
    %1363 = vmatpush1.bf16.msra.mxu0 %v854
    %1364 = vmatprep.subr.bf16.mxu0 %v847
    %1365 = vmatpush1.bf16.msra.mxu0 %v846
    %1366 = vmatprep.subr.bf16.mxu0 %v839
    %1367 = vmatpush1.bf16.msra.mxu0 %v838
    %1368 = vmatprep.subr.bf16.mxu0 %v831
    %1369 = vmatpush1.bf16.msra.mxu0 %v830
    %1370 = vmatprep.subr.bf16.mxu0 %v823
    %1371 = vmatpush1.bf16.msra.mxu0 %v822
    %1372 = vmatprep.subr.bf16.mxu0 %v815
    %1373 = vmatpush1.bf16.msra.mxu0 %v814
    %1374 = vmatprep.subr.bf16.mxu0 %v807
    %1375 = vmatpush1.bf16.msra.mxu0 %v806
    %1376 = vmatprep.subr.bf16.mxu0 %v799
    %1377 = vmatpush1.bf16.msra.mxu0 %v798
    %1378 = vmatprep.subr.bf16.mxu0 %v919
    %1379 = vmatpush2.bf16.msra.mxu0 %v918
    %1380 = vmatprep.subr.bf16.mxu0 %v911
    %1381 = vmatpush2.bf16.msra.mxu0 %v910
    %1382 = vmatprep.subr.bf16.mxu0 %v903
    %1383 = vmatpush2.bf16.msra.mxu0 %v902
    %1384 = vmatprep.subr.bf16.mxu0 %v895
    %1385 = vmatpush2.bf16.msra.mxu0 %v894
    %1386 = vmatprep.subr.bf16.mxu0 %v887
    %1387 = vmatpush2.bf16.msra.mxu0 %v886
    %1388 = vmatprep.subr.bf16.mxu0 %v879
    %1389 = vmatpush2.bf16.msra.mxu0 %v878
    %1390 = vmatprep.subr.bf16.mxu0 %v871
    %1391 = vmatpush2.bf16.msra.mxu0 %v870
    %1392 = vmatprep.subr.bf16.mxu0 %v863
    %1393 = vmatpush2.bf16.msra.mxu0 %v862
    %1394 = vmatprep.mubr.bf16.mxu0 %v1236
    %1395 = vmatmul.mubr.bf16.gmra.mxu0 %v1235
    %v1396 = vpop.f32.mrf.mxu0
    %v1397 = vadd.f32 0.0, %v1396
    %v1398 = vpop.f32.mrf.mxu0
    %v1399 = vadd.f32 0.0, %v1398
    %v1400 = vpop.f32.mrf.mxu0
    %v1401 = vpop.f32.mrf.mxu0
    %1402 = vdwg.mxu0
    %v1403 = vmax.f32 %v1274, %v1315
    %v1404 = vmax.f32 %v1276, %v1317
    %v1405 = vmax.f32 %v1356, %v1397
    %v1406 = vmax.f32 %v1358, %v1399
    %v1407 = vmax.f32 %v1403, %v1405
    %v1408 = vmax.f32 %v1404, %v1406
    %v1409 = vadd.f32 %v1407, %v386
    %v1410 = vadd.f32 %v1408, %v390
    %v1411 = vmax.f32 %v1409, 0.0
    %v1412 = vmax.f32 %v1410, 0.0
    %v1413 = vpack.c.bf16 %v1411, %v1411
    %v1414 = vpack.c.bf16 %v1412, %v1412
    %v1417 = vunpack.c.l.b16 %v1413
    %v1418 = vunpack.c.l.b16 %v1414
    %v1419 = vpack.c.b16 %v1418, %v1417
    %1421 = vst [vmem:[#allocation2 + $0x8] sm:$0xff] %v1419
    %v1422 = vld [vmem:[%s0 + $0x10] sm:$0xff]
    %v1424 = vunpack.c.l.b16 %v1422
    %v1425 = vunpack.c.h.b16 %v1422
    %v1426 = vpack.c.b16 %v1424, %v1424
    %v1427 = vpack.c.b16 %v1425, %v1425
    %1430 = vmatprep.subr.bf16.mxu0 %v849
    %1431 = vmatpush1.bf16.msra.mxu0 %v848
    %1432 = vmatprep.subr.bf16.mxu0 %v841
    %1433 = vmatpush1.bf16.msra.mxu0 %v840
    %1434 = vmatprep.subr.bf16.mxu0 %v833
    %1435 = vmatpush1.bf16.msra.mxu0 %v832
    %1436 = vmatprep.subr.bf16.mxu0 %v825
    %1437 = vmatpush1.bf16.msra.mxu0 %v824
    %1438 = vmatprep.subr.bf16.mxu0 %v817
    %1439 = vmatpush1.bf16.msra.mxu0 %v816
    %1440 = vmatprep.subr.bf16.mxu0 %v809
    %1441 = vmatpush1.bf16.msra.mxu0 %v808
    %1442 = vmatprep.subr.bf16.mxu0 %v801
    %1443 = vmatpush1.bf16.msra.mxu0 %v800
    %1444 = vmatprep.subr.bf16.mxu0 %v793
    %1445 = vmatpush1.bf16.msra.mxu0 %v792
    %1446 = vmatprep.subr.bf16.mxu0 %v913
    %1447 = vmatpush2.bf16.msra.mxu0 %v912
    %1448 = vmatprep.subr.bf16.mxu0 %v905
    %1449 = vmatpush2.bf16.msra.mxu0 %v904
    %1450 = vmatprep.subr.bf16.mxu0 %v897
    %1451 = vmatpush2.bf16.msra.mxu0 %v896
    %1452 = vmatprep.subr.bf16.mxu0 %v889
    %1453 = vmatpush2.bf16.msra.mxu0 %v888
    %1454 = vmatprep.subr.bf16.mxu0 %v881
    %1455 = vmatpush2.bf16.msra.mxu0 %v880
    %1456 = vmatprep.subr.bf16.mxu0 %v873
    %1457 = vmatpush2.bf16.msra.mxu0 %v872
    %1458 = vmatprep.subr.bf16.mxu0 %v865
    %1459 = vmatpush2.bf16.msra.mxu0 %v864
    %1460 = vmatprep.subr.bf16.mxu0 %v857
    %1461 = vmatpush2.bf16.msra.mxu0 %v856
    %1462 = vmatprep.mubr.bf16.mxu0 %v1427
    %1463 = vmatmul.mubr.bf16.gmra.mxu0 %v1426
    %v1464 = vpop.f32.mrf.mxu0
    %v1465 = vadd.f32 0.0, %v1464
    %v1466 = vpop.f32.mrf.mxu0
    %v1467 = vadd.f32 0.0, %v1466
    %v1468 = vpop.f32.mrf.mxu0
    %v1469 = vpop.f32.mrf.mxu0
    %1470 = vdwg.mxu0
    %1471 = vmatprep.subr.bf16.mxu0 %v851
    %1472 = vmatpush1.bf16.msra.mxu0 %v850
    %1473 = vmatprep.subr.bf16.mxu0 %v843
    %1474 = vmatpush1.bf16.msra.mxu0 %v842
    %1475 = vmatprep.subr.bf16.mxu0 %v835
    %1476 = vmatpush1.bf16.msra.mxu0 %v834
    %1477 = vmatprep.subr.bf16.mxu0 %v827
    %1478 = vmatpush1.bf16.msra.mxu0 %v826
    %1479 = vmatprep.subr.bf16.mxu0 %v819
    %1480 = vmatpush1.bf16.msra.mxu0 %v818
    %1481 = vmatprep.subr.bf16.mxu0 %v811
    %1482 = vmatpush1.bf16.msra.mxu0 %v810
    %1483 = vmatprep.subr.bf16.mxu0 %v803
    %1484 = vmatpush1.bf16.msra.mxu0 %v802
    %1485 = vmatprep.subr.bf16.mxu0 %v795
    %1486 = vmatpush1.bf16.msra.mxu0 %v794
    %1487 = vmatprep.subr.bf16.mxu0 %v915
    %1488 = vmatpush2.bf16.msra.mxu0 %v914
    %1489 = vmatprep.subr.bf16.mxu0 %v907
    %1490 = vmatpush2.bf16.msra.mxu0 %v906
    %1491 = vmatprep.subr.bf16.mxu0 %v899
    %1492 = vmatpush2.bf16.msra.mxu0 %v898
    %1493 = vmatprep.subr.bf16.mxu0 %v891
    %1494 = vmatpush2.bf16.msra.mxu0 %v890
    %1495 = vmatprep.subr.bf16.mxu0 %v883
    %1496 = vmatpush2.bf16.msra.mxu0 %v882
    %1497 = vmatprep.subr.bf16.mxu0 %v875
    %1498 = vmatpush2.bf16.msra.mxu0 %v874
    %1499 = vmatprep.subr.bf16.mxu0 %v867
    %1500 = vmatpush2.bf16.msra.mxu0 %v866
    %1501 = vmatprep.subr.bf16.mxu0 %v859
    %1502 = vmatpush2.bf16.msra.mxu0 %v858
    %1503 = vmatprep.mubr.bf16.mxu0 %v1427
    %1504 = vmatmul.mubr.bf16.gmra.mxu0 %v1426
    %v1505 = vpop.f32.mrf.mxu0
    %v1506 = vadd.f32 0.0, %v1505
    %v1507 = vpop.f32.mrf.mxu0
    %v1508 = vadd.f32 0.0, %v1507
    %v1509 = vpop.f32.mrf.mxu0
    %v1510 = vpop.f32.mrf.mxu0
    %1511 = vdwg.mxu0
    %1512 = vmatprep.subr.bf16.mxu0 %v853
    %1513 = vmatpush1.bf16.msra.mxu0 %v852
    %1514 = vmatprep.subr.bf16.mxu0 %v845
    %1515 = vmatpush1.bf16.msra.mxu0 %v844
    %1516 = vmatprep.subr.bf16.mxu0 %v837
    %1517 = vmatpush1.bf16.msra.mxu0 %v836
    %1518 = vmatprep.subr.bf16.mxu0 %v829
    %1519 = vmatpush1.bf16.msra.mxu0 %v828
    %1520 = vmatprep.subr.bf16.mxu0 %v821
    %1521 = vmatpush1.bf16.msra.mxu0 %v820
    %1522 = vmatprep.subr.bf16.mxu0 %v813
    %1523 = vmatpush1.bf16.msra.mxu0 %v812
    %1524 = vmatprep.subr.bf16.mxu0 %v805
    %1525 = vmatpush1.bf16.msra.mxu0 %v804
    %1526 = vmatprep.subr.bf16.mxu0 %v797
    %1527 = vmatpush1.bf16.msra.mxu0 %v796
    %1528 = vmatprep.subr.bf16.mxu0 %v917
    %1529 = vmatpush2.bf16.msra.mxu0 %v916
    %1530 = vmatprep.subr.bf16.mxu0 %v909
    %1531 = vmatpush2.bf16.msra.mxu0 %v908
    %1532 = vmatprep.subr.bf16.mxu0 %v901
    %1533 = vmatpush2.bf16.msra.mxu0 %v900
    %1534 = vmatprep.subr.bf16.mxu0 %v893
    %1535 = vmatpush2.bf16.msra.mxu0 %v892
    %1536 = vmatprep.subr.bf16.mxu0 %v885
    %1537 = vmatpush2.bf16.msra.mxu0 %v884
    %1538 = vmatprep.subr.bf16.mxu0 %v877
    %1539 = vmatpush2.bf16.msra.mxu0 %v876
    %1540 = vmatprep.subr.bf16.mxu0 %v869
    %1541 = vmatpush2.bf16.msra.mxu0 %v868
    %1542 = vmatprep.subr.bf16.mxu0 %v861
    %1543 = vmatpush2.bf16.msra.mxu0 %v860
    %1544 = vmatprep.mubr.bf16.mxu0 %v1427
    %1545 = vmatmul.mubr.bf16.gmra.mxu0 %v1426
    %v1546 = vpop.f32.mrf.mxu0
    %v1547 = vadd.f32 0.0, %v1546
    %v1548 = vpop.f32.mrf.mxu0
    %v1549 = vadd.f32 0.0, %v1548
    %v1550 = vpop.f32.mrf.mxu0
    %v1551 = vpop.f32.mrf.mxu0
    %1552 = vdwg.mxu0
    %1553 = vmatprep.subr.bf16.mxu0 %v855
    %1554 = vmatpush1.bf16.msra.mxu0 %v854
    %1555 = vmatprep.subr.bf16.mxu0 %v847
    %1556 = vmatpush1.bf16.msra.mxu0 %v846
    %1557 = vmatprep.subr.bf16.mxu0 %v839
    %1558 = vmatpush1.bf16.msra.mxu0 %v838
    %1559 = vmatprep.subr.bf16.mxu0 %v831
    %1560 = vmatpush1.bf16.msra.mxu0 %v830
    %1561 = vmatprep.subr.bf16.mxu0 %v823
    %1562 = vmatpush1.bf16.msra.mxu0 %v822
    %1563 = vmatprep.subr.bf16.mxu0 %v815
    %1564 = vmatpush1.bf16.msra.mxu0 %v814
    %1565 = vmatprep.subr.bf16.mxu0 %v807
    %1566 = vmatpush1.bf16.msra.mxu0 %v806
    %1567 = vmatprep.subr.bf16.mxu0 %v799
    %1568 = vmatpush1.bf16.msra.mxu0 %v798
    %1569 = vmatprep.subr.bf16.mxu0 %v919
    %1570 = vmatpush2.bf16.msra.mxu0 %v918
    %1571 = vmatprep.subr.bf16.mxu0 %v911
    %1572 = vmatpush2.bf16.msra.mxu0 %v910
    %1573 = vmatprep.subr.bf16.mxu0 %v903
    %1574 = vmatpush2.bf16.msra.mxu0 %v902
    %1575 = vmatprep.subr.bf16.mxu0 %v895
    %1576 = vmatpush2.bf16.msra.mxu0 %v894
    %1577 = vmatprep.subr.bf16.mxu0 %v887
    %1578 = vmatpush2.bf16.msra.mxu0 %v886
    %1579 = vmatprep.subr.bf16.mxu0 %v879
    %1580 = vmatpush2.bf16.msra.mxu0 %v878
    %1581 = vmatprep.subr.bf16.mxu0 %v871
    %1582 = vmatpush2.bf16.msra.mxu0 %v870
    %1583 = vmatprep.subr.bf16.mxu0 %v863
    %1584 = vmatpush2.bf16.msra.mxu0 %v862
    %1585 = vmatprep.mubr.bf16.mxu0 %v1427
    %1586 = vmatmul.mubr.bf16.gmra.mxu0 %v1426
    %v1587 = vpop.f32.mrf.mxu0
    %v1588 = vadd.f32 0.0, %v1587
    %v1589 = vpop.f32.mrf.mxu0
    %v1590 = vadd.f32 0.0, %v1589
    %v1591 = vpop.f32.mrf.mxu0
    %v1592 = vpop.f32.mrf.mxu0
    %1593 = vdwg.mxu0
    %v1594 = vmax.f32 %v1465, %v1506
    %v1595 = vmax.f32 %v1467, %v1508
    %v1596 = vmax.f32 %v1547, %v1588
    %v1597 = vmax.f32 %v1549, %v1590
    %v1598 = vmax.f32 %v1594, %v1596
    %v1599 = vmax.f32 %v1595, %v1597
    %v1600 = vadd.f32 %v1598, %v386
    %v1601 = vadd.f32 %v1599, %v390
    %v1602 = vmax.f32 %v1600, 0.0
    %v1603 = vmax.f32 %v1601, 0.0
    %v1604 = vpack.c.bf16 %v1602, %v1602
    %v1605 = vpack.c.bf16 %v1603, %v1603
    %v1608 = vunpack.c.l.b16 %v1604
    %v1609 = vunpack.c.l.b16 %v1605
    %v1610 = vpack.c.b16 %v1609, %v1608
    %1612 = vst [vmem:[#allocation2 + $0x10] sm:$0xff] %v1610
    %v1613 = vld [vmem:[%s0 + $0x18] sm:$0xff]
    %v1615 = vunpack.c.l.b16 %v1613
    %v1616 = vunpack.c.h.b16 %v1613
    %v1617 = vpack.c.b16 %v1615, %v1615
    %v1618 = vpack.c.b16 %v1616, %v1616
    %1621 = vmatprep.subr.bf16.mxu0 %v849
    %1622 = vmatpush1.bf16.msra.mxu0 %v848
    %1623 = vmatprep.subr.bf16.mxu0 %v841
    %1624 = vmatpush1.bf16.msra.mxu0 %v840
    %1625 = vmatprep.subr.bf16.mxu0 %v833
    %1626 = vmatpush1.bf16.msra.mxu0 %v832
    %1627 = vmatprep.subr.bf16.mxu0 %v825
    %1628 = vmatpush1.bf16.msra.mxu0 %v824
    %1629 = vmatprep.subr.bf16.mxu0 %v817
    %1630 = vmatpush1.bf16.msra.mxu0 %v816
    %1631 = vmatprep.subr.bf16.mxu0 %v809
    %1632 = vmatpush1.bf16.msra.mxu0 %v808
    %1633 = vmatprep.subr.bf16.mxu0 %v801
    %1634 = vmatpush1.bf16.msra.mxu0 %v800
    %1635 = vmatprep.subr.bf16.mxu0 %v793
    %1636 = vmatpush1.bf16.msra.mxu0 %v792
    %1637 = vmatprep.subr.bf16.mxu0 %v913
    %1638 = vmatpush2.bf16.msra.mxu0 %v912
    %1639 = vmatprep.subr.bf16.mxu0 %v905
    %1640 = vmatpush2.bf16.msra.mxu0 %v904
    %1641 = vmatprep.subr.bf16.mxu0 %v897
    %1642 = vmatpush2.bf16.msra.mxu0 %v896
    %1643 = vmatprep.subr.bf16.mxu0 %v889
    %1644 = vmatpush2.bf16.msra.mxu0 %v888
    %1645 = vmatprep.subr.bf16.mxu0 %v881
    %1646 = vmatpush2.bf16.msra.mxu0 %v880
    %1647 = vmatprep.subr.bf16.mxu0 %v873
    %1648 = vmatpush2.bf16.msra.mxu0 %v872
    %1649 = vmatprep.subr.bf16.mxu0 %v865
    %1650 = vmatpush2.bf16.msra.mxu0 %v864
    %1651 = vmatprep.subr.bf16.mxu0 %v857
    %1652 = vmatpush2.bf16.msra.mxu0 %v856
    %1653 = vmatprep.mubr.bf16.mxu0 %v1618
    %1654 = vmatmul.mubr.bf16.gmra.mxu0 %v1617
    %v1655 = vpop.f32.mrf.mxu0
    %v1656 = vadd.f32 0.0, %v1655
    %v1657 = vpop.f32.mrf.mxu0
    %v1658 = vadd.f32 0.0, %v1657
    %v1659 = vpop.f32.mrf.mxu0
    %v1660 = vpop.f32.mrf.mxu0
    %1661 = vdwg.mxu0
    %1662 = vmatprep.subr.bf16.mxu0 %v851
    %1663 = vmatpush1.bf16.msra.mxu0 %v850
    %1664 = vmatprep.subr.bf16.mxu0 %v843
    %1665 = vmatpush1.bf16.msra.mxu0 %v842
    %1666 = vmatprep.subr.bf16.mxu0 %v835
    %1667 = vmatpush1.bf16.msra.mxu0 %v834
    %1668 = vmatprep.subr.bf16.mxu0 %v827
    %1669 = vmatpush1.bf16.msra.mxu0 %v826
    %1670 = vmatprep.subr.bf16.mxu0 %v819
    %1671 = vmatpush1.bf16.msra.mxu0 %v818
    %1672 = vmatprep.subr.bf16.mxu0 %v811
    %1673 = vmatpush1.bf16.msra.mxu0 %v810
    %1674 = vmatprep.subr.bf16.mxu0 %v803
    %1675 = vmatpush1.bf16.msra.mxu0 %v802
    %1676 = vmatprep.subr.bf16.mxu0 %v795
    %1677 = vmatpush1.bf16.msra.mxu0 %v794
    %1678 = vmatprep.subr.bf16.mxu0 %v915
    %1679 = vmatpush2.bf16.msra.mxu0 %v914
    %1680 = vmatprep.subr.bf16.mxu0 %v907
    %1681 = vmatpush2.bf16.msra.mxu0 %v906
    %1682 = vmatprep.subr.bf16.mxu0 %v899
    %1683 = vmatpush2.bf16.msra.mxu0 %v898
    %1684 = vmatprep.subr.bf16.mxu0 %v891
    %1685 = vmatpush2.bf16.msra.mxu0 %v890
    %1686 = vmatprep.subr.bf16.mxu0 %v883
    %1687 = vmatpush2.bf16.msra.mxu0 %v882
    %1688 = vmatprep.subr.bf16.mxu0 %v875
    %1689 = vmatpush2.bf16.msra.mxu0 %v874
    %1690 = vmatprep.subr.bf16.mxu0 %v867
    %1691 = vmatpush2.bf16.msra.mxu0 %v866
    %1692 = vmatprep.subr.bf16.mxu0 %v859
    %1693 = vmatpush2.bf16.msra.mxu0 %v858
    %1694 = vmatprep.mubr.bf16.mxu0 %v1618
    %1695 = vmatmul.mubr.bf16.gmra.mxu0 %v1617
    %v1696 = vpop.f32.mrf.mxu0
    %v1697 = vadd.f32 0.0, %v1696
    %v1698 = vpop.f32.mrf.mxu0
    %v1699 = vadd.f32 0.0, %v1698
    %v1700 = vpop.f32.mrf.mxu0
    %v1701 = vpop.f32.mrf.mxu0
    %1702 = vdwg.mxu0
    %1703 = vmatprep.subr.bf16.mxu0 %v853
    %1704 = vmatpush1.bf16.msra.mxu0 %v852
    %1705 = vmatprep.subr.bf16.mxu0 %v845
    %1706 = vmatpush1.bf16.msra.mxu0 %v844
    %1707 = vmatprep.subr.bf16.mxu0 %v837
    %1708 = vmatpush1.bf16.msra.mxu0 %v836
    %1709 = vmatprep.subr.bf16.mxu0 %v829
    %1710 = vmatpush1.bf16.msra.mxu0 %v828
    %1711 = vmatprep.subr.bf16.mxu0 %v821
    %1712 = vmatpush1.bf16.msra.mxu0 %v820
    %1713 = vmatprep.subr.bf16.mxu0 %v813
    %1714 = vmatpush1.bf16.msra.mxu0 %v812
    %1715 = vmatprep.subr.bf16.mxu0 %v805
    %1716 = vmatpush1.bf16.msra.mxu0 %v804
    %1717 = vmatprep.subr.bf16.mxu0 %v797
    %1718 = vmatpush1.bf16.msra.mxu0 %v796
    %1719 = vmatprep.subr.bf16.mxu0 %v917
    %1720 = vmatpush2.bf16.msra.mxu0 %v916
    %1721 = vmatprep.subr.bf16.mxu0 %v909
    %1722 = vmatpush2.bf16.msra.mxu0 %v908
    %1723 = vmatprep.subr.bf16.mxu0 %v901
    %1724 = vmatpush2.bf16.msra.mxu0 %v900
    %1725 = vmatprep.subr.bf16.mxu0 %v893
    %1726 = vmatpush2.bf16.msra.mxu0 %v892
    %1727 = vmatprep.subr.bf16.mxu0 %v885
    %1728 = vmatpush2.bf16.msra.mxu0 %v884
    %1729 = vmatprep.subr.bf16.mxu0 %v877
    %1730 = vmatpush2.bf16.msra.mxu0 %v876
    %1731 = vmatprep.subr.bf16.mxu0 %v869
    %1732 = vmatpush2.bf16.msra.mxu0 %v868
    %1733 = vmatprep.subr.bf16.mxu0 %v861
    %1734 = vmatpush2.bf16.msra.mxu0 %v860
    %1735 = vmatprep.mubr.bf16.mxu0 %v1618
    %1736 = vmatmul.mubr.bf16.gmra.mxu0 %v1617
    %v1737 = vpop.f32.mrf.mxu0
    %v1738 = vadd.f32 0.0, %v1737
    %v1739 = vpop.f32.mrf.mxu0
    %v1740 = vadd.f32 0.0, %v1739
    %v1741 = vpop.f32.mrf.mxu0
    %v1742 = vpop.f32.mrf.mxu0
    %1743 = vdwg.mxu0
    %1744 = vmatprep.subr.bf16.mxu0 %v855
    %1745 = vmatpush1.bf16.msra.mxu0 %v854
    %1746 = vmatprep.subr.bf16.mxu0 %v847
    %1747 = vmatpush1.bf16.msra.mxu0 %v846
    %1748 = vmatprep.subr.bf16.mxu0 %v839
    %1749 = vmatpush1.bf16.msra.mxu0 %v838
    %1750 = vmatprep.subr.bf16.mxu0 %v831
    %1751 = vmatpush1.bf16.msra.mxu0 %v830
    %1752 = vmatprep.subr.bf16.mxu0 %v823
    %1753 = vmatpush1.bf16.msra.mxu0 %v822
    %1754 = vmatprep.subr.bf16.mxu0 %v815
    %1755 = vmatpush1.bf16.msra.mxu0 %v814
    %1756 = vmatprep.subr.bf16.mxu0 %v807
    %1757 = vmatpush1.bf16.msra.mxu0 %v806
    %1758 = vmatprep.subr.bf16.mxu0 %v799
    %1759 = vmatpush1.bf16.msra.mxu0 %v798
    %1760 = vmatprep.subr.bf16.mxu0 %v919
    %1761 = vmatpush2.bf16.msra.mxu0 %v918
    %1762 = vmatprep.subr.bf16.mxu0 %v911
    %1763 = vmatpush2.bf16.msra.mxu0 %v910
    %1764 = vmatprep.subr.bf16.mxu0 %v903
    %1765 = vmatpush2.bf16.msra.mxu0 %v902
    %1766 = vmatprep.subr.bf16.mxu0 %v895
    %1767 = vmatpush2.bf16.msra.mxu0 %v894
    %1768 = vmatprep.subr.bf16.mxu0 %v887
    %1769 = vmatpush2.bf16.msra.mxu0 %v886
    %1770 = vmatprep.subr.bf16.mxu0 %v879
    %1771 = vmatpush2.bf16.msra.mxu0 %v878
    %1772 = vmatprep.subr.bf16.mxu0 %v871
    %1773 = vmatpush2.bf16.msra.mxu0 %v870
    %1774 = vmatprep.subr.bf16.mxu0 %v863
    %1775 = vmatpush2.bf16.msra.mxu0 %v862
    %1776 = vmatprep.mubr.bf16.mxu0 %v1618
    %1777 = vmatmul.mubr.bf16.gmra.mxu0 %v1617
    %v1778 = vpop.f32.mrf.mxu0
    %v1779 = vadd.f32 0.0, %v1778
    %v1780 = vpop.f32.mrf.mxu0
    %v1781 = vadd.f32 0.0, %v1780
    %v1782 = vpop.f32.mrf.mxu0
    %v1783 = vpop.f32.mrf.mxu0
    %1784 = vdwg.mxu0
    %v1785 = vmax.f32 %v1656, %v1697
    %v1786 = vmax.f32 %v1658, %v1699
    %v1787 = vmax.f32 %v1738, %v1779
    %v1788 = vmax.f32 %v1740, %v1781
    %v1789 = vmax.f32 %v1785, %v1787
    %v1790 = vmax.f32 %v1786, %v1788
    %v1791 = vadd.f32 %v1789, %v386
    %v1792 = vadd.f32 %v1790, %v390
    %v1793 = vmax.f32 %v1791, 0.0
    %v1794 = vmax.f32 %v1792, 0.0
    %v1795 = vpack.c.bf16 %v1793, %v1793
    %v1796 = vpack.c.bf16 %v1794, %v1794
    %v1799 = vunpack.c.l.b16 %v1795
    %v1800 = vunpack.c.l.b16 %v1796
    %v1801 = vpack.c.b16 %v1800, %v1799
    %1803 = vst [vmem:[#allocation2 + $0x18] sm:$0xff] %v1801
    %v1804 = vld [vmem:[%s0 + $0x20] sm:$0xff]
    %v1806 = vunpack.c.l.b16 %v1804
    %v1807 = vunpack.c.h.b16 %v1804
    %v1808 = vpack.c.b16 %v1806, %v1806
    %v1809 = vpack.c.b16 %v1807, %v1807
    %1812 = vmatprep.subr.bf16.mxu0 %v849
    %1813 = vmatpush1.bf16.msra.mxu0 %v848
    %1814 = vmatprep.subr.bf16.mxu0 %v841
    %1815 = vmatpush1.bf16.msra.mxu0 %v840
    %1816 = vmatprep.subr.bf16.mxu0 %v833
    %1817 = vmatpush1.bf16.msra.mxu0 %v832
    %1818 = vmatprep.subr.bf16.mxu0 %v825
    %1819 = vmatpush1.bf16.msra.mxu0 %v824
    %1820 = vmatprep.subr.bf16.mxu0 %v817
    %1821 = vmatpush1.bf16.msra.mxu0 %v816
    %1822 = vmatprep.subr.bf16.mxu0 %v809
    %1823 = vmatpush1.bf16.msra.mxu0 %v808
    %1824 = vmatprep.subr.bf16.mxu0 %v801
    %1825 = vmatpush1.bf16.msra.mxu0 %v800
    %1826 = vmatprep.subr.bf16.mxu0 %v793
    %1827 = vmatpush1.bf16.msra.mxu0 %v792
    %1828 = vmatprep.subr.bf16.mxu0 %v913
    %1829 = vmatpush2.bf16.msra.mxu0 %v912
    %1830 = vmatprep.subr.bf16.mxu0 %v905
    %1831 = vmatpush2.bf16.msra.mxu0 %v904
    %1832 = vmatprep.subr.bf16.mxu0 %v897
    %1833 = vmatpush2.bf16.msra.mxu0 %v896
    %1834 = vmatprep.subr.bf16.mxu0 %v889
    %1835 = vmatpush2.bf16.msra.mxu0 %v888
    %1836 = vmatprep.subr.bf16.mxu0 %v881
    %1837 = vmatpush2.bf16.msra.mxu0 %v880
    %1838 = vmatprep.subr.bf16.mxu0 %v873
    %1839 = vmatpush2.bf16.msra.mxu0 %v872
    %1840 = vmatprep.subr.bf16.mxu0 %v865
    %1841 = vmatpush2.bf16.msra.mxu0 %v864
    %1842 = vmatprep.subr.bf16.mxu0 %v857
    %1843 = vmatpush2.bf16.msra.mxu0 %v856
    %1844 = vmatprep.mubr.bf16.mxu0 %v1809
    %1845 = vmatmul.mubr.bf16.gmra.mxu0 %v1808
    %v1846 = vpop.f32.mrf.mxu0
    %v1847 = vadd.f32 0.0, %v1846
    %v1848 = vpop.f32.mrf.mxu0
    %v1849 = vadd.f32 0.0, %v1848
    %v1850 = vpop.f32.mrf.mxu0
    %v1851 = vpop.f32.mrf.mxu0
    %1852 = vdwg.mxu0
    %1853 = vmatprep.subr.bf16.mxu0 %v851
    %1854 = vmatpush1.bf16.msra.mxu0 %v850
    %1855 = vmatprep.subr.bf16.mxu0 %v843
    %1856 = vmatpush1.bf16.msra.mxu0 %v842
    %1857 = vmatprep.subr.bf16.mxu0 %v835
    %1858 = vmatpush1.bf16.msra.mxu0 %v834
    %1859 = vmatprep.subr.bf16.mxu0 %v827
    %1860 = vmatpush1.bf16.msra.mxu0 %v826
    %1861 = vmatprep.subr.bf16.mxu0 %v819
    %1862 = vmatpush1.bf16.msra.mxu0 %v818
    %1863 = vmatprep.subr.bf16.mxu0 %v811
    %1864 = vmatpush1.bf16.msra.mxu0 %v810
    %1865 = vmatprep.subr.bf16.mxu0 %v803
    %1866 = vmatpush1.bf16.msra.mxu0 %v802
    %1867 = vmatprep.subr.bf16.mxu0 %v795
    %1868 = vmatpush1.bf16.msra.mxu0 %v794
    %1869 = vmatprep.subr.bf16.mxu0 %v915
    %1870 = vmatpush2.bf16.msra.mxu0 %v914
    %1871 = vmatprep.subr.bf16.mxu0 %v907
    %1872 = vmatpush2.bf16.msra.mxu0 %v906
    %1873 = vmatprep.subr.bf16.mxu0 %v899
    %1874 = vmatpush2.bf16.msra.mxu0 %v898
    %1875 = vmatprep.subr.bf16.mxu0 %v891
    %1876 = vmatpush2.bf16.msra.mxu0 %v890
    %1877 = vmatprep.subr.bf16.mxu0 %v883
    %1878 = vmatpush2.bf16.msra.mxu0 %v882
    %1879 = vmatprep.subr.bf16.mxu0 %v875
    %1880 = vmatpush2.bf16.msra.mxu0 %v874
    %1881 = vmatprep.subr.bf16.mxu0 %v867
    %1882 = vmatpush2.bf16.msra.mxu0 %v866
    %1883 = vmatprep.subr.bf16.mxu0 %v859
    %1884 = vmatpush2.bf16.msra.mxu0 %v858
    %1885 = vmatprep.mubr.bf16.mxu0 %v1809
    %1886 = vmatmul.mubr.bf16.gmra.mxu0 %v1808
    %v1887 = vpop.f32.mrf.mxu0
    %v1888 = vadd.f32 0.0, %v1887
    %v1889 = vpop.f32.mrf.mxu0
    %v1890 = vadd.f32 0.0, %v1889
    %v1891 = vpop.f32.mrf.mxu0
    %v1892 = vpop.f32.mrf.mxu0
    %1893 = vdwg.mxu0
    %1894 = vmatprep.subr.bf16.mxu0 %v853
    %1895 = vmatpush1.bf16.msra.mxu0 %v852
    %1896 = vmatprep.subr.bf16.mxu0 %v845
    %1897 = vmatpush1.bf16.msra.mxu0 %v844
    %1898 = vmatprep.subr.bf16.mxu0 %v837
    %1899 = vmatpush1.bf16.msra.mxu0 %v836
    %1900 = vmatprep.subr.bf16.mxu0 %v829
    %1901 = vmatpush1.bf16.msra.mxu0 %v828
    %1902 = vmatprep.subr.bf16.mxu0 %v821
    %1903 = vmatpush1.bf16.msra.mxu0 %v820
    %1904 = vmatprep.subr.bf16.mxu0 %v813
    %1905 = vmatpush1.bf16.msra.mxu0 %v812
    %1906 = vmatprep.subr.bf16.mxu0 %v805
    %1907 = vmatpush1.bf16.msra.mxu0 %v804
    %1908 = vmatprep.subr.bf16.mxu0 %v797
    %1909 = vmatpush1.bf16.msra.mxu0 %v796
    %1910 = vmatprep.subr.bf16.mxu0 %v917
    %1911 = vmatpush2.bf16.msra.mxu0 %v916
    %1912 = vmatprep.subr.bf16.mxu0 %v909
    %1913 = vmatpush2.bf16.msra.mxu0 %v908
    %1914 = vmatprep.subr.bf16.mxu0 %v901
    %1915 = vmatpush2.bf16.msra.mxu0 %v900
    %1916 = vmatprep.subr.bf16.mxu0 %v893
    %1917 = vmatpush2.bf16.msra.mxu0 %v892
    %1918 = vmatprep.subr.bf16.mxu0 %v885
    %1919 = vmatpush2.bf16.msra.mxu0 %v884
    %1920 = vmatprep.subr.bf16.mxu0 %v877
    %1921 = vmatpush2.bf16.msra.mxu0 %v876
    %1922 = vmatprep.subr.bf16.mxu0 %v869
    %1923 = vmatpush2.bf16.msra.mxu0 %v868
    %1924 = vmatprep.subr.bf16.mxu0 %v861
    %1925 = vmatpush2.bf16.msra.mxu0 %v860
    %1926 = vmatprep.mubr.bf16.mxu0 %v1809
    %1927 = vmatmul.mubr.bf16.gmra.mxu0 %v1808
    %v1928 = vpop.f32.mrf.mxu0
    %v1929 = vadd.f32 0.0, %v1928
    %v1930 = vpop.f32.mrf.mxu0
    %v1931 = vadd.f32 0.0, %v1930
    %v1932 = vpop.f32.mrf.mxu0
    %v1933 = vpop.f32.mrf.mxu0
    %1934 = vdwg.mxu0
    %1935 = vmatprep.subr.bf16.mxu0 %v855
    %1936 = vmatpush1.bf16.msra.mxu0 %v854
    %1937 = vmatprep.subr.bf16.mxu0 %v847
    %1938 = vmatpush1.bf16.msra.mxu0 %v846
    %1939 = vmatprep.subr.bf16.mxu0 %v839
    %1940 = vmatpush1.bf16.msra.mxu0 %v838
    %1941 = vmatprep.subr.bf16.mxu0 %v831
    %1942 = vmatpush1.bf16.msra.mxu0 %v830
    %1943 = vmatprep.subr.bf16.mxu0 %v823
    %1944 = vmatpush1.bf16.msra.mxu0 %v822
    %1945 = vmatprep.subr.bf16.mxu0 %v815
    %1946 = vmatpush1.bf16.msra.mxu0 %v814
    %1947 = vmatprep.subr.bf16.mxu0 %v807
    %1948 = vmatpush1.bf16.msra.mxu0 %v806
    %1949 = vmatprep.subr.bf16.mxu0 %v799
    %1950 = vmatpush1.bf16.msra.mxu0 %v798
    %1951 = vmatprep.subr.bf16.mxu0 %v919
    %1952 = vmatpush2.bf16.msra.mxu0 %v918
    %1953 = vmatprep.subr.bf16.mxu0 %v911
    %1954 = vmatpush2.bf16.msra.mxu0 %v910
    %1955 = vmatprep.subr.bf16.mxu0 %v903
    %1956 = vmatpush2.bf16.msra.mxu0 %v902
    %1957 = vmatprep.subr.bf16.mxu0 %v895
    %1958 = vmatpush2.bf16.msra.mxu0 %v894
    %1959 = vmatprep.subr.bf16.mxu0 %v887
    %1960 = vmatpush2.bf16.msra.mxu0 %v886
    %1961 = vmatprep.subr.bf16.mxu0 %v879
    %1962 = vmatpush2.bf16.msra.mxu0 %v878
    %1963 = vmatprep.subr.bf16.mxu0 %v871
    %1964 = vmatpush2.bf16.msra.mxu0 %v870
    %1965 = vmatprep.subr.bf16.mxu0 %v863
    %1966 = vmatpush2.bf16.msra.mxu0 %v862
    %1967 = vmatprep.mubr.bf16.mxu0 %v1809
    %1968 = vmatmul.mubr.bf16.gmra.mxu0 %v1808
    %v1969 = vpop.f32.mrf.mxu0
    %v1970 = vadd.f32 0.0, %v1969
    %v1971 = vpop.f32.mrf.mxu0
    %v1972 = vadd.f32 0.0, %v1971
    %v1973 = vpop.f32.mrf.mxu0
    %v1974 = vpop.f32.mrf.mxu0
    %1975 = vdwg.mxu0
    %v1976 = vmax.f32 %v1847, %v1888
    %v1977 = vmax.f32 %v1849, %v1890
    %v1978 = vmax.f32 %v1929, %v1970
    %v1979 = vmax.f32 %v1931, %v1972
    %v1980 = vmax.f32 %v1976, %v1978
    %v1981 = vmax.f32 %v1977, %v1979
    %v1982 = vadd.f32 %v1980, %v386
    %v1983 = vadd.f32 %v1981, %v390
    %v1984 = vmax.f32 %v1982, 0.0
    %v1985 = vmax.f32 %v1983, 0.0
    %v1986 = vpack.c.bf16 %v1984, %v1984
    %v1987 = vpack.c.bf16 %v1985, %v1985
    %v1990 = vunpack.c.l.b16 %v1986
    %v1991 = vunpack.c.l.b16 %v1987
    %v1992 = vpack.c.b16 %v1991, %v1990
    %1994 = vst [vmem:[#allocation2 + $0x20] sm:$0xff] %v1992
    %v1995 = vld [vmem:[%s0 + $0x28] sm:$0xff]
    %v1997 = vunpack.c.l.b16 %v1995
    %v1998 = vunpack.c.h.b16 %v1995
    %v1999 = vpack.c.b16 %v1997, %v1997
    %v2000 = vpack.c.b16 %v1998, %v1998
    %2003 = vmatprep.subr.bf16.mxu0 %v849
    %2004 = vmatpush1.bf16.msra.mxu0 %v848
    %2005 = vmatprep.subr.bf16.mxu0 %v841
    %2006 = vmatpush1.bf16.msra.mxu0 %v840
    %2007 = vmatprep.subr.bf16.mxu0 %v833
    %2008 = vmatpush1.bf16.msra.mxu0 %v832
    %2009 = vmatprep.subr.bf16.mxu0 %v825
    %2010 = vmatpush1.bf16.msra.mxu0 %v824
    %2011 = vmatprep.subr.bf16.mxu0 %v817
    %2012 = vmatpush1.bf16.msra.mxu0 %v816
    %2013 = vmatprep.subr.bf16.mxu0 %v809
    %2014 = vmatpush1.bf16.msra.mxu0 %v808
    %2015 = vmatprep.subr.bf16.mxu0 %v801
    %2016 = vmatpush1.bf16.msra.mxu0 %v800
    %2017 = vmatprep.subr.bf16.mxu0 %v793
    %2018 = vmatpush1.bf16.msra.mxu0 %v792
    %2019 = vmatprep.subr.bf16.mxu0 %v913
    %2020 = vmatpush2.bf16.msra.mxu0 %v912
    %2021 = vmatprep.subr.bf16.mxu0 %v905
    %2022 = vmatpush2.bf16.msra.mxu0 %v904
    %2023 = vmatprep.subr.bf16.mxu0 %v897
    %2024 = vmatpush2.bf16.msra.mxu0 %v896
    %2025 = vmatprep.subr.bf16.mxu0 %v889
    %2026 = vmatpush2.bf16.msra.mxu0 %v888
    %2027 = vmatprep.subr.bf16.mxu0 %v881
    %2028 = vmatpush2.bf16.msra.mxu0 %v880
    %2029 = vmatprep.subr.bf16.mxu0 %v873
    %2030 = vmatpush2.bf16.msra.mxu0 %v872
    %2031 = vmatprep.subr.bf16.mxu0 %v865
    %2032 = vmatpush2.bf16.msra.mxu0 %v864
    %2033 = vmatprep.subr.bf16.mxu0 %v857
    %2034 = vmatpush2.bf16.msra.mxu0 %v856
    %2035 = vmatprep.mubr.bf16.mxu0 %v2000
    %2036 = vmatmul.mubr.bf16.gmra.mxu0 %v1999
    %v2037 = vpop.f32.mrf.mxu0
    %v2038 = vadd.f32 0.0, %v2037
    %v2039 = vpop.f32.mrf.mxu0
    %v2040 = vadd.f32 0.0, %v2039
    %v2041 = vpop.f32.mrf.mxu0
    %v2042 = vpop.f32.mrf.mxu0
    %2043 = vdwg.mxu0
    %2044 = vmatprep.subr.bf16.mxu0 %v851
    %2045 = vmatpush1.bf16.msra.mxu0 %v850
    %2046 = vmatprep.subr.bf16.mxu0 %v843
    %2047 = vmatpush1.bf16.msra.mxu0 %v842
    %2048 = vmatprep.subr.bf16.mxu0 %v835
    %2049 = vmatpush1.bf16.msra.mxu0 %v834
    %2050 = vmatprep.subr.bf16.mxu0 %v827
    %2051 = vmatpush1.bf16.msra.mxu0 %v826
    %2052 = vmatprep.subr.bf16.mxu0 %v819
    %2053 = vmatpush1.bf16.msra.mxu0 %v818
    %2054 = vmatprep.subr.bf16.mxu0 %v811
    %2055 = vmatpush1.bf16.msra.mxu0 %v810
    %2056 = vmatprep.subr.bf16.mxu0 %v803
    %2057 = vmatpush1.bf16.msra.mxu0 %v802
    %2058 = vmatprep.subr.bf16.mxu0 %v795
    %2059 = vmatpush1.bf16.msra.mxu0 %v794
    %2060 = vmatprep.subr.bf16.mxu0 %v915
    %2061 = vmatpush2.bf16.msra.mxu0 %v914
    %2062 = vmatprep.subr.bf16.mxu0 %v907
    %2063 = vmatpush2.bf16.msra.mxu0 %v906
    %2064 = vmatprep.subr.bf16.mxu0 %v899
    %2065 = vmatpush2.bf16.msra.mxu0 %v898
    %2066 = vmatprep.subr.bf16.mxu0 %v891
    %2067 = vmatpush2.bf16.msra.mxu0 %v890
    %2068 = vmatprep.subr.bf16.mxu0 %v883
    %2069 = vmatpush2.bf16.msra.mxu0 %v882
    %2070 = vmatprep.subr.bf16.mxu0 %v875
    %2071 = vmatpush2.bf16.msra.mxu0 %v874
    %2072 = vmatprep.subr.bf16.mxu0 %v867
    %2073 = vmatpush2.bf16.msra.mxu0 %v866
    %2074 = vmatprep.subr.bf16.mxu0 %v859
    %2075 = vmatpush2.bf16.msra.mxu0 %v858
    %2076 = vmatprep.mubr.bf16.mxu0 %v2000
    %2077 = vmatmul.mubr.bf16.gmra.mxu0 %v1999
    %v2078 = vpop.f32.mrf.mxu0
    %v2079 = vadd.f32 0.0, %v2078
    %v2080 = vpop.f32.mrf.mxu0
    %v2081 = vadd.f32 0.0, %v2080
    %v2082 = vpop.f32.mrf.mxu0
    %v2083 = vpop.f32.mrf.mxu0
    %2084 = vdwg.mxu0
    %2085 = vmatprep.subr.bf16.mxu0 %v853
    %2086 = vmatpush1.bf16.msra.mxu0 %v852
    %2087 = vmatprep.subr.bf16.mxu0 %v845
    %2088 = vmatpush1.bf16.msra.mxu0 %v844
    %2089 = vmatprep.subr.bf16.mxu0 %v837
    %2090 = vmatpush1.bf16.msra.mxu0 %v836
    %2091 = vmatprep.subr.bf16.mxu0 %v829
    %2092 = vmatpush1.bf16.msra.mxu0 %v828
    %2093 = vmatprep.subr.bf16.mxu0 %v821
    %2094 = vmatpush1.bf16.msra.mxu0 %v820
    %2095 = vmatprep.subr.bf16.mxu0 %v813
    %2096 = vmatpush1.bf16.msra.mxu0 %v812
    %2097 = vmatprep.subr.bf16.mxu0 %v805
    %2098 = vmatpush1.bf16.msra.mxu0 %v804
    %2099 = vmatprep.subr.bf16.mxu0 %v797
    %2100 = vmatpush1.bf16.msra.mxu0 %v796
    %2101 = vmatprep.subr.bf16.mxu0 %v917
    %2102 = vmatpush2.bf16.msra.mxu0 %v916
    %2103 = vmatprep.subr.bf16.mxu0 %v909
    %2104 = vmatpush2.bf16.msra.mxu0 %v908
    %2105 = vmatprep.subr.bf16.mxu0 %v901
    %2106 = vmatpush2.bf16.msra.mxu0 %v900
    %2107 = vmatprep.subr.bf16.mxu0 %v893
    %2108 = vmatpush2.bf16.msra.mxu0 %v892
    %2109 = vmatprep.subr.bf16.mxu0 %v885
    %2110 = vmatpush2.bf16.msra.mxu0 %v884
    %2111 = vmatprep.subr.bf16.mxu0 %v877
    %2112 = vmatpush2.bf16.msra.mxu0 %v876
    %2113 = vmatprep.subr.bf16.mxu0 %v869
    %2114 = vmatpush2.bf16.msra.mxu0 %v868
    %2115 = vmatprep.subr.bf16.mxu0 %v861
    %2116 = vmatpush2.bf16.msra.mxu0 %v860
    %2117 = vmatprep.mubr.bf16.mxu0 %v2000
    %2118 = vmatmul.mubr.bf16.gmra.mxu0 %v1999
    %v2119 = vpop.f32.mrf.mxu0
    %v2120 = vadd.f32 0.0, %v2119
    %v2121 = vpop.f32.mrf.mxu0
    %v2122 = vadd.f32 0.0, %v2121
    %v2123 = vpop.f32.mrf.mxu0
    %v2124 = vpop.f32.mrf.mxu0
    %2125 = vdwg.mxu0
    %2126 = vmatprep.subr.bf16.mxu0 %v855
    %2127 = vmatpush1.bf16.msra.mxu0 %v854
    %2128 = vmatprep.subr.bf16.mxu0 %v847
    %2129 = vmatpush1.bf16.msra.mxu0 %v846
    %2130 = vmatprep.subr.bf16.mxu0 %v839
    %2131 = vmatpush1.bf16.msra.mxu0 %v838
    %2132 = vmatprep.subr.bf16.mxu0 %v831
    %2133 = vmatpush1.bf16.msra.mxu0 %v830
    %2134 = vmatprep.subr.bf16.mxu0 %v823
    %2135 = vmatpush1.bf16.msra.mxu0 %v822
    %2136 = vmatprep.subr.bf16.mxu0 %v815
    %2137 = vmatpush1.bf16.msra.mxu0 %v814
    %2138 = vmatprep.subr.bf16.mxu0 %v807
    %2139 = vmatpush1.bf16.msra.mxu0 %v806
    %2140 = vmatprep.subr.bf16.mxu0 %v799
    %2141 = vmatpush1.bf16.msra.mxu0 %v798
    %2142 = vmatprep.subr.bf16.mxu0 %v919
    %2143 = vmatpush2.bf16.msra.mxu0 %v918
    %2144 = vmatprep.subr.bf16.mxu0 %v911
    %2145 = vmatpush2.bf16.msra.mxu0 %v910
    %2146 = vmatprep.subr.bf16.mxu0 %v903
    %2147 = vmatpush2.bf16.msra.mxu0 %v902
    %2148 = vmatprep.subr.bf16.mxu0 %v895
    %2149 = vmatpush2.bf16.msra.mxu0 %v894
    %2150 = vmatprep.subr.bf16.mxu0 %v887
    %2151 = vmatpush2.bf16.msra.mxu0 %v886
    %2152 = vmatprep.subr.bf16.mxu0 %v879
    %2153 = vmatpush2.bf16.msra.mxu0 %v878
    %2154 = vmatprep.subr.bf16.mxu0 %v871
    %2155 = vmatpush2.bf16.msra.mxu0 %v870
    %2156 = vmatprep.subr.bf16.mxu0 %v863
    %2157 = vmatpush2.bf16.msra.mxu0 %v862
    %2158 = vmatprep.mubr.bf16.mxu0 %v2000
    %2159 = vmatmul.mubr.bf16.gmra.mxu0 %v1999
    %v2160 = vpop.f32.mrf.mxu0
    %v2161 = vadd.f32 0.0, %v2160
    %v2162 = vpop.f32.mrf.mxu0
    %v2163 = vadd.f32 0.0, %v2162
    %v2164 = vpop.f32.mrf.mxu0
    %v2165 = vpop.f32.mrf.mxu0
    %2166 = vdwg.mxu0
    %v2167 = vmax.f32 %v2038, %v2079
    %v2168 = vmax.f32 %v2040, %v2081
    %v2169 = vmax.f32 %v2120, %v2161
    %v2170 = vmax.f32 %v2122, %v2163
    %v2171 = vmax.f32 %v2167, %v2169
    %v2172 = vmax.f32 %v2168, %v2170
    %v2173 = vadd.f32 %v2171, %v386
    %v2174 = vadd.f32 %v2172, %v390
    %v2175 = vmax.f32 %v2173, 0.0
    %v2176 = vmax.f32 %v2174, 0.0
    %v2177 = vpack.c.bf16 %v2175, %v2175
    %v2178 = vpack.c.bf16 %v2176, %v2176
    %v2181 = vunpack.c.l.b16 %v2177
    %v2182 = vunpack.c.l.b16 %v2178
    %v2183 = vpack.c.b16 %v2182, %v2181
    %2185 = vst [vmem:[#allocation2 + $0x28] sm:$0xff] %v2183
    %v2186 = vld [vmem:[#allocation2] sm:$0xff]
    %v2187 = vld [vmem:[#allocation2 + $0x8] sm:$0xff]
    %v2188 = vld [vmem:[#allocation2 + $0x10] sm:$0xff]
    %v2192 = vunpack.c.l.b16 %v2186
    %v2193 = vunpack.c.h.b16 %v2186
    %v2194 = vunpack.c.l.b16 %v2187
    %v2195 = vunpack.c.h.b16 %v2187
    %v2196 = vunpack.c.l.b16 %v2188
    %v2197 = vunpack.c.h.b16 %v2188
    %v2198 = vpack.c.b16 %v2192, %v2192
    %v2199 = vpack.c.b16 %v2193, %v2193
    %v2200 = vpack.c.b16 %v2194, %v2194
    %v2201 = vpack.c.b16 %v2195, %v2195
    %v2202 = vpack.c.b16 %v2196, %v2196
    %v2203 = vpack.c.b16 %v2197, %v2197
    %v2402 = vunpack.c.l.b16 %v189
    %v2403 = vunpack.c.h.b16 %v189
    %v2404 = vunpack.c.l.b16 %v190
    %v2405 = vunpack.c.h.b16 %v190
    %v2406 = vunpack.c.l.b16 %v191
    %v2407 = vunpack.c.h.b16 %v191
    %v2408 = vunpack.c.l.b16 %v192
    %v2409 = vunpack.c.h.b16 %v192
    %v2410 = vunpack.c.l.b16 %v193
    %v2411 = vunpack.c.h.b16 %v193
    %v2412 = vunpack.c.l.b16 %v194
    %v2413 = vunpack.c.h.b16 %v194
    %v2414 = vunpack.c.l.b16 %v195
    %v2415 = vunpack.c.h.b16 %v195
    %v2416 = vunpack.c.l.b16 %v196
    %v2417 = vunpack.c.h.b16 %v196
    %v2418 = vunpack.c.l.b16 %v197
    %v2419 = vunpack.c.h.b16 %v197
    %v2420 = vunpack.c.l.b16 %v198
    %v2421 = vunpack.c.h.b16 %v198
    %v2422 = vunpack.c.l.b16 %v199
    %v2423 = vunpack.c.h.b16 %v199
    %v2424 = vunpack.c.l.b16 %v200
    %v2425 = vunpack.c.h.b16 %v200
    %v2426 = vunpack.c.l.b16 %v201
    %v2427 = vunpack.c.h.b16 %v201
    %v2428 = vunpack.c.l.b16 %v202
    %v2429 = vunpack.c.h.b16 %v202
    %v2430 = vunpack.c.l.b16 %v203
    %v2431 = vunpack.c.h.b16 %v203
    %v2432 = vunpack.c.l.b16 %v204
    %v2433 = vunpack.c.h.b16 %v204
    %v2434 = vunpack.c.l.b16 %v205
    %v2435 = vunpack.c.h.b16 %v205
    %v2436 = vunpack.c.l.b16 %v206
    %v2437 = vunpack.c.h.b16 %v206
    %v2438 = vunpack.c.l.b16 %v207
    %v2439 = vunpack.c.h.b16 %v207
    %v2440 = vunpack.c.l.b16 %v208
    %v2441 = vunpack.c.h.b16 %v208
    %v2442 = vunpack.c.l.b16 %v209
    %v2443 = vunpack.c.h.b16 %v209
    %v2444 = vunpack.c.l.b16 %v210
    %v2445 = vunpack.c.h.b16 %v210
    %v2446 = vunpack.c.l.b16 %v211
    %v2447 = vunpack.c.h.b16 %v211
    %v2448 = vunpack.c.l.b16 %v212
    %v2449 = vunpack.c.h.b16 %v212
    %v2450 = vunpack.c.l.b16 %v213
    %v2451 = vunpack.c.h.b16 %v213
    %v2452 = vunpack.c.l.b16 %v214
    %v2453 = vunpack.c.h.b16 %v214
    %v2454 = vunpack.c.l.b16 %v215
    %v2455 = vunpack.c.h.b16 %v215
    %v2456 = vunpack.c.l.b16 %v216
    %v2457 = vunpack.c.h.b16 %v216
    %v2458 = vunpack.c.l.b16 %v217
    %v2459 = vunpack.c.h.b16 %v217
    %v2460 = vunpack.c.l.b16 %v218
    %v2461 = vunpack.c.h.b16 %v218
    %v2462 = vunpack.c.l.b16 %v219
    %v2463 = vunpack.c.h.b16 %v219
    %v2464 = vunpack.c.l.b16 %v220
    %v2465 = vunpack.c.h.b16 %v220
    %v2466 = vunpack.c.l.b16 %v221
    %v2467 = vunpack.c.h.b16 %v221
    %v2468 = vunpack.c.l.b16 %v222
    %v2469 = vunpack.c.h.b16 %v222
    %v2470 = vunpack.c.l.b16 %v223
    %v2471 = vunpack.c.h.b16 %v223
    %v2472 = vunpack.c.l.b16 %v224
    %v2473 = vunpack.c.h.b16 %v224
    %v2474 = vunpack.c.l.b16 %v225
    %v2475 = vunpack.c.h.b16 %v225
    %v2476 = vunpack.c.l.b16 %v226
    %v2477 = vunpack.c.h.b16 %v226
    %v2478 = vunpack.c.l.b16 %v227
    %v2479 = vunpack.c.h.b16 %v227
    %v2480 = vunpack.c.l.b16 %v228
    %v2481 = vunpack.c.h.b16 %v228
    %v2482 = vunpack.c.l.b16 %v229
    %v2483 = vunpack.c.h.b16 %v229
    %v2484 = vunpack.c.l.b16 %v230
    %v2485 = vunpack.c.h.b16 %v230
    %v2486 = vunpack.c.l.b16 %v231
    %v2487 = vunpack.c.h.b16 %v231
    %v2488 = vunpack.c.l.b16 %v232
    %v2489 = vunpack.c.h.b16 %v232
    %v2490 = vunpack.c.l.b16 %v233
    %v2491 = vunpack.c.h.b16 %v233
    %v2492 = vunpack.c.l.b16 %v234
    %v2493 = vunpack.c.h.b16 %v234
    %v2494 = vunpack.c.l.b16 %v235
    %v2495 = vunpack.c.h.b16 %v235
    %v2496 = vunpack.c.l.b16 %v236
    %v2497 = vunpack.c.h.b16 %v236
    %v2498 = vunpack.c.l.b16 %v237
    %v2499 = vunpack.c.h.b16 %v237
    %v2500 = vunpack.c.l.b16 %v238
    %v2501 = vunpack.c.h.b16 %v238
    %v2502 = vunpack.c.l.b16 %v239
    %v2503 = vunpack.c.h.b16 %v239
    %v2504 = vunpack.c.l.b16 %v240
    %v2505 = vunpack.c.h.b16 %v240
    %v2506 = vunpack.c.l.b16 %v241
    %v2507 = vunpack.c.h.b16 %v241
    %v2508 = vunpack.c.l.b16 %v242
    %v2509 = vunpack.c.h.b16 %v242
    %v2510 = vunpack.c.l.b16 %v243
    %v2511 = vunpack.c.h.b16 %v243
    %v2512 = vunpack.c.l.b16 %v244
    %v2513 = vunpack.c.h.b16 %v244
    %v2514 = vunpack.c.l.b16 %v245
    %v2515 = vunpack.c.h.b16 %v245
    %v2516 = vunpack.c.l.b16 %v246
    %v2517 = vunpack.c.h.b16 %v246
    %v2518 = vunpack.c.l.b16 %v247
    %v2519 = vunpack.c.h.b16 %v247
    %v2520 = vunpack.c.l.b16 %v248
    %v2521 = vunpack.c.h.b16 %v248
    %v2522 = vunpack.c.l.b16 %v249
    %v2523 = vunpack.c.h.b16 %v249
    %v2524 = vunpack.c.l.b16 %v250
    %v2525 = vunpack.c.h.b16 %v250
    %v2526 = vunpack.c.l.b16 %v251
    %v2527 = vunpack.c.h.b16 %v251
    %v2528 = vunpack.c.l.b16 %v252
    %v2529 = vunpack.c.h.b16 %v252
    %v2530 = vunpack.c.l.b16 %v253
    %v2531 = vunpack.c.h.b16 %v253
    %v2532 = vunpack.c.l.b16 %v254
    %v2533 = vunpack.c.h.b16 %v254
    %v2534 = vunpack.c.l.b16 %v255
    %v2535 = vunpack.c.h.b16 %v255
    %v2536 = vunpack.c.l.b16 %v256
    %v2537 = vunpack.c.h.b16 %v256
    %v2538 = vunpack.c.l.b16 %v257
    %v2539 = vunpack.c.h.b16 %v257
    %v2540 = vunpack.c.l.b16 %v258
    %v2541 = vunpack.c.h.b16 %v258
    %v2542 = vunpack.c.l.b16 %v259
    %v2543 = vunpack.c.h.b16 %v259
    %v2544 = vunpack.c.l.b16 %v260
    %v2545 = vunpack.c.h.b16 %v260
    %v2546 = vunpack.c.l.b16 %v261
    %v2547 = vunpack.c.h.b16 %v261
    %v2548 = vunpack.c.l.b16 %v262
    %v2549 = vunpack.c.h.b16 %v262
    %v2550 = vunpack.c.l.b16 %v263
    %v2551 = vunpack.c.h.b16 %v263
    %v2552 = vunpack.c.l.b16 %v264
    %v2553 = vunpack.c.h.b16 %v264
    %v2554 = vunpack.c.l.b16 %v265
    %v2555 = vunpack.c.h.b16 %v265
    %v2556 = vunpack.c.l.b16 %v266
    %v2557 = vunpack.c.h.b16 %v266
    %v2558 = vunpack.c.l.b16 %v267
    %v2559 = vunpack.c.h.b16 %v267
    %v2560 = vunpack.c.l.b16 %v268
    %v2561 = vunpack.c.h.b16 %v268
    %v2562 = vunpack.c.l.b16 %v269
    %v2563 = vunpack.c.h.b16 %v269
    %v2564 = vunpack.c.l.b16 %v270
    %v2565 = vunpack.c.h.b16 %v270
    %v2566 = vunpack.c.l.b16 %v271
    %v2567 = vunpack.c.h.b16 %v271
    %v2568 = vunpack.c.l.b16 %v272
    %v2569 = vunpack.c.h.b16 %v272
    %v2570 = vunpack.c.l.b16 %v273
    %v2571 = vunpack.c.h.b16 %v273
    %v2572 = vunpack.c.l.b16 %v274
    %v2573 = vunpack.c.h.b16 %v274
    %v2574 = vunpack.c.l.b16 %v275
    %v2575 = vunpack.c.h.b16 %v275
    %v2576 = vunpack.c.l.b16 %v276
    %v2577 = vunpack.c.h.b16 %v276
    %v2578 = vunpack.c.l.b16 %v277
    %v2579 = vunpack.c.h.b16 %v277
    %v2580 = vunpack.c.l.b16 %v278
    %v2581 = vunpack.c.h.b16 %v278
    %v2582 = vunpack.c.l.b16 %v279
    %v2583 = vunpack.c.h.b16 %v279
    %v2584 = vunpack.c.l.b16 %v280
    %v2585 = vunpack.c.h.b16 %v280
    %v2586 = vunpack.c.l.b16 %v281
    %v2587 = vunpack.c.h.b16 %v281
    %v2588 = vunpack.c.l.b16 %v282
    %v2589 = vunpack.c.h.b16 %v282
    %v2590 = vunpack.c.l.b16 %v283
    %v2591 = vunpack.c.h.b16 %v283
    %v2592 = vunpack.c.l.b16 %v284
    %v2593 = vunpack.c.h.b16 %v284
    %v2594 = vunpack.c.l.b16 %v285
    %v2595 = vunpack.c.h.b16 %v285
    %v2596 = vunpack.c.l.b16 %v286
    %v2597 = vunpack.c.h.b16 %v286
    %v2598 = vunpack.c.l.b16 %v287
    %v2599 = vunpack.c.h.b16 %v287
    %v2600 = vunpack.c.l.b16 %v288
    %v2601 = vunpack.c.h.b16 %v288
    %v2602 = vunpack.c.l.b16 %v289
    %v2603 = vunpack.c.h.b16 %v289
    %v2604 = vunpack.c.l.b16 %v290
    %v2605 = vunpack.c.h.b16 %v290
    %v2606 = vunpack.c.l.b16 %v291
    %v2607 = vunpack.c.h.b16 %v291
    %v2608 = vunpack.c.l.b16 %v292
    %v2609 = vunpack.c.h.b16 %v292
    %v2610 = vunpack.c.l.b16 %v293
    %v2611 = vunpack.c.h.b16 %v293
    %v2612 = vunpack.c.l.b16 %v294
    %v2613 = vunpack.c.h.b16 %v294
    %v2614 = vunpack.c.l.b16 %v295
    %v2615 = vunpack.c.h.b16 %v295
    %v2616 = vunpack.c.l.b16 %v296
    %v2617 = vunpack.c.h.b16 %v296
    %v2618 = vunpack.c.l.b16 %v297
    %v2619 = vunpack.c.h.b16 %v297
    %v2620 = vunpack.c.l.b16 %v298
    %v2621 = vunpack.c.h.b16 %v298
    %v2622 = vunpack.c.l.b16 %v299
    %v2623 = vunpack.c.h.b16 %v299
    %v2624 = vunpack.c.l.b16 %v300
    %v2625 = vunpack.c.h.b16 %v300
    %v2626 = vunpack.c.l.b16 %v301
    %v2627 = vunpack.c.h.b16 %v301
    %v2628 = vunpack.c.l.b16 %v302
    %v2629 = vunpack.c.h.b16 %v302
    %v2630 = vunpack.c.l.b16 %v303
    %v2631 = vunpack.c.h.b16 %v303
    %v2632 = vunpack.c.l.b16 %v304
    %v2633 = vunpack.c.h.b16 %v304
    %v2634 = vunpack.c.l.b16 %v305
    %v2635 = vunpack.c.h.b16 %v305
    %v2636 = vunpack.c.l.b16 %v306
    %v2637 = vunpack.c.h.b16 %v306
    %v2638 = vunpack.c.l.b16 %v307
    %v2639 = vunpack.c.h.b16 %v307
    %v2640 = vunpack.c.l.b16 %v308
    %v2641 = vunpack.c.h.b16 %v308
    %v2642 = vunpack.c.l.b16 %v309
    %v2643 = vunpack.c.h.b16 %v309
    %v2644 = vunpack.c.l.b16 %v310
    %v2645 = vunpack.c.h.b16 %v310
    %v2646 = vunpack.c.l.b16 %v311
    %v2647 = vunpack.c.h.b16 %v311
    %v2648 = vunpack.c.l.b16 %v312
    %v2649 = vunpack.c.h.b16 %v312
    %v2650 = vunpack.c.l.b16 %v313
    %v2651 = vunpack.c.h.b16 %v313
    %v2652 = vunpack.c.l.b16 %v314
    %v2653 = vunpack.c.h.b16 %v314
    %v2654 = vunpack.c.l.b16 %v315
    %v2655 = vunpack.c.h.b16 %v315
    %v2656 = vunpack.c.l.b16 %v316
    %v2657 = vunpack.c.h.b16 %v316
    %v2658 = vunpack.c.l.b16 %v317
    %v2659 = vunpack.c.h.b16 %v317
    %v2660 = vunpack.c.l.b16 %v318
    %v2661 = vunpack.c.h.b16 %v318
    %v2662 = vunpack.c.l.b16 %v319
    %v2663 = vunpack.c.h.b16 %v319
    %v2664 = vunpack.c.l.b16 %v320
    %v2665 = vunpack.c.h.b16 %v320
    %v2666 = vunpack.c.l.b16 %v321
    %v2667 = vunpack.c.h.b16 %v321
    %v2668 = vunpack.c.l.b16 %v322
    %v2669 = vunpack.c.h.b16 %v322
    %v2670 = vunpack.c.l.b16 %v323
    %v2671 = vunpack.c.h.b16 %v323
    %v2672 = vunpack.c.l.b16 %v324
    %v2673 = vunpack.c.h.b16 %v324
    %v2674 = vunpack.c.l.b16 %v325
    %v2675 = vunpack.c.h.b16 %v325
    %v2676 = vunpack.c.l.b16 %v326
    %v2677 = vunpack.c.h.b16 %v326
    %v2678 = vunpack.c.l.b16 %v327
    %v2679 = vunpack.c.h.b16 %v327
    %v2680 = vunpack.c.l.b16 %v328
    %v2681 = vunpack.c.h.b16 %v328
    %v2682 = vunpack.c.l.b16 %v329
    %v2683 = vunpack.c.h.b16 %v329
    %v2684 = vunpack.c.l.b16 %v330
    %v2685 = vunpack.c.h.b16 %v330
    %v2686 = vunpack.c.l.b16 %v331
    %v2687 = vunpack.c.h.b16 %v331
    %v2688 = vunpack.c.l.b16 %v332
    %v2689 = vunpack.c.h.b16 %v332
    %v2690 = vunpack.c.l.b16 %v333
    %v2691 = vunpack.c.h.b16 %v333
    %v2692 = vunpack.c.l.b16 %v334
    %v2693 = vunpack.c.h.b16 %v334
    %v2694 = vunpack.c.l.b16 %v335
    %v2695 = vunpack.c.h.b16 %v335
    %v2696 = vunpack.c.l.b16 %v336
    %v2697 = vunpack.c.h.b16 %v336
    %v2698 = vunpack.c.l.b16 %v337
    %v2699 = vunpack.c.h.b16 %v337
    %v2700 = vunpack.c.l.b16 %v338
    %v2701 = vunpack.c.h.b16 %v338
    %v2702 = vunpack.c.l.b16 %v339
    %v2703 = vunpack.c.h.b16 %v339
    %v2704 = vunpack.c.l.b16 %v340
    %v2705 = vunpack.c.h.b16 %v340
    %v2706 = vunpack.c.l.b16 %v341
    %v2707 = vunpack.c.h.b16 %v341
    %v2708 = vunpack.c.l.b16 %v342
    %v2709 = vunpack.c.h.b16 %v342
    %v2710 = vunpack.c.l.b16 %v343
    %v2711 = vunpack.c.h.b16 %v343
    %v2712 = vunpack.c.l.b16 %v344
    %v2713 = vunpack.c.h.b16 %v344
    %v2714 = vunpack.c.l.b16 %v345
    %v2715 = vunpack.c.h.b16 %v345
    %v2716 = vunpack.c.l.b16 %v346
    %v2717 = vunpack.c.h.b16 %v346
    %v2718 = vunpack.c.l.b16 %v347
    %v2719 = vunpack.c.h.b16 %v347
    %v2720 = vunpack.c.l.b16 %v348
    %v2721 = vunpack.c.h.b16 %v348
    %v2722 = vunpack.c.l.b16 %v349
    %v2723 = vunpack.c.h.b16 %v349
    %v2724 = vunpack.c.l.b16 %v350
    %v2725 = vunpack.c.h.b16 %v350
    %v2726 = vunpack.c.l.b16 %v351
    %v2727 = vunpack.c.h.b16 %v351
    %v2728 = vunpack.c.l.b16 %v352
    %v2729 = vunpack.c.h.b16 %v352
    %v2730 = vunpack.c.l.b16 %v353
    %v2731 = vunpack.c.h.b16 %v353
    %v2732 = vunpack.c.l.b16 %v354
    %v2733 = vunpack.c.h.b16 %v354
    %v2734 = vunpack.c.l.b16 %v355
    %v2735 = vunpack.c.h.b16 %v355
    %v2736 = vunpack.c.l.b16 %v356
    %v2737 = vunpack.c.h.b16 %v356
    %v2738 = vunpack.c.l.b16 %v357
    %v2739 = vunpack.c.h.b16 %v357
    %v2740 = vunpack.c.l.b16 %v358
    %v2741 = vunpack.c.h.b16 %v358
    %v2742 = vunpack.c.l.b16 %v359
    %v2743 = vunpack.c.h.b16 %v359
    %v2744 = vunpack.c.l.b16 %v360
    %v2745 = vunpack.c.h.b16 %v360
    %v2746 = vunpack.c.l.b16 %v361
    %v2747 = vunpack.c.h.b16 %v361
    %v2748 = vunpack.c.l.b16 %v362
    %v2749 = vunpack.c.h.b16 %v362
    %v2750 = vunpack.c.l.b16 %v363
    %v2751 = vunpack.c.h.b16 %v363
    %v2752 = vunpack.c.l.b16 %v364
    %v2753 = vunpack.c.h.b16 %v364
    %v2754 = vunpack.c.l.b16 %v365
    %v2755 = vunpack.c.h.b16 %v365
    %v2756 = vunpack.c.l.b16 %v366
    %v2757 = vunpack.c.h.b16 %v366
    %v2758 = vunpack.c.l.b16 %v367
    %v2759 = vunpack.c.h.b16 %v367
    %v2760 = vunpack.c.l.b16 %v368
    %v2761 = vunpack.c.h.b16 %v368
    %v2762 = vunpack.c.l.b16 %v369
    %v2763 = vunpack.c.h.b16 %v369
    %v2764 = vunpack.c.l.b16 %v370
    %v2765 = vunpack.c.h.b16 %v370
    %v2766 = vunpack.c.l.b16 %v371
    %v2767 = vunpack.c.h.b16 %v371
    %v2768 = vunpack.c.l.b16 %v372
    %v2769 = vunpack.c.h.b16 %v372
    %v2770 = vunpack.c.l.b16 %v373
    %v2771 = vunpack.c.h.b16 %v373
    %v2772 = vunpack.c.l.b16 %v374
    %v2773 = vunpack.c.h.b16 %v374
    %v2774 = vunpack.c.l.b16 %v375
    %v2775 = vunpack.c.h.b16 %v375
    %v2776 = vunpack.c.l.b16 %v376
    %v2777 = vunpack.c.h.b16 %v376
    %v2778 = vunpack.c.l.b16 %v377
    %v2779 = vunpack.c.h.b16 %v377
    %v2780 = vunpack.c.l.b16 %v378
    %v2781 = vunpack.c.h.b16 %v378
    %v2782 = vunpack.c.l.b16 %v379
    %v2783 = vunpack.c.h.b16 %v379
    %v2784 = vunpack.c.l.b16 %v380
    %v2785 = vunpack.c.h.b16 %v380
    %v2786 = vpack.c.b16 %v2406, %v2402
    %v2787 = vpack.c.b16 %v2407, %v2403
    %v2788 = vpack.c.b16 %v2408, %v2404
    %v2789 = vpack.c.b16 %v2409, %v2405
    %v2790 = vpack.c.b16 %v2414, %v2410
    %v2791 = vpack.c.b16 %v2415, %v2411
    %v2792 = vpack.c.b16 %v2416, %v2412
    %v2793 = vpack.c.b16 %v2417, %v2413
    %v2794 = vpack.c.b16 %v2422, %v2418
    %v2795 = vpack.c.b16 %v2423, %v2419
    %v2796 = vpack.c.b16 %v2424, %v2420
    %v2797 = vpack.c.b16 %v2425, %v2421
    %v2798 = vpack.c.b16 %v2430, %v2426
    %v2799 = vpack.c.b16 %v2431, %v2427
    %v2800 = vpack.c.b16 %v2432, %v2428
    %v2801 = vpack.c.b16 %v2433, %v2429
    %v2802 = vpack.c.b16 %v2438, %v2434
    %v2803 = vpack.c.b16 %v2439, %v2435
    %v2804 = vpack.c.b16 %v2440, %v2436
    %v2805 = vpack.c.b16 %v2441, %v2437
    %v2806 = vpack.c.b16 %v2446, %v2442
    %v2807 = vpack.c.b16 %v2447, %v2443
    %v2808 = vpack.c.b16 %v2448, %v2444
    %v2809 = vpack.c.b16 %v2449, %v2445
    %v2810 = vpack.c.b16 %v2454, %v2450
    %v2811 = vpack.c.b16 %v2455, %v2451
    %v2812 = vpack.c.b16 %v2456, %v2452
    %v2813 = vpack.c.b16 %v2457, %v2453
    %v2814 = vpack.c.b16 %v2462, %v2458
    %v2815 = vpack.c.b16 %v2463, %v2459
    %v2816 = vpack.c.b16 %v2464, %v2460
    %v2817 = vpack.c.b16 %v2465, %v2461
    %v2818 = vpack.c.b16 %v2470, %v2466
    %v2819 = vpack.c.b16 %v2471, %v2467
    %v2820 = vpack.c.b16 %v2472, %v2468
    %v2821 = vpack.c.b16 %v2473, %v2469
    %v2822 = vpack.c.b16 %v2478, %v2474
    %v2823 = vpack.c.b16 %v2479, %v2475
    %v2824 = vpack.c.b16 %v2480, %v2476
    %v2825 = vpack.c.b16 %v2481, %v2477
    %v2826 = vpack.c.b16 %v2486, %v2482
    %v2827 = vpack.c.b16 %v2487, %v2483
    %v2828 = vpack.c.b16 %v2488, %v2484
    %v2829 = vpack.c.b16 %v2489, %v2485
    %v2830 = vpack.c.b16 %v2494, %v2490
    %v2831 = vpack.c.b16 %v2495, %v2491
    %v2832 = vpack.c.b16 %v2496, %v2492
    %v2833 = vpack.c.b16 %v2497, %v2493
    %v2834 = vpack.c.b16 %v2502, %v2498
    %v2835 = vpack.c.b16 %v2503, %v2499
    %v2836 = vpack.c.b16 %v2504, %v2500
    %v2837 = vpack.c.b16 %v2505, %v2501
    %v2838 = vpack.c.b16 %v2510, %v2506
    %v2839 = vpack.c.b16 %v2511, %v2507
    %v2840 = vpack.c.b16 %v2512, %v2508
    %v2841 = vpack.c.b16 %v2513, %v2509
    %v2842 = vpack.c.b16 %v2518, %v2514
    %v2843 = vpack.c.b16 %v2519, %v2515
    %v2844 = vpack.c.b16 %v2520, %v2516
    %v2845 = vpack.c.b16 %v2521, %v2517
    %v2846 = vpack.c.b16 %v2526, %v2522
    %v2847 = vpack.c.b16 %v2527, %v2523
    %v2848 = vpack.c.b16 %v2528, %v2524
    %v2849 = vpack.c.b16 %v2529, %v2525
    %v2850 = vpack.c.b16 %v2534, %v2530
    %v2851 = vpack.c.b16 %v2535, %v2531
    %v2852 = vpack.c.b16 %v2536, %v2532
    %v2853 = vpack.c.b16 %v2537, %v2533
    %v2854 = vpack.c.b16 %v2542, %v2538
    %v2855 = vpack.c.b16 %v2543, %v2539
    %v2856 = vpack.c.b16 %v2544, %v2540
    %v2857 = vpack.c.b16 %v2545, %v2541
    %v2858 = vpack.c.b16 %v2550, %v2546
    %v2859 = vpack.c.b16 %v2551, %v2547
    %v2860 = vpack.c.b16 %v2552, %v2548
    %v2861 = vpack.c.b16 %v2553, %v2549
    %v2862 = vpack.c.b16 %v2558, %v2554
    %v2863 = vpack.c.b16 %v2559, %v2555
    %v2864 = vpack.c.b16 %v2560, %v2556
    %v2865 = vpack.c.b16 %v2561, %v2557
    %v2866 = vpack.c.b16 %v2566, %v2562
    %v2867 = vpack.c.b16 %v2567, %v2563
    %v2868 = vpack.c.b16 %v2568, %v2564
    %v2869 = vpack.c.b16 %v2569, %v2565
    %v2870 = vpack.c.b16 %v2574, %v2570
    %v2871 = vpack.c.b16 %v2575, %v2571
    %v2872 = vpack.c.b16 %v2576, %v2572
    %v2873 = vpack.c.b16 %v2577, %v2573
    %v2874 = vpack.c.b16 %v2582, %v2578
    %v2875 = vpack.c.b16 %v2583, %v2579
    %v2876 = vpack.c.b16 %v2584, %v2580
    %v2877 = vpack.c.b16 %v2585, %v2581
    %v2878 = vpack.c.b16 %v2590, %v2586
    %v2879 = vpack.c.b16 %v2591, %v2587
    %v2880 = vpack.c.b16 %v2592, %v2588
    %v2881 = vpack.c.b16 %v2593, %v2589
    %v2882 = vpack.c.b16 %v2598, %v2594
    %v2883 = vpack.c.b16 %v2599, %v2595
    %v2884 = vpack.c.b16 %v2600, %v2596
    %v2885 = vpack.c.b16 %v2601, %v2597
    %v2886 = vpack.c.b16 %v2606, %v2602
    %v2887 = vpack.c.b16 %v2607, %v2603
    %v2888 = vpack.c.b16 %v2608, %v2604
    %v2889 = vpack.c.b16 %v2609, %v2605
    %v2890 = vpack.c.b16 %v2614, %v2610
    %v2891 = vpack.c.b16 %v2615, %v2611
    %v2892 = vpack.c.b16 %v2616, %v2612
    %v2893 = vpack.c.b16 %v2617, %v2613
    %v2894 = vpack.c.b16 %v2622, %v2618
    %v2895 = vpack.c.b16 %v2623, %v2619
    %v2896 = vpack.c.b16 %v2624, %v2620
    %v2897 = vpack.c.b16 %v2625, %v2621
    %v2898 = vpack.c.b16 %v2630, %v2626
    %v2899 = vpack.c.b16 %v2631, %v2627
    %v2900 = vpack.c.b16 %v2632, %v2628
    %v2901 = vpack.c.b16 %v2633, %v2629
    %v2902 = vpack.c.b16 %v2638, %v2634
    %v2903 = vpack.c.b16 %v2639, %v2635
    %v2904 = vpack.c.b16 %v2640, %v2636
    %v2905 = vpack.c.b16 %v2641, %v2637
    %v2906 = vpack.c.b16 %v2646, %v2642
    %v2907 = vpack.c.b16 %v2647, %v2643
    %v2908 = vpack.c.b16 %v2648, %v2644
    %v2909 = vpack.c.b16 %v2649, %v2645
    %v2910 = vpack.c.b16 %v2654, %v2650
    %v2911 = vpack.c.b16 %v2655, %v2651
    %v2912 = vpack.c.b16 %v2656, %v2652
    %v2913 = vpack.c.b16 %v2657, %v2653
    %v2914 = vpack.c.b16 %v2662, %v2658
    %v2915 = vpack.c.b16 %v2663, %v2659
    %v2916 = vpack.c.b16 %v2664, %v2660
    %v2917 = vpack.c.b16 %v2665, %v2661
    %v2918 = vpack.c.b16 %v2670, %v2666
    %v2919 = vpack.c.b16 %v2671, %v2667
    %v2920 = vpack.c.b16 %v2672, %v2668
    %v2921 = vpack.c.b16 %v2673, %v2669
    %v2922 = vpack.c.b16 %v2678, %v2674
    %v2923 = vpack.c.b16 %v2679, %v2675
    %v2924 = vpack.c.b16 %v2680, %v2676
    %v2925 = vpack.c.b16 %v2681, %v2677
    %v2926 = vpack.c.b16 %v2686, %v2682
    %v2927 = vpack.c.b16 %v2687, %v2683
    %v2928 = vpack.c.b16 %v2688, %v2684
    %v2929 = vpack.c.b16 %v2689, %v2685
    %v2930 = vpack.c.b16 %v2694, %v2690
    %v2931 = vpack.c.b16 %v2695, %v2691
    %v2932 = vpack.c.b16 %v2696, %v2692
    %v2933 = vpack.c.b16 %v2697, %v2693
    %v2934 = vpack.c.b16 %v2702, %v2698
    %v2935 = vpack.c.b16 %v2703, %v2699
    %v2936 = vpack.c.b16 %v2704, %v2700
    %v2937 = vpack.c.b16 %v2705, %v2701
    %v2938 = vpack.c.b16 %v2710, %v2706
    %v2939 = vpack.c.b16 %v2711, %v2707
    %v2940 = vpack.c.b16 %v2712, %v2708
    %v2941 = vpack.c.b16 %v2713, %v2709
    %v2942 = vpack.c.b16 %v2718, %v2714
    %v2943 = vpack.c.b16 %v2719, %v2715
    %v2944 = vpack.c.b16 %v2720, %v2716
    %v2945 = vpack.c.b16 %v2721, %v2717
    %v2946 = vpack.c.b16 %v2726, %v2722
    %v2947 = vpack.c.b16 %v2727, %v2723
    %v2948 = vpack.c.b16 %v2728, %v2724
    %v2949 = vpack.c.b16 %v2729, %v2725
    %v2950 = vpack.c.b16 %v2734, %v2730
    %v2951 = vpack.c.b16 %v2735, %v2731
    %v2952 = vpack.c.b16 %v2736, %v2732
    %v2953 = vpack.c.b16 %v2737, %v2733
    %v2954 = vpack.c.b16 %v2742, %v2738
    %v2955 = vpack.c.b16 %v2743, %v2739
    %v2956 = vpack.c.b16 %v2744, %v2740
    %v2957 = vpack.c.b16 %v2745, %v2741
    %v2958 = vpack.c.b16 %v2750, %v2746
    %v2959 = vpack.c.b16 %v2751, %v2747
    %v2960 = vpack.c.b16 %v2752, %v2748
    %v2961 = vpack.c.b16 %v2753, %v2749
    %v2962 = vpack.c.b16 %v2758, %v2754
    %v2963 = vpack.c.b16 %v2759, %v2755
    %v2964 = vpack.c.b16 %v2760, %v2756
    %v2965 = vpack.c.b16 %v2761, %v2757
    %v2966 = vpack.c.b16 %v2766, %v2762
    %v2967 = vpack.c.b16 %v2767, %v2763
    %v2968 = vpack.c.b16 %v2768, %v2764
    %v2969 = vpack.c.b16 %v2769, %v2765
    %v2970 = vpack.c.b16 %v2774, %v2770
    %v2971 = vpack.c.b16 %v2775, %v2771
    %v2972 = vpack.c.b16 %v2776, %v2772
    %v2973 = vpack.c.b16 %v2777, %v2773
    %v2974 = vpack.c.b16 %v2782, %v2778
    %v2975 = vpack.c.b16 %v2783, %v2779
    %v2976 = vpack.c.b16 %v2784, %v2780
    %v2977 = vpack.c.b16 %v2785, %v2781
    %3170 = vmatprep.subr.bf16.mxu0 %v2815
    %3171 = vmatpush1.bf16.msra.mxu0 %v2814
    %3172 = vmatprep.subr.bf16.mxu0 %v2811
    %3173 = vmatpush1.bf16.msra.mxu0 %v2810
    %3174 = vmatprep.subr.bf16.mxu0 %v2807
    %3175 = vmatpush1.bf16.msra.mxu0 %v2806
    %3176 = vmatprep.subr.bf16.mxu0 %v2803
    %3177 = vmatpush1.bf16.msra.mxu0 %v2802
    %3178 = vmatprep.subr.bf16.mxu0 %v2799
    %3179 = vmatpush1.bf16.msra.mxu0 %v2798
    %3180 = vmatprep.subr.bf16.mxu0 %v2795
    %3181 = vmatpush1.bf16.msra.mxu0 %v2794
    %3182 = vmatprep.subr.bf16.mxu0 %v2791
    %3183 = vmatpush1.bf16.msra.mxu0 %v2790
    %3184 = vmatprep.subr.bf16.mxu0 %v2787
    %3185 = vmatpush1.bf16.msra.mxu0 %v2786
    %3186 = vmatprep.subr.bf16.mxu0 %v2847
    %3187 = vmatpush2.bf16.msra.mxu0 %v2846
    %3188 = vmatprep.subr.bf16.mxu0 %v2843
    %3189 = vmatpush2.bf16.msra.mxu0 %v2842
    %3190 = vmatprep.subr.bf16.mxu0 %v2839
    %3191 = vmatpush2.bf16.msra.mxu0 %v2838
    %3192 = vmatprep.subr.bf16.mxu0 %v2835
    %3193 = vmatpush2.bf16.msra.mxu0 %v2834
    %3194 = vmatprep.subr.bf16.mxu0 %v2831
    %3195 = vmatpush2.bf16.msra.mxu0 %v2830
    %3196 = vmatprep.subr.bf16.mxu0 %v2827
    %3197 = vmatpush2.bf16.msra.mxu0 %v2826
    %3198 = vmatprep.subr.bf16.mxu0 %v2823
    %3199 = vmatpush2.bf16.msra.mxu0 %v2822
    %3200 = vmatprep.subr.bf16.mxu0 %v2819
    %3201 = vmatpush2.bf16.msra.mxu0 %v2818
    %3202 = vmatprep.mubr.bf16.mxu0 %v2199
    %3203 = vmatmul.mubr.bf16.gmra.mxu0 %v2198
    %v3204 = vpop.f32.mrf.mxu0
    %v3205 = vadd.f32 0.0, %v3204
    %v3206 = vpop.f32.mrf.mxu0
    %v3207 = vadd.f32 0.0, %v3206
    %v3208 = vpop.f32.mrf.mxu0
    %v3209 = vpop.f32.mrf.mxu0
    %3210 = vdwg.mxu0
    %3211 = vmatprep.subr.bf16.mxu0 %v2879
    %3212 = vmatpush1.bf16.msra.mxu0 %v2878
    %3213 = vmatprep.subr.bf16.mxu0 %v2875
    %3214 = vmatpush1.bf16.msra.mxu0 %v2874
    %3215 = vmatprep.subr.bf16.mxu0 %v2871
    %3216 = vmatpush1.bf16.msra.mxu0 %v2870
    %3217 = vmatprep.subr.bf16.mxu0 %v2867
    %3218 = vmatpush1.bf16.msra.mxu0 %v2866
    %3219 = vmatprep.subr.bf16.mxu0 %v2863
    %3220 = vmatpush1.bf16.msra.mxu0 %v2862
    %3221 = vmatprep.subr.bf16.mxu0 %v2859
    %3222 = vmatpush1.bf16.msra.mxu0 %v2858
    %3223 = vmatprep.subr.bf16.mxu0 %v2855
    %3224 = vmatpush1.bf16.msra.mxu0 %v2854
    %3225 = vmatprep.subr.bf16.mxu0 %v2851
    %3226 = vmatpush1.bf16.msra.mxu0 %v2850
    %3227 = vmatprep.subr.bf16.mxu0 %v2911
    %3228 = vmatpush2.bf16.msra.mxu0 %v2910
    %3229 = vmatprep.subr.bf16.mxu0 %v2907
    %3230 = vmatpush2.bf16.msra.mxu0 %v2906
    %3231 = vmatprep.subr.bf16.mxu0 %v2903
    %3232 = vmatpush2.bf16.msra.mxu0 %v2902
    %3233 = vmatprep.subr.bf16.mxu0 %v2899
    %3234 = vmatpush2.bf16.msra.mxu0 %v2898
    %3235 = vmatprep.subr.bf16.mxu0 %v2895
    %3236 = vmatpush2.bf16.msra.mxu0 %v2894
    %3237 = vmatprep.subr.bf16.mxu0 %v2891
    %3238 = vmatpush2.bf16.msra.mxu0 %v2890
    %3239 = vmatprep.subr.bf16.mxu0 %v2887
    %3240 = vmatpush2.bf16.msra.mxu0 %v2886
    %3241 = vmatprep.subr.bf16.mxu0 %v2883
    %3242 = vmatpush2.bf16.msra.mxu0 %v2882
    %3243 = vmatprep.mubr.bf16.mxu0 %v2201
    %3244 = vmatmul.mubr.bf16.gmra.mxu0 %v2200
    %v3245 = vpop.f32.mrf.mxu0
    %v3246 = vadd.f32 %v3205, %v3245
    %v3247 = vpop.f32.mrf.mxu0
    %v3248 = vadd.f32 %v3207, %v3247
    %v3249 = vpop.f32.mrf.mxu0
    %v3250 = vpop.f32.mrf.mxu0
    %3251 = vdwg.mxu0
    %3252 = vmatprep.subr.bf16.mxu0 %v2943
    %3253 = vmatpush1.bf16.msra.mxu0 %v2942
    %3254 = vmatprep.subr.bf16.mxu0 %v2939
    %3255 = vmatpush1.bf16.msra.mxu0 %v2938
    %3256 = vmatprep.subr.bf16.mxu0 %v2935
    %3257 = vmatpush1.bf16.msra.mxu0 %v2934
    %3258 = vmatprep.subr.bf16.mxu0 %v2931
    %3259 = vmatpush1.bf16.msra.mxu0 %v2930
    %3260 = vmatprep.subr.bf16.mxu0 %v2927
    %3261 = vmatpush1.bf16.msra.mxu0 %v2926
    %3262 = vmatprep.subr.bf16.mxu0 %v2923
    %3263 = vmatpush1.bf16.msra.mxu0 %v2922
    %3264 = vmatprep.subr.bf16.mxu0 %v2919
    %3265 = vmatpush1.bf16.msra.mxu0 %v2918
    %3266 = vmatprep.subr.bf16.mxu0 %v2915
    %3267 = vmatpush1.bf16.msra.mxu0 %v2914
    %3268 = vmatprep.subr.bf16.mxu0 %v2975
    %3269 = vmatpush2.bf16.msra.mxu0 %v2974
    %3270 = vmatprep.subr.bf16.mxu0 %v2971
    %3271 = vmatpush2.bf16.msra.mxu0 %v2970
    %3272 = vmatprep.subr.bf16.mxu0 %v2967
    %3273 = vmatpush2.bf16.msra.mxu0 %v2966
    %3274 = vmatprep.subr.bf16.mxu0 %v2963
    %3275 = vmatpush2.bf16.msra.mxu0 %v2962
    %3276 = vmatprep.subr.bf16.mxu0 %v2959
    %3277 = vmatpush2.bf16.msra.mxu0 %v2958
    %3278 = vmatprep.subr.bf16.mxu0 %v2955
    %3279 = vmatpush2.bf16.msra.mxu0 %v2954
    %3280 = vmatprep.subr.bf16.mxu0 %v2951
    %3281 = vmatpush2.bf16.msra.mxu0 %v2950
    %3282 = vmatprep.subr.bf16.mxu0 %v2947
    %3283 = vmatpush2.bf16.msra.mxu0 %v2946
    %3284 = vmatprep.mubr.bf16.mxu0 %v2203
    %3285 = vmatmul.mubr.bf16.gmra.mxu0 %v2202
    %v3286 = vpop.f32.mrf.mxu0
    %v3287 = vadd.f32 %v3246, %v3286
    %v3288 = vpop.f32.mrf.mxu0
    %v3289 = vadd.f32 %v3248, %v3288
    %v3290 = vpop.f32.mrf.mxu0
    %v3291 = vpop.f32.mrf.mxu0
    %3292 = vdwg.mxu0
    %3293 = vmatprep.subr.bf16.mxu0 %v2817
    %3294 = vmatpush1.bf16.msra.mxu0 %v2816
    %3295 = vmatprep.subr.bf16.mxu0 %v2813
    %3296 = vmatpush1.bf16.msra.mxu0 %v2812
    %3297 = vmatprep.subr.bf16.mxu0 %v2809
    %3298 = vmatpush1.bf16.msra.mxu0 %v2808
    %3299 = vmatprep.subr.bf16.mxu0 %v2805
    %3300 = vmatpush1.bf16.msra.mxu0 %v2804
    %3301 = vmatprep.subr.bf16.mxu0 %v2801
    %3302 = vmatpush1.bf16.msra.mxu0 %v2800
    %3303 = vmatprep.subr.bf16.mxu0 %v2797
    %3304 = vmatpush1.bf16.msra.mxu0 %v2796
    %3305 = vmatprep.subr.bf16.mxu0 %v2793
    %3306 = vmatpush1.bf16.msra.mxu0 %v2792
    %3307 = vmatprep.subr.bf16.mxu0 %v2789
    %3308 = vmatpush1.bf16.msra.mxu0 %v2788
    %3309 = vmatprep.subr.bf16.mxu0 %v2849
    %3310 = vmatpush2.bf16.msra.mxu0 %v2848
    %3311 = vmatprep.subr.bf16.mxu0 %v2845
    %3312 = vmatpush2.bf16.msra.mxu0 %v2844
    %3313 = vmatprep.subr.bf16.mxu0 %v2841
    %3314 = vmatpush2.bf16.msra.mxu0 %v2840
    %3315 = vmatprep.subr.bf16.mxu0 %v2837
    %3316 = vmatpush2.bf16.msra.mxu0 %v2836
    %3317 = vmatprep.subr.bf16.mxu0 %v2833
    %3318 = vmatpush2.bf16.msra.mxu0 %v2832
    %3319 = vmatprep.subr.bf16.mxu0 %v2829
    %3320 = vmatpush2.bf16.msra.mxu0 %v2828
    %3321 = vmatprep.subr.bf16.mxu0 %v2825
    %3322 = vmatpush2.bf16.msra.mxu0 %v2824
    %3323 = vmatprep.subr.bf16.mxu0 %v2821
    %3324 = vmatpush2.bf16.msra.mxu0 %v2820
    %3325 = vmatprep.mubr.bf16.mxu0 %v2199
    %3326 = vmatmul.mubr.bf16.gmra.mxu0 %v2198
    %v3327 = vpop.f32.mrf.mxu0
    %v3328 = vadd.f32 0.0, %v3327
    %v3329 = vpop.f32.mrf.mxu0
    %v3330 = vadd.f32 0.0, %v3329
    %v3331 = vpop.f32.mrf.mxu0
    %v3332 = vpop.f32.mrf.mxu0
    %3333 = vdwg.mxu0
    %3334 = vmatprep.subr.bf16.mxu0 %v2881
    %3335 = vmatpush1.bf16.msra.mxu0 %v2880
    %3336 = vmatprep.subr.bf16.mxu0 %v2877
    %3337 = vmatpush1.bf16.msra.mxu0 %v2876
    %3338 = vmatprep.subr.bf16.mxu0 %v2873
    %3339 = vmatpush1.bf16.msra.mxu0 %v2872
    %3340 = vmatprep.subr.bf16.mxu0 %v2869
    %3341 = vmatpush1.bf16.msra.mxu0 %v2868
    %3342 = vmatprep.subr.bf16.mxu0 %v2865
    %3343 = vmatpush1.bf16.msra.mxu0 %v2864
    %3344 = vmatprep.subr.bf16.mxu0 %v2861
    %3345 = vmatpush1.bf16.msra.mxu0 %v2860
    %3346 = vmatprep.subr.bf16.mxu0 %v2857
    %3347 = vmatpush1.bf16.msra.mxu0 %v2856
    %3348 = vmatprep.subr.bf16.mxu0 %v2853
    %3349 = vmatpush1.bf16.msra.mxu0 %v2852
    %3350 = vmatprep.subr.bf16.mxu0 %v2913
    %3351 = vmatpush2.bf16.msra.mxu0 %v2912
    %3352 = vmatprep.subr.bf16.mxu0 %v2909
    %3353 = vmatpush2.bf16.msra.mxu0 %v2908
    %3354 = vmatprep.subr.bf16.mxu0 %v2905
    %3355 = vmatpush2.bf16.msra.mxu0 %v2904
    %3356 = vmatprep.subr.bf16.mxu0 %v2901
    %3357 = vmatpush2.bf16.msra.mxu0 %v2900
    %3358 = vmatprep.subr.bf16.mxu0 %v2897
    %3359 = vmatpush2.bf16.msra.mxu0 %v2896
    %3360 = vmatprep.subr.bf16.mxu0 %v2893
    %3361 = vmatpush2.bf16.msra.mxu0 %v2892
    %3362 = vmatprep.subr.bf16.mxu0 %v2889
    %3363 = vmatpush2.bf16.msra.mxu0 %v2888
    %3364 = vmatprep.subr.bf16.mxu0 %v2885
    %3365 = vmatpush2.bf16.msra.mxu0 %v2884
    %3366 = vmatprep.mubr.bf16.mxu0 %v2201
    %3367 = vmatmul.mubr.bf16.gmra.mxu0 %v2200
    %v3368 = vpop.f32.mrf.mxu0
    %v3369 = vadd.f32 %v3328, %v3368
    %v3370 = vpop.f32.mrf.mxu0
    %v3371 = vadd.f32 %v3330, %v3370
    %v3372 = vpop.f32.mrf.mxu0
    %v3373 = vpop.f32.mrf.mxu0
    %3374 = vdwg.mxu0
    %3375 = vmatprep.subr.bf16.mxu0 %v2945
    %3376 = vmatpush1.bf16.msra.mxu0 %v2944
    %3377 = vmatprep.subr.bf16.mxu0 %v2941
    %3378 = vmatpush1.bf16.msra.mxu0 %v2940
    %3379 = vmatprep.subr.bf16.mxu0 %v2937
    %3380 = vmatpush1.bf16.msra.mxu0 %v2936
    %3381 = vmatprep.subr.bf16.mxu0 %v2933
    %3382 = vmatpush1.bf16.msra.mxu0 %v2932
    %3383 = vmatprep.subr.bf16.mxu0 %v2929
    %3384 = vmatpush1.bf16.msra.mxu0 %v2928
    %3385 = vmatprep.subr.bf16.mxu0 %v2925
    %3386 = vmatpush1.bf16.msra.mxu0 %v2924
    %3387 = vmatprep.subr.bf16.mxu0 %v2921
    %3388 = vmatpush1.bf16.msra.mxu0 %v2920
    %3389 = vmatprep.subr.bf16.mxu0 %v2917
    %3390 = vmatpush1.bf16.msra.mxu0 %v2916
    %3391 = vmatprep.subr.bf16.mxu0 %v2977
    %3392 = vmatpush2.bf16.msra.mxu0 %v2976
    %3393 = vmatprep.subr.bf16.mxu0 %v2973
    %3394 = vmatpush2.bf16.msra.mxu0 %v2972
    %3395 = vmatprep.subr.bf16.mxu0 %v2969
    %3396 = vmatpush2.bf16.msra.mxu0 %v2968
    %3397 = vmatprep.subr.bf16.mxu0 %v2965
    %3398 = vmatpush2.bf16.msra.mxu0 %v2964
    %3399 = vmatprep.subr.bf16.mxu0 %v2961
    %3400 = vmatpush2.bf16.msra.mxu0 %v2960
    %3401 = vmatprep.subr.bf16.mxu0 %v2957
    %3402 = vmatpush2.bf16.msra.mxu0 %v2956
    %3403 = vmatprep.subr.bf16.mxu0 %v2953
    %3404 = vmatpush2.bf16.msra.mxu0 %v2952
    %3405 = vmatprep.subr.bf16.mxu0 %v2949
    %3406 = vmatpush2.bf16.msra.mxu0 %v2948
    %3407 = vmatprep.mubr.bf16.mxu0 %v2203
    %3408 = vmatmul.mubr.bf16.gmra.mxu0 %v2202
    %v3409 = vpop.f32.mrf.mxu0
    %v3410 = vadd.f32 %v3369, %v3409
    %v3411 = vpop.f32.mrf.mxu0
    %v3412 = vadd.f32 %v3371, %v3411
    %v3413 = vpop.f32.mrf.mxu0
    %v3414 = vpop.f32.mrf.mxu0
    %3415 = vdwg.mxu0
    %v3416 = vmax.f32 %v3287, %v3289
    %v3417 = vmax.f32 %v3410, %v3412
    %v3418 = vmax.f32 %v3416, %v3417
    %v3419 = vadd.f32 %v3418, %v398
    %v3420 = vmax.f32 %v3419, 0.0
    %v3421 = vpack.c.bf16 %v3420, %v3420
    %3422 = vst [vmem:[#allocation3] sm:$0xf] %v3421
    %v3423 = vld [vmem:[#allocation2 + $0x8] sm:$0xff]
    %v3424 = vld [vmem:[#allocation2 + $0x10] sm:$0xff]
    %v3425 = vld [vmem:[#allocation2 + $0x18] sm:$0xff]
    %v3429 = vunpack.c.l.b16 %v3423
    %v3430 = vunpack.c.h.b16 %v3423
    %v3431 = vunpack.c.l.b16 %v3424
    %v3432 = vunpack.c.h.b16 %v3424
    %v3433 = vunpack.c.l.b16 %v3425
    %v3434 = vunpack.c.h.b16 %v3425
    %v3435 = vpack.c.b16 %v3429, %v3429
    %v3436 = vpack.c.b16 %v3430, %v3430
    %v3437 = vpack.c.b16 %v3431, %v3431
    %v3438 = vpack.c.b16 %v3432, %v3432
    %v3439 = vpack.c.b16 %v3433, %v3433
    %v3440 = vpack.c.b16 %v3434, %v3434
    %3447 = vmatprep.subr.bf16.mxu0 %v2815
    %3448 = vmatpush1.bf16.msra.mxu0 %v2814
    %3449 = vmatprep.subr.bf16.mxu0 %v2811
    %3450 = vmatpush1.bf16.msra.mxu0 %v2810
    %3451 = vmatprep.subr.bf16.mxu0 %v2807
    %3452 = vmatpush1.bf16.msra.mxu0 %v2806
    %3453 = vmatprep.subr.bf16.mxu0 %v2803
    %3454 = vmatpush1.bf16.msra.mxu0 %v2802
    %3455 = vmatprep.subr.bf16.mxu0 %v2799
    %3456 = vmatpush1.bf16.msra.mxu0 %v2798
    %3457 = vmatprep.subr.bf16.mxu0 %v2795
    %3458 = vmatpush1.bf16.msra.mxu0 %v2794
    %3459 = vmatprep.subr.bf16.mxu0 %v2791
    %3460 = vmatpush1.bf16.msra.mxu0 %v2790
    %3461 = vmatprep.subr.bf16.mxu0 %v2787
    %3462 = vmatpush1.bf16.msra.mxu0 %v2786
    %3463 = vmatprep.subr.bf16.mxu0 %v2847
    %3464 = vmatpush2.bf16.msra.mxu0 %v2846
    %3465 = vmatprep.subr.bf16.mxu0 %v2843
    %3466 = vmatpush2.bf16.msra.mxu0 %v2842
    %3467 = vmatprep.subr.bf16.mxu0 %v2839
    %3468 = vmatpush2.bf16.msra.mxu0 %v2838
    %3469 = vmatprep.subr.bf16.mxu0 %v2835
    %3470 = vmatpush2.bf16.msra.mxu0 %v2834
    %3471 = vmatprep.subr.bf16.mxu0 %v2831
    %3472 = vmatpush2.bf16.msra.mxu0 %v2830
    %3473 = vmatprep.subr.bf16.mxu0 %v2827
    %3474 = vmatpush2.bf16.msra.mxu0 %v2826
    %3475 = vmatprep.subr.bf16.mxu0 %v2823
    %3476 = vmatpush2.bf16.msra.mxu0 %v2822
    %3477 = vmatprep.subr.bf16.mxu0 %v2819
    %3478 = vmatpush2.bf16.msra.mxu0 %v2818
    %3479 = vmatprep.mubr.bf16.mxu0 %v3436
    %3480 = vmatmul.mubr.bf16.gmra.mxu0 %v3435
    %v3481 = vpop.f32.mrf.mxu0
    %v3482 = vadd.f32 0.0, %v3481
    %v3483 = vpop.f32.mrf.mxu0
    %v3484 = vadd.f32 0.0, %v3483
    %v3485 = vpop.f32.mrf.mxu0
    %v3486 = vpop.f32.mrf.mxu0
    %3487 = vdwg.mxu0
    %3488 = vmatprep.subr.bf16.mxu0 %v2879
    %3489 = vmatpush1.bf16.msra.mxu0 %v2878
    %3490 = vmatprep.subr.bf16.mxu0 %v2875
    %3491 = vmatpush1.bf16.msra.mxu0 %v2874
    %3492 = vmatprep.subr.bf16.mxu0 %v2871
    %3493 = vmatpush1.bf16.msra.mxu0 %v2870
    %3494 = vmatprep.subr.bf16.mxu0 %v2867
    %3495 = vmatpush1.bf16.msra.mxu0 %v2866
    %3496 = vmatprep.subr.bf16.mxu0 %v2863
    %3497 = vmatpush1.bf16.msra.mxu0 %v2862
    %3498 = vmatprep.subr.bf16.mxu0 %v2859
    %3499 = vmatpush1.bf16.msra.mxu0 %v2858
    %3500 = vmatprep.subr.bf16.mxu0 %v2855
    %3501 = vmatpush1.bf16.msra.mxu0 %v2854
    %3502 = vmatprep.subr.bf16.mxu0 %v2851
    %3503 = vmatpush1.bf16.msra.mxu0 %v2850
    %3504 = vmatprep.subr.bf16.mxu0 %v2911
    %3505 = vmatpush2.bf16.msra.mxu0 %v2910
    %3506 = vmatprep.subr.bf16.mxu0 %v2907
    %3507 = vmatpush2.bf16.msra.mxu0 %v2906
    %3508 = vmatprep.subr.bf16.mxu0 %v2903
    %3509 = vmatpush2.bf16.msra.mxu0 %v2902
    %3510 = vmatprep.subr.bf16.mxu0 %v2899
    %3511 = vmatpush2.bf16.msra.mxu0 %v2898
    %3512 = vmatprep.subr.bf16.mxu0 %v2895
    %3513 = vmatpush2.bf16.msra.mxu0 %v2894
    %3514 = vmatprep.subr.bf16.mxu0 %v2891
    %3515 = vmatpush2.bf16.msra.mxu0 %v2890
    %3516 = vmatprep.subr.bf16.mxu0 %v2887
    %3517 = vmatpush2.bf16.msra.mxu0 %v2886
    %3518 = vmatprep.subr.bf16.mxu0 %v2883
    %3519 = vmatpush2.bf16.msra.mxu0 %v2882
    %3520 = vmatprep.mubr.bf16.mxu0 %v3438
    %3521 = vmatmul.mubr.bf16.gmra.mxu0 %v3437
    %v3522 = vpop.f32.mrf.mxu0
    %v3523 = vadd.f32 %v3482, %v3522
    %v3524 = vpop.f32.mrf.mxu0
    %v3525 = vadd.f32 %v3484, %v3524
    %v3526 = vpop.f32.mrf.mxu0
    %v3527 = vpop.f32.mrf.mxu0
    %3528 = vdwg.mxu0
    %3529 = vmatprep.subr.bf16.mxu0 %v2943
    %3530 = vmatpush1.bf16.msra.mxu0 %v2942
    %3531 = vmatprep.subr.bf16.mxu0 %v2939
    %3532 = vmatpush1.bf16.msra.mxu0 %v2938
    %3533 = vmatprep.subr.bf16.mxu0 %v2935
    %3534 = vmatpush1.bf16.msra.mxu0 %v2934
    %3535 = vmatprep.subr.bf16.mxu0 %v2931
    %3536 = vmatpush1.bf16.msra.mxu0 %v2930
    %3537 = vmatprep.subr.bf16.mxu0 %v2927
    %3538 = vmatpush1.bf16.msra.mxu0 %v2926
    %3539 = vmatprep.subr.bf16.mxu0 %v2923
    %3540 = vmatpush1.bf16.msra.mxu0 %v2922
    %3541 = vmatprep.subr.bf16.mxu0 %v2919
    %3542 = vmatpush1.bf16.msra.mxu0 %v2918
    %3543 = vmatprep.subr.bf16.mxu0 %v2915
    %3544 = vmatpush1.bf16.msra.mxu0 %v2914
    %3545 = vmatprep.subr.bf16.mxu0 %v2975
    %3546 = vmatpush2.bf16.msra.mxu0 %v2974
    %3547 = vmatprep.subr.bf16.mxu0 %v2971
    %3548 = vmatpush2.bf16.msra.mxu0 %v2970
    %3549 = vmatprep.subr.bf16.mxu0 %v2967
    %3550 = vmatpush2.bf16.msra.mxu0 %v2966
    %3551 = vmatprep.subr.bf16.mxu0 %v2963
    %3552 = vmatpush2.bf16.msra.mxu0 %v2962
    %3553 = vmatprep.subr.bf16.mxu0 %v2959
    %3554 = vmatpush2.bf16.msra.mxu0 %v2958
    %3555 = vmatprep.subr.bf16.mxu0 %v2955
    %3556 = vmatpush2.bf16.msra.mxu0 %v2954
    %3557 = vmatprep.subr.bf16.mxu0 %v2951
    %3558 = vmatpush2.bf16.msra.mxu0 %v2950
    %3559 = vmatprep.subr.bf16.mxu0 %v2947
    %3560 = vmatpush2.bf16.msra.mxu0 %v2946
    %3561 = vmatprep.mubr.bf16.mxu0 %v3440
    %3562 = vmatmul.mubr.bf16.gmra.mxu0 %v3439
    %v3563 = vpop.f32.mrf.mxu0
    %v3564 = vadd.f32 %v3523, %v3563
    %v3565 = vpop.f32.mrf.mxu0
    %v3566 = vadd.f32 %v3525, %v3565
    %v3567 = vpop.f32.mrf.mxu0
    %v3568 = vpop.f32.mrf.mxu0
    %3569 = vdwg.mxu0
    %3570 = vmatprep.subr.bf16.mxu0 %v2817
    %3571 = vmatpush1.bf16.msra.mxu0 %v2816
    %3572 = vmatprep.subr.bf16.mxu0 %v2813
    %3573 = vmatpush1.bf16.msra.mxu0 %v2812
    %3574 = vmatprep.subr.bf16.mxu0 %v2809
    %3575 = vmatpush1.bf16.msra.mxu0 %v2808
    %3576 = vmatprep.subr.bf16.mxu0 %v2805
    %3577 = vmatpush1.bf16.msra.mxu0 %v2804
    %3578 = vmatprep.subr.bf16.mxu0 %v2801
    %3579 = vmatpush1.bf16.msra.mxu0 %v2800
    %3580 = vmatprep.subr.bf16.mxu0 %v2797
    %3581 = vmatpush1.bf16.msra.mxu0 %v2796
    %3582 = vmatprep.subr.bf16.mxu0 %v2793
    %3583 = vmatpush1.bf16.msra.mxu0 %v2792
    %3584 = vmatprep.subr.bf16.mxu0 %v2789
    %3585 = vmatpush1.bf16.msra.mxu0 %v2788
    %3586 = vmatprep.subr.bf16.mxu0 %v2849
    %3587 = vmatpush2.bf16.msra.mxu0 %v2848
    %3588 = vmatprep.subr.bf16.mxu0 %v2845
    %3589 = vmatpush2.bf16.msra.mxu0 %v2844
    %3590 = vmatprep.subr.bf16.mxu0 %v2841
    %3591 = vmatpush2.bf16.msra.mxu0 %v2840
    %3592 = vmatprep.subr.bf16.mxu0 %v2837
    %3593 = vmatpush2.bf16.msra.mxu0 %v2836
    %3594 = vmatprep.subr.bf16.mxu0 %v2833
    %3595 = vmatpush2.bf16.msra.mxu0 %v2832
    %3596 = vmatprep.subr.bf16.mxu0 %v2829
    %3597 = vmatpush2.bf16.msra.mxu0 %v2828
    %3598 = vmatprep.subr.bf16.mxu0 %v2825
    %3599 = vmatpush2.bf16.msra.mxu0 %v2824
    %3600 = vmatprep.subr.bf16.mxu0 %v2821
    %3601 = vmatpush2.bf16.msra.mxu0 %v2820
    %3602 = vmatprep.mubr.bf16.mxu0 %v3436
    %3603 = vmatmul.mubr.bf16.gmra.mxu0 %v3435
    %v3604 = vpop.f32.mrf.mxu0
    %v3605 = vadd.f32 0.0, %v3604
    %v3606 = vpop.f32.mrf.mxu0
    %v3607 = vadd.f32 0.0, %v3606
    %v3608 = vpop.f32.mrf.mxu0
    %v3609 = vpop.f32.mrf.mxu0
    %3610 = vdwg.mxu0
    %3611 = vmatprep.subr.bf16.mxu0 %v2881
    %3612 = vmatpush1.bf16.msra.mxu0 %v2880
    %3613 = vmatprep.subr.bf16.mxu0 %v2877
    %3614 = vmatpush1.bf16.msra.mxu0 %v2876
    %3615 = vmatprep.subr.bf16.mxu0 %v2873
    %3616 = vmatpush1.bf16.msra.mxu0 %v2872
    %3617 = vmatprep.subr.bf16.mxu0 %v2869
    %3618 = vmatpush1.bf16.msra.mxu0 %v2868
    %3619 = vmatprep.subr.bf16.mxu0 %v2865
    %3620 = vmatpush1.bf16.msra.mxu0 %v2864
    %3621 = vmatprep.subr.bf16.mxu0 %v2861
    %3622 = vmatpush1.bf16.msra.mxu0 %v2860
    %3623 = vmatprep.subr.bf16.mxu0 %v2857
    %3624 = vmatpush1.bf16.msra.mxu0 %v2856
    %3625 = vmatprep.subr.bf16.mxu0 %v2853
    %3626 = vmatpush1.bf16.msra.mxu0 %v2852
    %3627 = vmatprep.subr.bf16.mxu0 %v2913
    %3628 = vmatpush2.bf16.msra.mxu0 %v2912
    %3629 = vmatprep.subr.bf16.mxu0 %v2909
    %3630 = vmatpush2.bf16.msra.mxu0 %v2908
    %3631 = vmatprep.subr.bf16.mxu0 %v2905
    %3632 = vmatpush2.bf16.msra.mxu0 %v2904
    %3633 = vmatprep.subr.bf16.mxu0 %v2901
    %3634 = vmatpush2.bf16.msra.mxu0 %v2900
    %3635 = vmatprep.subr.bf16.mxu0 %v2897
    %3636 = vmatpush2.bf16.msra.mxu0 %v2896
    %3637 = vmatprep.subr.bf16.mxu0 %v2893
    %3638 = vmatpush2.bf16.msra.mxu0 %v2892
    %3639 = vmatprep.subr.bf16.mxu0 %v2889
    %3640 = vmatpush2.bf16.msra.mxu0 %v2888
    %3641 = vmatprep.subr.bf16.mxu0 %v2885
    %3642 = vmatpush2.bf16.msra.mxu0 %v2884
    %3643 = vmatprep.mubr.bf16.mxu0 %v3438
    %3644 = vmatmul.mubr.bf16.gmra.mxu0 %v3437
    %v3645 = vpop.f32.mrf.mxu0
    %v3646 = vadd.f32 %v3605, %v3645
    %v3647 = vpop.f32.mrf.mxu0
    %v3648 = vadd.f32 %v3607, %v3647
    %v3649 = vpop.f32.mrf.mxu0
    %v3650 = vpop.f32.mrf.mxu0
    %3651 = vdwg.mxu0
    %3652 = vmatprep.subr.bf16.mxu0 %v2945
    %3653 = vmatpush1.bf16.msra.mxu0 %v2944
    %3654 = vmatprep.subr.bf16.mxu0 %v2941
    %3655 = vmatpush1.bf16.msra.mxu0 %v2940
    %3656 = vmatprep.subr.bf16.mxu0 %v2937
    %3657 = vmatpush1.bf16.msra.mxu0 %v2936
    %3658 = vmatprep.subr.bf16.mxu0 %v2933
    %3659 = vmatpush1.bf16.msra.mxu0 %v2932
    %3660 = vmatprep.subr.bf16.mxu0 %v2929
    %3661 = vmatpush1.bf16.msra.mxu0 %v2928
    %3662 = vmatprep.subr.bf16.mxu0 %v2925
    %3663 = vmatpush1.bf16.msra.mxu0 %v2924
    %3664 = vmatprep.subr.bf16.mxu0 %v2921
    %3665 = vmatpush1.bf16.msra.mxu0 %v2920
    %3666 = vmatprep.subr.bf16.mxu0 %v2917
    %3667 = vmatpush1.bf16.msra.mxu0 %v2916
    %3668 = vmatprep.subr.bf16.mxu0 %v2977
    %3669 = vmatpush2.bf16.msra.mxu0 %v2976
    %3670 = vmatprep.subr.bf16.mxu0 %v2973
    %3671 = vmatpush2.bf16.msra.mxu0 %v2972
    %3672 = vmatprep.subr.bf16.mxu0 %v2969
    %3673 = vmatpush2.bf16.msra.mxu0 %v2968
    %3674 = vmatprep.subr.bf16.mxu0 %v2965
    %3675 = vmatpush2.bf16.msra.mxu0 %v2964
    %3676 = vmatprep.subr.bf16.mxu0 %v2961
    %3677 = vmatpush2.bf16.msra.mxu0 %v2960
    %3678 = vmatprep.subr.bf16.mxu0 %v2957
    %3679 = vmatpush2.bf16.msra.mxu0 %v2956
    %3680 = vmatprep.subr.bf16.mxu0 %v2953
    %3681 = vmatpush2.bf16.msra.mxu0 %v2952
    %3682 = vmatprep.subr.bf16.mxu0 %v2949
    %3683 = vmatpush2.bf16.msra.mxu0 %v2948
    %3684 = vmatprep.mubr.bf16.mxu0 %v3440
    %3685 = vmatmul.mubr.bf16.gmra.mxu0 %v3439
    %v3686 = vpop.f32.mrf.mxu0
    %v3687 = vadd.f32 %v3646, %v3686
    %v3688 = vpop.f32.mrf.mxu0
    %v3689 = vadd.f32 %v3648, %v3688
    %v3690 = vpop.f32.mrf.mxu0
    %v3691 = vpop.f32.mrf.mxu0
    %3692 = vdwg.mxu0
    %v3693 = vmax.f32 %v3564, %v3566
    %v3694 = vmax.f32 %v3687, %v3689
    %v3695 = vmax.f32 %v3693, %v3694
    %v3696 = vadd.f32 %v3695, %v398
    %v3697 = vmax.f32 %v3696, 0.0
    %v3698 = vpack.c.bf16 %v3697, %v3697
    %3699 = vst [vmem:[#allocation3 + $0x4] sm:$0xf] %v3698
    %v3700 = vld [vmem:[#allocation2 + $0x10] sm:$0xff]
    %v3701 = vld [vmem:[#allocation2 + $0x18] sm:$0xff]
    %v3702 = vld [vmem:[#allocation2 + $0x20] sm:$0xff]
    %v3706 = vunpack.c.l.b16 %v3700
    %v3707 = vunpack.c.h.b16 %v3700
    %v3708 = vunpack.c.l.b16 %v3701
    %v3709 = vunpack.c.h.b16 %v3701
    %v3710 = vunpack.c.l.b16 %v3702
    %v3711 = vunpack.c.h.b16 %v3702
    %v3712 = vpack.c.b16 %v3706, %v3706
    %v3713 = vpack.c.b16 %v3707, %v3707
    %v3714 = vpack.c.b16 %v3708, %v3708
    %v3715 = vpack.c.b16 %v3709, %v3709
    %v3716 = vpack.c.b16 %v3710, %v3710
    %v3717 = vpack.c.b16 %v3711, %v3711
    %3724 = vmatprep.subr.bf16.mxu0 %v2815
    %3725 = vmatpush1.bf16.msra.mxu0 %v2814
    %3726 = vmatprep.subr.bf16.mxu0 %v2811
    %3727 = vmatpush1.bf16.msra.mxu0 %v2810
    %3728 = vmatprep.subr.bf16.mxu0 %v2807
    %3729 = vmatpush1.bf16.msra.mxu0 %v2806
    %3730 = vmatprep.subr.bf16.mxu0 %v2803
    %3731 = vmatpush1.bf16.msra.mxu0 %v2802
    %3732 = vmatprep.subr.bf16.mxu0 %v2799
    %3733 = vmatpush1.bf16.msra.mxu0 %v2798
    %3734 = vmatprep.subr.bf16.mxu0 %v2795
    %3735 = vmatpush1.bf16.msra.mxu0 %v2794
    %3736 = vmatprep.subr.bf16.mxu0 %v2791
    %3737 = vmatpush1.bf16.msra.mxu0 %v2790
    %3738 = vmatprep.subr.bf16.mxu0 %v2787
    %3739 = vmatpush1.bf16.msra.mxu0 %v2786
    %3740 = vmatprep.subr.bf16.mxu0 %v2847
    %3741 = vmatpush2.bf16.msra.mxu0 %v2846
    %3742 = vmatprep.subr.bf16.mxu0 %v2843
    %3743 = vmatpush2.bf16.msra.mxu0 %v2842
    %3744 = vmatprep.subr.bf16.mxu0 %v2839
    %3745 = vmatpush2.bf16.msra.mxu0 %v2838
    %3746 = vmatprep.subr.bf16.mxu0 %v2835
    %3747 = vmatpush2.bf16.msra.mxu0 %v2834
    %3748 = vmatprep.subr.bf16.mxu0 %v2831
    %3749 = vmatpush2.bf16.msra.mxu0 %v2830
    %3750 = vmatprep.subr.bf16.mxu0 %v2827
    %3751 = vmatpush2.bf16.msra.mxu0 %v2826
    %3752 = vmatprep.subr.bf16.mxu0 %v2823
    %3753 = vmatpush2.bf16.msra.mxu0 %v2822
    %3754 = vmatprep.subr.bf16.mxu0 %v2819
    %3755 = vmatpush2.bf16.msra.mxu0 %v2818
    %3756 = vmatprep.mubr.bf16.mxu0 %v3713
    %3757 = vmatmul.mubr.bf16.gmra.mxu0 %v3712
    %v3758 = vpop.f32.mrf.mxu0
    %v3759 = vadd.f32 0.0, %v3758
    %v3760 = vpop.f32.mrf.mxu0
    %v3761 = vadd.f32 0.0, %v3760
    %v3762 = vpop.f32.mrf.mxu0
    %v3763 = vpop.f32.mrf.mxu0
    %3764 = vdwg.mxu0
    %3765 = vmatprep.subr.bf16.mxu0 %v2879
    %3766 = vmatpush1.bf16.msra.mxu0 %v2878
    %3767 = vmatprep.subr.bf16.mxu0 %v2875
    %3768 = vmatpush1.bf16.msra.mxu0 %v2874
    %3769 = vmatprep.subr.bf16.mxu0 %v2871
    %3770 = vmatpush1.bf16.msra.mxu0 %v2870
    %3771 = vmatprep.subr.bf16.mxu0 %v2867
    %3772 = vmatpush1.bf16.msra.mxu0 %v2866
    %3773 = vmatprep.subr.bf16.mxu0 %v2863
    %3774 = vmatpush1.bf16.msra.mxu0 %v2862
    %3775 = vmatprep.subr.bf16.mxu0 %v2859
    %3776 = vmatpush1.bf16.msra.mxu0 %v2858
    %3777 = vmatprep.subr.bf16.mxu0 %v2855
    %3778 = vmatpush1.bf16.msra.mxu0 %v2854
    %3779 = vmatprep.subr.bf16.mxu0 %v2851
    %3780 = vmatpush1.bf16.msra.mxu0 %v2850
    %3781 = vmatprep.subr.bf16.mxu0 %v2911
    %3782 = vmatpush2.bf16.msra.mxu0 %v2910
    %3783 = vmatprep.subr.bf16.mxu0 %v2907
    %3784 = vmatpush2.bf16.msra.mxu0 %v2906
    %3785 = vmatprep.subr.bf16.mxu0 %v2903
    %3786 = vmatpush2.bf16.msra.mxu0 %v2902
    %3787 = vmatprep.subr.bf16.mxu0 %v2899
    %3788 = vmatpush2.bf16.msra.mxu0 %v2898
    %3789 = vmatprep.subr.bf16.mxu0 %v2895
    %3790 = vmatpush2.bf16.msra.mxu0 %v2894
    %3791 = vmatprep.subr.bf16.mxu0 %v2891
    %3792 = vmatpush2.bf16.msra.mxu0 %v2890
    %3793 = vmatprep.subr.bf16.mxu0 %v2887
    %3794 = vmatpush2.bf16.msra.mxu0 %v2886
    %3795 = vmatprep.subr.bf16.mxu0 %v2883
    %3796 = vmatpush2.bf16.msra.mxu0 %v2882
    %3797 = vmatprep.mubr.bf16.mxu0 %v3715
    %3798 = vmatmul.mubr.bf16.gmra.mxu0 %v3714
    %v3799 = vpop.f32.mrf.mxu0
    %v3800 = vadd.f32 %v3759, %v3799
    %v3801 = vpop.f32.mrf.mxu0
    %v3802 = vadd.f32 %v3761, %v3801
    %v3803 = vpop.f32.mrf.mxu0
    %v3804 = vpop.f32.mrf.mxu0
    %3805 = vdwg.mxu0
    %3806 = vmatprep.subr.bf16.mxu0 %v2943
    %3807 = vmatpush1.bf16.msra.mxu0 %v2942
    %3808 = vmatprep.subr.bf16.mxu0 %v2939
    %3809 = vmatpush1.bf16.msra.mxu0 %v2938
    %3810 = vmatprep.subr.bf16.mxu0 %v2935
    %3811 = vmatpush1.bf16.msra.mxu0 %v2934
    %3812 = vmatprep.subr.bf16.mxu0 %v2931
    %3813 = vmatpush1.bf16.msra.mxu0 %v2930
    %3814 = vmatprep.subr.bf16.mxu0 %v2927
    %3815 = vmatpush1.bf16.msra.mxu0 %v2926
    %3816 = vmatprep.subr.bf16.mxu0 %v2923
    %3817 = vmatpush1.bf16.msra.mxu0 %v2922
    %3818 = vmatprep.subr.bf16.mxu0 %v2919
    %3819 = vmatpush1.bf16.msra.mxu0 %v2918
    %3820 = vmatprep.subr.bf16.mxu0 %v2915
    %3821 = vmatpush1.bf16.msra.mxu0 %v2914
    %3822 = vmatprep.subr.bf16.mxu0 %v2975
    %3823 = vmatpush2.bf16.msra.mxu0 %v2974
    %3824 = vmatprep.subr.bf16.mxu0 %v2971
    %3825 = vmatpush2.bf16.msra.mxu0 %v2970
    %3826 = vmatprep.subr.bf16.mxu0 %v2967
    %3827 = vmatpush2.bf16.msra.mxu0 %v2966
    %3828 = vmatprep.subr.bf16.mxu0 %v2963
    %3829 = vmatpush2.bf16.msra.mxu0 %v2962
    %3830 = vmatprep.subr.bf16.mxu0 %v2959
    %3831 = vmatpush2.bf16.msra.mxu0 %v2958
    %3832 = vmatprep.subr.bf16.mxu0 %v2955
    %3833 = vmatpush2.bf16.msra.mxu0 %v2954
    %3834 = vmatprep.subr.bf16.mxu0 %v2951
    %3835 = vmatpush2.bf16.msra.mxu0 %v2950
    %3836 = vmatprep.subr.bf16.mxu0 %v2947
    %3837 = vmatpush2.bf16.msra.mxu0 %v2946
    %3838 = vmatprep.mubr.bf16.mxu0 %v3717
    %3839 = vmatmul.mubr.bf16.gmra.mxu0 %v3716
    %v3840 = vpop.f32.mrf.mxu0
    %v3841 = vadd.f32 %v3800, %v3840
    %v3842 = vpop.f32.mrf.mxu0
    %v3843 = vadd.f32 %v3802, %v3842
    %v3844 = vpop.f32.mrf.mxu0
    %v3845 = vpop.f32.mrf.mxu0
    %3846 = vdwg.mxu0
    %3847 = vmatprep.subr.bf16.mxu0 %v2817
    %3848 = vmatpush1.bf16.msra.mxu0 %v2816
    %3849 = vmatprep.subr.bf16.mxu0 %v2813
    %3850 = vmatpush1.bf16.msra.mxu0 %v2812
    %3851 = vmatprep.subr.bf16.mxu0 %v2809
    %3852 = vmatpush1.bf16.msra.mxu0 %v2808
    %3853 = vmatprep.subr.bf16.mxu0 %v2805
    %3854 = vmatpush1.bf16.msra.mxu0 %v2804
    %3855 = vmatprep.subr.bf16.mxu0 %v2801
    %3856 = vmatpush1.bf16.msra.mxu0 %v2800
    %3857 = vmatprep.subr.bf16.mxu0 %v2797
    %3858 = vmatpush1.bf16.msra.mxu0 %v2796
    %3859 = vmatprep.subr.bf16.mxu0 %v2793
    %3860 = vmatpush1.bf16.msra.mxu0 %v2792
    %3861 = vmatprep.subr.bf16.mxu0 %v2789
    %3862 = vmatpush1.bf16.msra.mxu0 %v2788
    %3863 = vmatprep.subr.bf16.mxu0 %v2849
    %3864 = vmatpush2.bf16.msra.mxu0 %v2848
    %3865 = vmatprep.subr.bf16.mxu0 %v2845
    %3866 = vmatpush2.bf16.msra.mxu0 %v2844
    %3867 = vmatprep.subr.bf16.mxu0 %v2841
    %3868 = vmatpush2.bf16.msra.mxu0 %v2840
    %3869 = vmatprep.subr.bf16.mxu0 %v2837
    %3870 = vmatpush2.bf16.msra.mxu0 %v2836
    %3871 = vmatprep.subr.bf16.mxu0 %v2833
    %3872 = vmatpush2.bf16.msra.mxu0 %v2832
    %3873 = vmatprep.subr.bf16.mxu0 %v2829
    %3874 = vmatpush2.bf16.msra.mxu0 %v2828
    %3875 = vmatprep.subr.bf16.mxu0 %v2825
    %3876 = vmatpush2.bf16.msra.mxu0 %v2824
    %3877 = vmatprep.subr.bf16.mxu0 %v2821
    %3878 = vmatpush2.bf16.msra.mxu0 %v2820
    %3879 = vmatprep.mubr.bf16.mxu0 %v3713
    %3880 = vmatmul.mubr.bf16.gmra.mxu0 %v3712
    %v3881 = vpop.f32.mrf.mxu0
    %v3882 = vadd.f32 0.0, %v3881
    %v3883 = vpop.f32.mrf.mxu0
    %v3884 = vadd.f32 0.0, %v3883
    %v3885 = vpop.f32.mrf.mxu0
    %v3886 = vpop.f32.mrf.mxu0
    %3887 = vdwg.mxu0
    %3888 = vmatprep.subr.bf16.mxu0 %v2881
    %3889 = vmatpush1.bf16.msra.mxu0 %v2880
    %3890 = vmatprep.subr.bf16.mxu0 %v2877
    %3891 = vmatpush1.bf16.msra.mxu0 %v2876
    %3892 = vmatprep.subr.bf16.mxu0 %v2873
    %3893 = vmatpush1.bf16.msra.mxu0 %v2872
    %3894 = vmatprep.subr.bf16.mxu0 %v2869
    %3895 = vmatpush1.bf16.msra.mxu0 %v2868
    %3896 = vmatprep.subr.bf16.mxu0 %v2865
    %3897 = vmatpush1.bf16.msra.mxu0 %v2864
    %3898 = vmatprep.subr.bf16.mxu0 %v2861
    %3899 = vmatpush1.bf16.msra.mxu0 %v2860
    %3900 = vmatprep.subr.bf16.mxu0 %v2857
    %3901 = vmatpush1.bf16.msra.mxu0 %v2856
    %3902 = vmatprep.subr.bf16.mxu0 %v2853
    %3903 = vmatpush1.bf16.msra.mxu0 %v2852
    %3904 = vmatprep.subr.bf16.mxu0 %v2913
    %3905 = vmatpush2.bf16.msra.mxu0 %v2912
    %3906 = vmatprep.subr.bf16.mxu0 %v2909
    %3907 = vmatpush2.bf16.msra.mxu0 %v2908
    %3908 = vmatprep.subr.bf16.mxu0 %v2905
    %3909 = vmatpush2.bf16.msra.mxu0 %v2904
    %3910 = vmatprep.subr.bf16.mxu0 %v2901
    %3911 = vmatpush2.bf16.msra.mxu0 %v2900
    %3912 = vmatprep.subr.bf16.mxu0 %v2897
    %3913 = vmatpush2.bf16.msra.mxu0 %v2896
    %3914 = vmatprep.subr.bf16.mxu0 %v2893
    %3915 = vmatpush2.bf16.msra.mxu0 %v2892
    %3916 = vmatprep.subr.bf16.mxu0 %v2889
    %3917 = vmatpush2.bf16.msra.mxu0 %v2888
    %3918 = vmatprep.subr.bf16.mxu0 %v2885
    %3919 = vmatpush2.bf16.msra.mxu0 %v2884
    %3920 = vmatprep.mubr.bf16.mxu0 %v3715
    %3921 = vmatmul.mubr.bf16.gmra.mxu0 %v3714
    %v3922 = vpop.f32.mrf.mxu0
    %v3923 = vadd.f32 %v3882, %v3922
    %v3924 = vpop.f32.mrf.mxu0
    %v3925 = vadd.f32 %v3884, %v3924
    %v3926 = vpop.f32.mrf.mxu0
    %v3927 = vpop.f32.mrf.mxu0
    %3928 = vdwg.mxu0
    %3929 = vmatprep.subr.bf16.mxu0 %v2945
    %3930 = vmatpush1.bf16.msra.mxu0 %v2944
    %3931 = vmatprep.subr.bf16.mxu0 %v2941
    %3932 = vmatpush1.bf16.msra.mxu0 %v2940
    %3933 = vmatprep.subr.bf16.mxu0 %v2937
    %3934 = vmatpush1.bf16.msra.mxu0 %v2936
    %3935 = vmatprep.subr.bf16.mxu0 %v2933
    %3936 = vmatpush1.bf16.msra.mxu0 %v2932
    %3937 = vmatprep.subr.bf16.mxu0 %v2929
    %3938 = vmatpush1.bf16.msra.mxu0 %v2928
    %3939 = vmatprep.subr.bf16.mxu0 %v2925
    %3940 = vmatpush1.bf16.msra.mxu0 %v2924
    %3941 = vmatprep.subr.bf16.mxu0 %v2921
    %3942 = vmatpush1.bf16.msra.mxu0 %v2920
    %3943 = vmatprep.subr.bf16.mxu0 %v2917
    %3944 = vmatpush1.bf16.msra.mxu0 %v2916
    %3945 = vmatprep.subr.bf16.mxu0 %v2977
    %3946 = vmatpush2.bf16.msra.mxu0 %v2976
    %3947 = vmatprep.subr.bf16.mxu0 %v2973
    %3948 = vmatpush2.bf16.msra.mxu0 %v2972
    %3949 = vmatprep.subr.bf16.mxu0 %v2969
    %3950 = vmatpush2.bf16.msra.mxu0 %v2968
    %3951 = vmatprep.subr.bf16.mxu0 %v2965
    %3952 = vmatpush2.bf16.msra.mxu0 %v2964
    %3953 = vmatprep.subr.bf16.mxu0 %v2961
    %3954 = vmatpush2.bf16.msra.mxu0 %v2960
    %3955 = vmatprep.subr.bf16.mxu0 %v2957
    %3956 = vmatpush2.bf16.msra.mxu0 %v2956
    %3957 = vmatprep.subr.bf16.mxu0 %v2953
    %3958 = vmatpush2.bf16.msra.mxu0 %v2952
    %3959 = vmatprep.subr.bf16.mxu0 %v2949
    %3960 = vmatpush2.bf16.msra.mxu0 %v2948
    %3961 = vmatprep.mubr.bf16.mxu0 %v3717
    %3962 = vmatmul.mubr.bf16.gmra.mxu0 %v3716
    %v3963 = vpop.f32.mrf.mxu0
    %v3964 = vadd.f32 %v3923, %v3963
    %v3965 = vpop.f32.mrf.mxu0
    %v3966 = vadd.f32 %v3925, %v3965
    %v3967 = vpop.f32.mrf.mxu0
    %v3968 = vpop.f32.mrf.mxu0
    %3969 = vdwg.mxu0
    %v3970 = vmax.f32 %v3841, %v3843
    %v3971 = vmax.f32 %v3964, %v3966
    %v3972 = vmax.f32 %v3970, %v3971
    %v3973 = vadd.f32 %v3972, %v398
    %v3974 = vmax.f32 %v3973, 0.0
    %v3975 = vpack.c.bf16 %v3974, %v3974
    %3976 = vst [vmem:[#allocation3 + $0x8] sm:$0xf] %v3975
    %v3977 = vld [vmem:[#allocation2 + $0x18] sm:$0xff]
    %v3978 = vld [vmem:[#allocation2 + $0x20] sm:$0xff]
    %v3979 = vld [vmem:[#allocation2 + $0x28] sm:$0xff]
    %v3983 = vunpack.c.l.b16 %v3977
    %v3984 = vunpack.c.h.b16 %v3977
    %v3985 = vunpack.c.l.b16 %v3978
    %v3986 = vunpack.c.h.b16 %v3978
    %v3987 = vunpack.c.l.b16 %v3979
    %v3988 = vunpack.c.h.b16 %v3979
    %v3989 = vpack.c.b16 %v3983, %v3983
    %v3990 = vpack.c.b16 %v3984, %v3984
    %v3991 = vpack.c.b16 %v3985, %v3985
    %v3992 = vpack.c.b16 %v3986, %v3986
    %v3993 = vpack.c.b16 %v3987, %v3987
    %v3994 = vpack.c.b16 %v3988, %v3988
    %4001 = vmatprep.subr.bf16.mxu0 %v2815
    %4002 = vmatpush1.bf16.msra.mxu0 %v2814
    %4003 = vmatprep.subr.bf16.mxu0 %v2811
    %4004 = vmatpush1.bf16.msra.mxu0 %v2810
    %4005 = vmatprep.subr.bf16.mxu0 %v2807
    %4006 = vmatpush1.bf16.msra.mxu0 %v2806
    %4007 = vmatprep.subr.bf16.mxu0 %v2803
    %4008 = vmatpush1.bf16.msra.mxu0 %v2802
    %4009 = vmatprep.subr.bf16.mxu0 %v2799
    %4010 = vmatpush1.bf16.msra.mxu0 %v2798
    %4011 = vmatprep.subr.bf16.mxu0 %v2795
    %4012 = vmatpush1.bf16.msra.mxu0 %v2794
    %4013 = vmatprep.subr.bf16.mxu0 %v2791
    %4014 = vmatpush1.bf16.msra.mxu0 %v2790
    %4015 = vmatprep.subr.bf16.mxu0 %v2787
    %4016 = vmatpush1.bf16.msra.mxu0 %v2786
    %4017 = vmatprep.subr.bf16.mxu0 %v2847
    %4018 = vmatpush2.bf16.msra.mxu0 %v2846
    %4019 = vmatprep.subr.bf16.mxu0 %v2843
    %4020 = vmatpush2.bf16.msra.mxu0 %v2842
    %4021 = vmatprep.subr.bf16.mxu0 %v2839
    %4022 = vmatpush2.bf16.msra.mxu0 %v2838
    %4023 = vmatprep.subr.bf16.mxu0 %v2835
    %4024 = vmatpush2.bf16.msra.mxu0 %v2834
    %4025 = vmatprep.subr.bf16.mxu0 %v2831
    %4026 = vmatpush2.bf16.msra.mxu0 %v2830
    %4027 = vmatprep.subr.bf16.mxu0 %v2827
    %4028 = vmatpush2.bf16.msra.mxu0 %v2826
    %4029 = vmatprep.subr.bf16.mxu0 %v2823
    %4030 = vmatpush2.bf16.msra.mxu0 %v2822
    %4031 = vmatprep.subr.bf16.mxu0 %v2819
    %4032 = vmatpush2.bf16.msra.mxu0 %v2818
    %4033 = vmatprep.mubr.bf16.mxu0 %v3990
    %4034 = vmatmul.mubr.bf16.gmra.mxu0 %v3989
    %v4035 = vpop.f32.mrf.mxu0
    %v4036 = vadd.f32 0.0, %v4035
    %v4037 = vpop.f32.mrf.mxu0
    %v4038 = vadd.f32 0.0, %v4037
    %v4039 = vpop.f32.mrf.mxu0
    %v4040 = vpop.f32.mrf.mxu0
    %4041 = vdwg.mxu0
    %4042 = vmatprep.subr.bf16.mxu0 %v2879
    %4043 = vmatpush1.bf16.msra.mxu0 %v2878
    %4044 = vmatprep.subr.bf16.mxu0 %v2875
    %4045 = vmatpush1.bf16.msra.mxu0 %v2874
    %4046 = vmatprep.subr.bf16.mxu0 %v2871
    %4047 = vmatpush1.bf16.msra.mxu0 %v2870
    %4048 = vmatprep.subr.bf16.mxu0 %v2867
    %4049 = vmatpush1.bf16.msra.mxu0 %v2866
    %4050 = vmatprep.subr.bf16.mxu0 %v2863
    %4051 = vmatpush1.bf16.msra.mxu0 %v2862
    %4052 = vmatprep.subr.bf16.mxu0 %v2859
    %4053 = vmatpush1.bf16.msra.mxu0 %v2858
    %4054 = vmatprep.subr.bf16.mxu0 %v2855
    %4055 = vmatpush1.bf16.msra.mxu0 %v2854
    %4056 = vmatprep.subr.bf16.mxu0 %v2851
    %4057 = vmatpush1.bf16.msra.mxu0 %v2850
    %4058 = vmatprep.subr.bf16.mxu0 %v2911
    %4059 = vmatpush2.bf16.msra.mxu0 %v2910
    %4060 = vmatprep.subr.bf16.mxu0 %v2907
    %4061 = vmatpush2.bf16.msra.mxu0 %v2906
    %4062 = vmatprep.subr.bf16.mxu0 %v2903
    %4063 = vmatpush2.bf16.msra.mxu0 %v2902
    %4064 = vmatprep.subr.bf16.mxu0 %v2899
    %4065 = vmatpush2.bf16.msra.mxu0 %v2898
    %4066 = vmatprep.subr.bf16.mxu0 %v2895
    %4067 = vmatpush2.bf16.msra.mxu0 %v2894
    %4068 = vmatprep.subr.bf16.mxu0 %v2891
    %4069 = vmatpush2.bf16.msra.mxu0 %v2890
    %4070 = vmatprep.subr.bf16.mxu0 %v2887
    %4071 = vmatpush2.bf16.msra.mxu0 %v2886
    %4072 = vmatprep.subr.bf16.mxu0 %v2883
    %4073 = vmatpush2.bf16.msra.mxu0 %v2882
    %4074 = vmatprep.mubr.bf16.mxu0 %v3992
    %4075 = vmatmul.mubr.bf16.gmra.mxu0 %v3991
    %v4076 = vpop.f32.mrf.mxu0
    %v4077 = vadd.f32 %v4036, %v4076
    %v4078 = vpop.f32.mrf.mxu0
    %v4079 = vadd.f32 %v4038, %v4078
    %v4080 = vpop.f32.mrf.mxu0
    %v4081 = vpop.f32.mrf.mxu0
    %4082 = vdwg.mxu0
    %4083 = vmatprep.subr.bf16.mxu0 %v2943
    %4084 = vmatpush1.bf16.msra.mxu0 %v2942
    %4085 = vmatprep.subr.bf16.mxu0 %v2939
    %4086 = vmatpush1.bf16.msra.mxu0 %v2938
    %4087 = vmatprep.subr.bf16.mxu0 %v2935
    %4088 = vmatpush1.bf16.msra.mxu0 %v2934
    %4089 = vmatprep.subr.bf16.mxu0 %v2931
    %4090 = vmatpush1.bf16.msra.mxu0 %v2930
    %4091 = vmatprep.subr.bf16.mxu0 %v2927
    %4092 = vmatpush1.bf16.msra.mxu0 %v2926
    %4093 = vmatprep.subr.bf16.mxu0 %v2923
    %4094 = vmatpush1.bf16.msra.mxu0 %v2922
    %4095 = vmatprep.subr.bf16.mxu0 %v2919
    %4096 = vmatpush1.bf16.msra.mxu0 %v2918
    %4097 = vmatprep.subr.bf16.mxu0 %v2915
    %4098 = vmatpush1.bf16.msra.mxu0 %v2914
    %4099 = vmatprep.subr.bf16.mxu0 %v2975
    %4100 = vmatpush2.bf16.msra.mxu0 %v2974
    %4101 = vmatprep.subr.bf16.mxu0 %v2971
    %4102 = vmatpush2.bf16.msra.mxu0 %v2970
    %4103 = vmatprep.subr.bf16.mxu0 %v2967
    %4104 = vmatpush2.bf16.msra.mxu0 %v2966
    %4105 = vmatprep.subr.bf16.mxu0 %v2963
    %4106 = vmatpush2.bf16.msra.mxu0 %v2962
    %4107 = vmatprep.subr.bf16.mxu0 %v2959
    %4108 = vmatpush2.bf16.msra.mxu0 %v2958
    %4109 = vmatprep.subr.bf16.mxu0 %v2955
    %4110 = vmatpush2.bf16.msra.mxu0 %v2954
    %4111 = vmatprep.subr.bf16.mxu0 %v2951
    %4112 = vmatpush2.bf16.msra.mxu0 %v2950
    %4113 = vmatprep.subr.bf16.mxu0 %v2947
    %4114 = vmatpush2.bf16.msra.mxu0 %v2946
    %4115 = vmatprep.mubr.bf16.mxu0 %v3994
    %4116 = vmatmul.mubr.bf16.gmra.mxu0 %v3993
    %v4117 = vpop.f32.mrf.mxu0
    %v4118 = vadd.f32 %v4077, %v4117
    %v4119 = vpop.f32.mrf.mxu0
    %v4120 = vadd.f32 %v4079, %v4119
    %v4121 = vpop.f32.mrf.mxu0
    %v4122 = vpop.f32.mrf.mxu0
    %4123 = vdwg.mxu0
    %4124 = vmatprep.subr.bf16.mxu0 %v2817
    %4125 = vmatpush1.bf16.msra.mxu0 %v2816
    %4126 = vmatprep.subr.bf16.mxu0 %v2813
    %4127 = vmatpush1.bf16.msra.mxu0 %v2812
    %4128 = vmatprep.subr.bf16.mxu0 %v2809
    %4129 = vmatpush1.bf16.msra.mxu0 %v2808
    %4130 = vmatprep.subr.bf16.mxu0 %v2805
    %4131 = vmatpush1.bf16.msra.mxu0 %v2804
    %4132 = vmatprep.subr.bf16.mxu0 %v2801
    %4133 = vmatpush1.bf16.msra.mxu0 %v2800
    %4134 = vmatprep.subr.bf16.mxu0 %v2797
    %4135 = vmatpush1.bf16.msra.mxu0 %v2796
    %4136 = vmatprep.subr.bf16.mxu0 %v2793
    %4137 = vmatpush1.bf16.msra.mxu0 %v2792
    %4138 = vmatprep.subr.bf16.mxu0 %v2789
    %4139 = vmatpush1.bf16.msra.mxu0 %v2788
    %4140 = vmatprep.subr.bf16.mxu0 %v2849
    %4141 = vmatpush2.bf16.msra.mxu0 %v2848
    %4142 = vmatprep.subr.bf16.mxu0 %v2845
    %4143 = vmatpush2.bf16.msra.mxu0 %v2844
    %4144 = vmatprep.subr.bf16.mxu0 %v2841
    %4145 = vmatpush2.bf16.msra.mxu0 %v2840
    %4146 = vmatprep.subr.bf16.mxu0 %v2837
    %4147 = vmatpush2.bf16.msra.mxu0 %v2836
    %4148 = vmatprep.subr.bf16.mxu0 %v2833
    %4149 = vmatpush2.bf16.msra.mxu0 %v2832
    %4150 = vmatprep.subr.bf16.mxu0 %v2829
    %4151 = vmatpush2.bf16.msra.mxu0 %v2828
    %4152 = vmatprep.subr.bf16.mxu0 %v2825
    %4153 = vmatpush2.bf16.msra.mxu0 %v2824
    %4154 = vmatprep.subr.bf16.mxu0 %v2821
    %4155 = vmatpush2.bf16.msra.mxu0 %v2820
    %4156 = vmatprep.mubr.bf16.mxu0 %v3990
    %4157 = vmatmul.mubr.bf16.gmra.mxu0 %v3989
    %v4158 = vpop.f32.mrf.mxu0
    %v4159 = vadd.f32 0.0, %v4158
    %v4160 = vpop.f32.mrf.mxu0
    %v4161 = vadd.f32 0.0, %v4160
    %v4162 = vpop.f32.mrf.mxu0
    %v4163 = vpop.f32.mrf.mxu0
    %4164 = vdwg.mxu0
    %4165 = vmatprep.subr.bf16.mxu0 %v2881
    %4166 = vmatpush1.bf16.msra.mxu0 %v2880
    %4167 = vmatprep.subr.bf16.mxu0 %v2877
    %4168 = vmatpush1.bf16.msra.mxu0 %v2876
    %4169 = vmatprep.subr.bf16.mxu0 %v2873
    %4170 = vmatpush1.bf16.msra.mxu0 %v2872
    %4171 = vmatprep.subr.bf16.mxu0 %v2869
    %4172 = vmatpush1.bf16.msra.mxu0 %v2868
    %4173 = vmatprep.subr.bf16.mxu0 %v2865
    %4174 = vmatpush1.bf16.msra.mxu0 %v2864
    %4175 = vmatprep.subr.bf16.mxu0 %v2861
    %4176 = vmatpush1.bf16.msra.mxu0 %v2860
    %4177 = vmatprep.subr.bf16.mxu0 %v2857
    %4178 = vmatpush1.bf16.msra.mxu0 %v2856
    %4179 = vmatprep.subr.bf16.mxu0 %v2853
    %4180 = vmatpush1.bf16.msra.mxu0 %v2852
    %4181 = vmatprep.subr.bf16.mxu0 %v2913
    %4182 = vmatpush2.bf16.msra.mxu0 %v2912
    %4183 = vmatprep.subr.bf16.mxu0 %v2909
    %4184 = vmatpush2.bf16.msra.mxu0 %v2908
    %4185 = vmatprep.subr.bf16.mxu0 %v2905
    %4186 = vmatpush2.bf16.msra.mxu0 %v2904
    %4187 = vmatprep.subr.bf16.mxu0 %v2901
    %4188 = vmatpush2.bf16.msra.mxu0 %v2900
    %4189 = vmatprep.subr.bf16.mxu0 %v2897
    %4190 = vmatpush2.bf16.msra.mxu0 %v2896
    %4191 = vmatprep.subr.bf16.mxu0 %v2893
    %4192 = vmatpush2.bf16.msra.mxu0 %v2892
    %4193 = vmatprep.subr.bf16.mxu0 %v2889
    %4194 = vmatpush2.bf16.msra.mxu0 %v2888
    %4195 = vmatprep.subr.bf16.mxu0 %v2885
    %4196 = vmatpush2.bf16.msra.mxu0 %v2884
    %4197 = vmatprep.mubr.bf16.mxu0 %v3992
    %4198 = vmatmul.mubr.bf16.gmra.mxu0 %v3991
    %v4199 = vpop.f32.mrf.mxu0
    %v4200 = vadd.f32 %v4159, %v4199
    %v4201 = vpop.f32.mrf.mxu0
    %v4202 = vadd.f32 %v4161, %v4201
    %v4203 = vpop.f32.mrf.mxu0
    %v4204 = vpop.f32.mrf.mxu0
    %4205 = vdwg.mxu0
    %4206 = vmatprep.subr.bf16.mxu0 %v2945
    %4207 = vmatpush1.bf16.msra.mxu0 %v2944
    %4208 = vmatprep.subr.bf16.mxu0 %v2941
    %4209 = vmatpush1.bf16.msra.mxu0 %v2940
    %4210 = vmatprep.subr.bf16.mxu0 %v2937
    %4211 = vmatpush1.bf16.msra.mxu0 %v2936
    %4212 = vmatprep.subr.bf16.mxu0 %v2933
    %4213 = vmatpush1.bf16.msra.mxu0 %v2932
    %4214 = vmatprep.subr.bf16.mxu0 %v2929
    %4215 = vmatpush1.bf16.msra.mxu0 %v2928
    %4216 = vmatprep.subr.bf16.mxu0 %v2925
    %4217 = vmatpush1.bf16.msra.mxu0 %v2924
    %4218 = vmatprep.subr.bf16.mxu0 %v2921
    %4219 = vmatpush1.bf16.msra.mxu0 %v2920
    %4220 = vmatprep.subr.bf16.mxu0 %v2917
    %4221 = vmatpush1.bf16.msra.mxu0 %v2916
    %4222 = vmatprep.subr.bf16.mxu0 %v2977
    %4223 = vmatpush2.bf16.msra.mxu0 %v2976
    %4224 = vmatprep.subr.bf16.mxu0 %v2973
    %4225 = vmatpush2.bf16.msra.mxu0 %v2972
    %4226 = vmatprep.subr.bf16.mxu0 %v2969
    %4227 = vmatpush2.bf16.msra.mxu0 %v2968
    %4228 = vmatprep.subr.bf16.mxu0 %v2965
    %4229 = vmatpush2.bf16.msra.mxu0 %v2964
    %4230 = vmatprep.subr.bf16.mxu0 %v2961
    %4231 = vmatpush2.bf16.msra.mxu0 %v2960
    %4232 = vmatprep.subr.bf16.mxu0 %v2957
    %4233 = vmatpush2.bf16.msra.mxu0 %v2956
    %4234 = vmatprep.subr.bf16.mxu0 %v2953
    %4235 = vmatpush2.bf16.msra.mxu0 %v2952
    %4236 = vmatprep.subr.bf16.mxu0 %v2949
    %4237 = vmatpush2.bf16.msra.mxu0 %v2948
    %4238 = vmatprep.mubr.bf16.mxu0 %v3994
    %4239 = vmatmul.mubr.bf16.gmra.mxu0 %v3993
    %v4240 = vpop.f32.mrf.mxu0
    %v4241 = vadd.f32 %v4200, %v4240
    %v4242 = vpop.f32.mrf.mxu0
    %v4243 = vadd.f32 %v4202, %v4242
    %v4244 = vpop.f32.mrf.mxu0
    %v4245 = vpop.f32.mrf.mxu0
    %4246 = vdwg.mxu0
    %v4247 = vmax.f32 %v4118, %v4120
    %v4248 = vmax.f32 %v4241, %v4243
    %v4249 = vmax.f32 %v4247, %v4248
    %v4250 = vadd.f32 %v4249, %v398
    %v4251 = vmax.f32 %v4250, 0.0
    %v4252 = vpack.c.bf16 %v4251, %v4251
    %4253 = vst [vmem:[#allocation3 + $0xc] sm:$0xf] %v4252
    %v4254 = vld [vmem:[#allocation3] sm:$0xff]
    %v4255 = vld [vmem:[#allocation3 + $0x8] sm:$0xff]
    %v4256 = vld [vmem:[%s5] sm:$0xf]
    %v4257 = vld [vmem:[%s5 + $0x4] sm:$0xf]
    %v4258 = vld [vmem:[%s5 + $0x8] sm:$0xf]
    %v4259 = vld [vmem:[%s5 + $0xc] sm:$0xf]
    %v4260 = vld [vmem:[%s5 + $0x10] sm:$0xf]
    %v4261 = vld [vmem:[%s5 + $0x14] sm:$0xf]
    %v4262 = vld [vmem:[%s5 + $0x18] sm:$0xf]
    %v4263 = vld [vmem:[%s5 + $0x1c] sm:$0xf]
    %v4264 = vld [vmem:[%s5 + $0x20] sm:$0xf]
    %v4265 = vld [vmem:[%s5 + $0x24] sm:$0xf]
    %v4266 = vld [vmem:[%s5 + $0x28] sm:$0xf]
    %v4267 = vld [vmem:[%s5 + $0x2c] sm:$0xf]
    %v4268 = vld [vmem:[%s5 + $0x30] sm:$0xf]
    %v4269 = vld [vmem:[%s5 + $0x34] sm:$0xf]
    %v4270 = vld [vmem:[%s5 + $0x38] sm:$0xf]
    %v4271 = vld [vmem:[%s5 + $0x3c] sm:$0xf]
    %v4272 = vld [vmem:[%s5 + $0x40] sm:$0xf]
    %v4273 = vld [vmem:[%s5 + $0x44] sm:$0xf]
    %v4274 = vld [vmem:[%s5 + $0x48] sm:$0xf]
    %v4275 = vld [vmem:[%s5 + $0x4c] sm:$0xf]
    %v4276 = vld [vmem:[%s5 + $0x50] sm:$0xf]
    %v4277 = vld [vmem:[%s5 + $0x54] sm:$0xf]
    %v4278 = vld [vmem:[%s5 + $0x58] sm:$0xf]
    %v4279 = vld [vmem:[%s5 + $0x5c] sm:$0xf]
    %v4280 = vld [vmem:[%s5 + $0x60] sm:$0xf]
    %v4281 = vld [vmem:[%s5 + $0x64] sm:$0xf]
    %v4282 = vld [vmem:[%s5 + $0x68] sm:$0xf]
    %v4283 = vld [vmem:[%s5 + $0x6c] sm:$0xf]
    %v4284 = vld [vmem:[%s5 + $0x70] sm:$0xf]
    %v4285 = vld [vmem:[%s5 + $0x74] sm:$0xf]
    %v4286 = vld [vmem:[%s5 + $0x78] sm:$0xf]
    %v4287 = vld [vmem:[%s5 + $0x7c] sm:$0xf]
    %v4288 = vld [vmem:[%s5 + $0x80] sm:$0xf]
    %v4289 = vld [vmem:[%s5 + $0x84] sm:$0xf]
    %v4290 = vld [vmem:[%s5 + $0x88] sm:$0xf]
    %v4291 = vld [vmem:[%s5 + $0x8c] sm:$0xf]
    %v4292 = vld [vmem:[%s5 + $0x90] sm:$0xf]
    %v4293 = vld [vmem:[%s5 + $0x94] sm:$0xf]
    %v4294 = vld [vmem:[%s5 + $0x98] sm:$0xf]
    %v4295 = vld [vmem:[%s5 + $0x9c] sm:$0xf]
    %v4296 = vld [vmem:[%s5 + $0xa0] sm:$0xf]
    %v4297 = vld [vmem:[%s5 + $0xa4] sm:$0xf]
    %v4298 = vld [vmem:[%s5 + $0xa8] sm:$0xf]
    %v4299 = vld [vmem:[%s5 + $0xac] sm:$0xf]
    %v4300 = vld [vmem:[%s5 + $0xb0] sm:$0xf]
    %v4301 = vld [vmem:[%s5 + $0xb4] sm:$0xf]
    %v4302 = vld [vmem:[%s5 + $0xb8] sm:$0xf]
    %v4303 = vld [vmem:[%s5 + $0xbc] sm:$0xf]
    %v4304 = vld [vmem:[%s5 + $0xc0] sm:$0xf]
    %v4305 = vld [vmem:[%s5 + $0xc4] sm:$0xf]
    %v4306 = vld [vmem:[%s5 + $0xc8] sm:$0xf]
    %v4307 = vld [vmem:[%s5 + $0xcc] sm:$0xf]
    %v4308 = vld [vmem:[%s5 + $0xd0] sm:$0xf]
    %v4309 = vld [vmem:[%s5 + $0xd4] sm:$0xf]
    %v4310 = vld [vmem:[%s5 + $0xd8] sm:$0xf]
    %v4311 = vld [vmem:[%s5 + $0xdc] sm:$0xf]
    %v4312 = vld [vmem:[%s5 + $0xe0] sm:$0xf]
    %v4313 = vld [vmem:[%s5 + $0xe4] sm:$0xf]
    %v4314 = vld [vmem:[%s5 + $0xe8] sm:$0xf]
    %v4315 = vld [vmem:[%s5 + $0xec] sm:$0xf]
    %v4316 = vld [vmem:[%s5 + $0xf0] sm:$0xf]
    %v4317 = vld [vmem:[%s5 + $0xf4] sm:$0xf]
    %v4318 = vld [vmem:[%s5 + $0xf8] sm:$0xf]
    %v4319 = vld [vmem:[%s5 + $0xfc] sm:$0xf]
    %v4320 = vld [vmem:[%s6] sm:$0x1]
    %v4322 = vlaneseq
    %v4323 = vshrl.u32 %v4322, 7
    %v4324 = vsub.s32 0, %v4323
    %v4325 = vrot.slane %v4320, %v4324
    %v4329 = vunpack.c.l.b16 %v4254
    %v4330 = vunpack.c.h.b16 %v4254
    %v4331 = vunpack.c.l.b16 %v4255
    %v4332 = vunpack.c.h.b16 %v4255
    %v4333 = vpack.c.b16 %v4329, %v4329
    %v4334 = vpack.c.b16 %v4330, %v4330
    %v4335 = vpack.c.b16 %v4331, %v4331
    %v4336 = vpack.c.b16 %v4332, %v4332
    %v4405 = vunpack.c.l.b16 %v4256
    %v4406 = vunpack.c.l.b16 %v4257
    %v4407 = vunpack.c.l.b16 %v4258
    %v4408 = vunpack.c.l.b16 %v4259
    %v4409 = vunpack.c.l.b16 %v4260
    %v4410 = vunpack.c.l.b16 %v4261
    %v4411 = vunpack.c.l.b16 %v4262
    %v4412 = vunpack.c.l.b16 %v4263
    %v4413 = vunpack.c.l.b16 %v4264
    %v4414 = vunpack.c.l.b16 %v4265
    %v4415 = vunpack.c.l.b16 %v4266
    %v4416 = vunpack.c.l.b16 %v4267
    %v4417 = vunpack.c.l.b16 %v4268
    %v4418 = vunpack.c.l.b16 %v4269
    %v4419 = vunpack.c.l.b16 %v4270
    %v4420 = vunpack.c.l.b16 %v4271
    %v4421 = vunpack.c.l.b16 %v4272
    %v4422 = vunpack.c.l.b16 %v4273
    %v4423 = vunpack.c.l.b16 %v4274
    %v4424 = vunpack.c.l.b16 %v4275
    %v4425 = vunpack.c.l.b16 %v4276
    %v4426 = vunpack.c.l.b16 %v4277
    %v4427 = vunpack.c.l.b16 %v4278
    %v4428 = vunpack.c.l.b16 %v4279
    %v4429 = vunpack.c.l.b16 %v4280
    %v4430 = vunpack.c.l.b16 %v4281
    %v4431 = vunpack.c.l.b16 %v4282
    %v4432 = vunpack.c.l.b16 %v4283
    %v4433 = vunpack.c.l.b16 %v4284
    %v4434 = vunpack.c.l.b16 %v4285
    %v4435 = vunpack.c.l.b16 %v4286
    %v4436 = vunpack.c.l.b16 %v4287
    %v4437 = vunpack.c.l.b16 %v4288
    %v4438 = vunpack.c.l.b16 %v4289
    %v4439 = vunpack.c.l.b16 %v4290
    %v4440 = vunpack.c.l.b16 %v4291
    %v4441 = vunpack.c.l.b16 %v4292
    %v4442 = vunpack.c.l.b16 %v4293
    %v4443 = vunpack.c.l.b16 %v4294
    %v4444 = vunpack.c.l.b16 %v4295
    %v4445 = vunpack.c.l.b16 %v4296
    %v4446 = vunpack.c.l.b16 %v4297
    %v4447 = vunpack.c.l.b16 %v4298
    %v4448 = vunpack.c.l.b16 %v4299
    %v4449 = vunpack.c.l.b16 %v4300
    %v4450 = vunpack.c.l.b16 %v4301
    %v4451 = vunpack.c.l.b16 %v4302
    %v4452 = vunpack.c.l.b16 %v4303
    %v4453 = vunpack.c.l.b16 %v4304
    %v4454 = vunpack.c.l.b16 %v4305
    %v4455 = vunpack.c.l.b16 %v4306
    %v4456 = vunpack.c.l.b16 %v4307
    %v4457 = vunpack.c.l.b16 %v4308
    %v4458 = vunpack.c.l.b16 %v4309
    %v4459 = vunpack.c.l.b16 %v4310
    %v4460 = vunpack.c.l.b16 %v4311
    %v4461 = vunpack.c.l.b16 %v4312
    %v4462 = vunpack.c.l.b16 %v4313
    %v4463 = vunpack.c.l.b16 %v4314
    %v4464 = vunpack.c.l.b16 %v4315
    %v4465 = vunpack.c.l.b16 %v4316
    %v4466 = vunpack.c.l.b16 %v4317
    %v4467 = vunpack.c.l.b16 %v4318
    %v4468 = vunpack.c.l.b16 %v4319
    %v4469 = vpack.c.b16 %v4406, %v4405
    %v4470 = vpack.c.b16 %v4408, %v4407
    %v4471 = vpack.c.b16 %v4410, %v4409
    %v4472 = vpack.c.b16 %v4412, %v4411
    %v4473 = vpack.c.b16 %v4414, %v4413
    %v4474 = vpack.c.b16 %v4416, %v4415
    %v4475 = vpack.c.b16 %v4418, %v4417
    %v4476 = vpack.c.b16 %v4420, %v4419
    %v4477 = vpack.c.b16 %v4422, %v4421
    %v4478 = vpack.c.b16 %v4424, %v4423
    %v4479 = vpack.c.b16 %v4426, %v4425
    %v4480 = vpack.c.b16 %v4428, %v4427
    %v4481 = vpack.c.b16 %v4430, %v4429
    %v4482 = vpack.c.b16 %v4432, %v4431
    %v4483 = vpack.c.b16 %v4434, %v4433
    %v4484 = vpack.c.b16 %v4436, %v4435
    %v4485 = vpack.c.b16 %v4438, %v4437
    %v4486 = vpack.c.b16 %v4440, %v4439
    %v4487 = vpack.c.b16 %v4442, %v4441
    %v4488 = vpack.c.b16 %v4444, %v4443
    %v4489 = vpack.c.b16 %v4446, %v4445
    %v4490 = vpack.c.b16 %v4448, %v4447
    %v4491 = vpack.c.b16 %v4450, %v4449
    %v4492 = vpack.c.b16 %v4452, %v4451
    %v4493 = vpack.c.b16 %v4454, %v4453
    %v4494 = vpack.c.b16 %v4456, %v4455
    %v4495 = vpack.c.b16 %v4458, %v4457
    %v4496 = vpack.c.b16 %v4460, %v4459
    %v4497 = vpack.c.b16 %v4462, %v4461
    %v4498 = vpack.c.b16 %v4464, %v4463
    %v4499 = vpack.c.b16 %v4466, %v4465
    %v4500 = vpack.c.b16 %v4468, %v4467
    %4533 = vmatprep.subr.bf16.mxu0 0
    %4534 = vmatpush1.bf16.msra.mxu0 %v4476
    %4535 = vmatprep.subr.bf16.mxu0 0
    %4536 = vmatpush1.bf16.msra.mxu0 %v4475
    %4537 = vmatprep.subr.bf16.mxu0 0
    %4538 = vmatpush1.bf16.msra.mxu0 %v4474
    %4539 = vmatprep.subr.bf16.mxu0 0
    %4540 = vmatpush1.bf16.msra.mxu0 %v4473
    %4541 = vmatprep.subr.bf16.mxu0 0
    %4542 = vmatpush1.bf16.msra.mxu0 %v4472
    %4543 = vmatprep.subr.bf16.mxu0 0
    %4544 = vmatpush1.bf16.msra.mxu0 %v4471
    %4545 = vmatprep.subr.bf16.mxu0 0
    %4546 = vmatpush1.bf16.msra.mxu0 %v4470
    %4547 = vmatprep.subr.bf16.mxu0 0
    %4548 = vmatpush1.bf16.msra.mxu0 %v4469
    %4549 = vmatprep.subr.bf16.mxu0 0
    %4550 = vmatpush2.bf16.msra.mxu0 %v4484
    %4551 = vmatprep.subr.bf16.mxu0 0
    %4552 = vmatpush2.bf16.msra.mxu0 %v4483
    %4553 = vmatprep.subr.bf16.mxu0 0
    %4554 = vmatpush2.bf16.msra.mxu0 %v4482
    %4555 = vmatprep.subr.bf16.mxu0 0
    %4556 = vmatpush2.bf16.msra.mxu0 %v4481
    %4557 = vmatprep.subr.bf16.mxu0 0
    %4558 = vmatpush2.bf16.msra.mxu0 %v4480
    %4559 = vmatprep.subr.bf16.mxu0 0
    %4560 = vmatpush2.bf16.msra.mxu0 %v4479
    %4561 = vmatprep.subr.bf16.mxu0 0
    %4562 = vmatpush2.bf16.msra.mxu0 %v4478
    %4563 = vmatprep.subr.bf16.mxu0 0
    %4564 = vmatpush2.bf16.msra.mxu0 %v4477
    %4565 = vmatprep.mubr.bf16.mxu0 %v4334
    %4566 = vmatmul.mubr.bf16.gmra.mxu0 %v4333
    %v4567 = vpop.f32.mrf.mxu0
    %v4568 = vadd.f32 %v4325, %v4567
    %v4569 = vpop.f32.mrf.mxu0
    %v4570 = vpop.f32.mrf.mxu0
    %v4571 = vpop.f32.mrf.mxu0
    %4572 = vdwg.mxu0
    %4573 = vmatprep.subr.bf16.mxu0 0
    %4574 = vmatpush1.bf16.msra.mxu0 %v4492
    %4575 = vmatprep.subr.bf16.mxu0 0
    %4576 = vmatpush1.bf16.msra.mxu0 %v4491
    %4577 = vmatprep.subr.bf16.mxu0 0
    %4578 = vmatpush1.bf16.msra.mxu0 %v4490
    %4579 = vmatprep.subr.bf16.mxu0 0
    %4580 = vmatpush1.bf16.msra.mxu0 %v4489
    %4581 = vmatprep.subr.bf16.mxu0 0
    %4582 = vmatpush1.bf16.msra.mxu0 %v4488
    %4583 = vmatprep.subr.bf16.mxu0 0
    %4584 = vmatpush1.bf16.msra.mxu0 %v4487
    %4585 = vmatprep.subr.bf16.mxu0 0
    %4586 = vmatpush1.bf16.msra.mxu0 %v4486
    %4587 = vmatprep.subr.bf16.mxu0 0
    %4588 = vmatpush1.bf16.msra.mxu0 %v4485
    %4589 = vmatprep.subr.bf16.mxu0 0
    %4590 = vmatpush2.bf16.msra.mxu0 %v4500
    %4591 = vmatprep.subr.bf16.mxu0 0
    %4592 = vmatpush2.bf16.msra.mxu0 %v4499
    %4593 = vmatprep.subr.bf16.mxu0 0
    %4594 = vmatpush2.bf16.msra.mxu0 %v4498
    %4595 = vmatprep.subr.bf16.mxu0 0
    %4596 = vmatpush2.bf16.msra.mxu0 %v4497
    %4597 = vmatprep.subr.bf16.mxu0 0
    %4598 = vmatpush2.bf16.msra.mxu0 %v4496
    %4599 = vmatprep.subr.bf16.mxu0 0
    %4600 = vmatpush2.bf16.msra.mxu0 %v4495
    %4601 = vmatprep.subr.bf16.mxu0 0
    %4602 = vmatpush2.bf16.msra.mxu0 %v4494
    %4603 = vmatprep.subr.bf16.mxu0 0
    %4604 = vmatpush2.bf16.msra.mxu0 %v4493
    %4605 = vmatprep.mubr.bf16.mxu0 %v4336
    %4606 = vmatmul.mubr.bf16.gmra.mxu0 %v4335
    %v4607 = vpop.f32.mrf.mxu0
    %v4608 = vadd.f32 %v4568, %v4607
    %v4609 = vpop.f32.mrf.mxu0
    %v4610 = vpop.f32.mrf.mxu0
    %v4611 = vpop.f32.mrf.mxu0
    %4612 = vdwg.mxu0
    %v4613 = vmax.f32 %v4608, 0.0
    %v4614 = vpack.c.bf16 %v4613, %v4613
    %v4615 = vld [vmem:[%s7] sm:$0xf]
    %v4616 = vld [vmem:[%s7 + $0x4] sm:$0xf]
    %v4617 = vld [vmem:[%s7 + $0x8] sm:$0xf]
    %v4618 = vld [vmem:[%s7 + $0xc] sm:$0xf]
    %v4619 = vld [vmem:[%s7 + $0x10] sm:$0xf]
    %v4620 = vld [vmem:[%s7 + $0x14] sm:$0xf]
    %v4621 = vld [vmem:[%s7 + $0x18] sm:$0xf]
    %v4622 = vld [vmem:[%s7 + $0x1c] sm:$0xf]
    %v4623 = vld [vmem:[%s8] sm:$0x1]
    %v4625 = vlaneseq
    %v4626 = vshrl.u32 %v4625, 7
    %v4627 = vsub.s32 0, %v4626
    %v4628 = vrot.slane %v4623, %v4627
    %v4638 = vunpack.c.l.b16 %v4615
    %v4639 = vunpack.c.l.b16 %v4616
    %v4640 = vunpack.c.l.b16 %v4617
    %v4641 = vunpack.c.l.b16 %v4618
    %v4642 = vunpack.c.l.b16 %v4619
    %v4643 = vunpack.c.l.b16 %v4620
    %v4644 = vunpack.c.l.b16 %v4621
    %v4645 = vunpack.c.l.b16 %v4622
    %v4646 = vpack.c.b16 %v4639, %v4638
    %v4647 = vpack.c.b16 %v4641, %v4640
    %v4648 = vpack.c.b16 %v4643, %v4642
    %v4649 = vpack.c.b16 %v4645, %v4644
    %vm4654 = vcmask 523264
    %v4656 = vsel %vm4654, %v4614, 0
    %4658 = vmatprep.subr.bf16.mxu0 0
    %4659 = vmatpush1.bf16.msra.mxu0 0
    %4660 = vmatprep.subr.bf16.mxu0 0
    %4661 = vmatpush1.bf16.msra.mxu0 0
    %4662 = vmatprep.subr.bf16.mxu0 0
    %4663 = vmatpush1.bf16.msra.mxu0 0
    %4664 = vmatprep.subr.bf16.mxu0 0
    %4665 = vmatpush1.bf16.msra.mxu0 0
    %4666 = vmatprep.subr.bf16.mxu0 0
    %4667 = vmatpush1.bf16.msra.mxu0 %v4649
    %4668 = vmatprep.subr.bf16.mxu0 0
    %4669 = vmatpush1.bf16.msra.mxu0 %v4648
    %4670 = vmatprep.subr.bf16.mxu0 0
    %4671 = vmatpush1.bf16.msra.mxu0 %v4647
    %4672 = vmatprep.subr.bf16.mxu0 0
    %4673 = vmatpush1.bf16.msra.mxu0 %v4646
    %4674 = vmatprep.subr.bf16.mxu0 0
    %4675 = vmatpush2.bf16.msra.mxu0 0
    %4676 = vmatprep.subr.bf16.mxu0 0
    %4677 = vmatpush2.bf16.msra.mxu0 0
    %4678 = vmatprep.subr.bf16.mxu0 0
    %4679 = vmatpush2.bf16.msra.mxu0 0
    %4680 = vmatprep.subr.bf16.mxu0 0
    %4681 = vmatpush2.bf16.msra.mxu0 0
    %4682 = vmatprep.subr.bf16.mxu0 0
    %4683 = vmatpush2.bf16.msra.mxu0 0
    %4684 = vmatprep.subr.bf16.mxu0 0
    %4685 = vmatpush2.bf16.msra.mxu0 0
    %4686 = vmatprep.subr.bf16.mxu0 0
    %4687 = vmatpush2.bf16.msra.mxu0 0
    %4688 = vmatprep.subr.bf16.mxu0 0
    %4689 = vmatpush2.bf16.msra.mxu0 0
    %4690 = vmatprep.mubr.bf16.mxu0 0
    %4691 = vmatmul.mubr.bf16.gmra.mxu0 %v4656
    %v4692 = vpop.f32.mrf.mxu0
    %v4693 = vadd.f32 %v4628, %v4692
    %v4694 = vpop.f32.mrf.mxu0
    %v4695 = vpop.f32.mrf.mxu0
    %v4696 = vpop.f32.mrf.mxu0
    %4697 = vdwg.mxu0
    %4698 = vmax.xlane.f32.xlu0 %v4693
    %v4699 = vpop.xlane.xlu0 %4698
    %v4700 = vsub.f32 %v4693, %v4699
    %v4701 = vmul.f32 %v4700, 1.442695
    %v4702 = vpow.pop %v4701
    %4703 = vadd.xlane.f32.xlu0 %v4702
    %v4704 = vpop.xlane.xlu0 %4703
    %v4705 = vlog2.pop %v4704
    %v4706 = vmul.f32 %v4705, 0.6931472
    %v4707 = vsub.f32 %v4700, %v4706
    %4708 = vst [vmem:[%s9] sm:$0xff] %v4707
    // Predicated region
    $region46: #{net_forward.1} parent=1 // pred_check
      _
    $region47: #{net_forward.1} parent=1 // pred_check_branch
      %4710 = sbr.rel (0) target = $region49
    $region48: #{net_forward.1} parent=1 // pred_region
      _
    $region49: #{net_forward.1} parent=1 // pred_fallthru
      _
    // Predicated region
    $region50: #{net_forward.1} parent=1 // pred_check
      _
    $region51: #{net_forward.1} parent=1 // pred_check_branch
      %4712 = sbr.rel (0) target = $region53
    $region52: #{net_forward.1} parent=1 // pred_region
      _
    $region53: #{net_forward.1} parent=1 // pred_fallthru
      _
    %4713 = vsyncpa [#allocation5], 1
    %4714 = vsyncpa [#allocation7], 1

</llo_original>
